<compile_context>
chip_gen: v5e
topology: v5e:2x2
jax: 0.10.0
libtpu: 0.0.40
codegen_flags: <defaults>
</compile_context>

<pallas_src>
import functools

import jax
import jax.numpy as jnp
from jax.experimental import pallas as pl
from jax.experimental.pallas import tpu as pltpu

LANE = 128


def _round_up(x, m):
    return ((x + m - 1) // m) * m


# ----------------------------------------------------------------------------
# Pallas kernel: fused matmul + bias + activation (the conv hot path)
# ----------------------------------------------------------------------------
def _matmul_bias_act_kernel(x_ref, w_ref, b_ref, o_ref, *, act):
    # bf16 operands, f32 accumulation on the MXU.
    acc = jnp.dot(x_ref[...], w_ref[...], preferred_element_type=jnp.float32)
    acc = acc + b_ref[...]
    if act == "relu":
        acc = jnp.maximum(acc, 0.0)
    elif act == "sigmoid":
        # exp and approx reciprocal both issue on the EUP slot.
        acc = pl.reciprocal(1.0 + jnp.exp(-acc), approx=True)
        # approx recip can overshoot by ~2^-12; clamp to keep exact [0, 1].
        acc = jnp.minimum(jnp.maximum(acc, 0.0), 1.0)
    o_ref[...] = acc.astype(o_ref.dtype)


def matmul_bias_act(patches, w_mat, bias_row, act, out_dtype):
    """patches: (M, K) bf16, w_mat: (K, Cp) bf16, bias_row: (1, Cp) f32."""
    M, K = patches.shape
    Cp = w_mat.shape[1]

    # Per-layer M tiling: single whole-array block for small layers (M = 2..128,
    # no padding to 128 rows any more); 256-row tiles for the two big layers,
    # giving a 2-step "parallel" grid that v7x can shard across its TensorCores.
    if M > 256:
        tile_m = 256
        Mp = _round_up(M, tile_m)
        if Mp != M:
            patches = jnp.pad(patches, ((0, Mp - M), (0, 0)))
    else:
        tile_m = M
        Mp = M

    out = pl.pallas_call(
        functools.partial(_matmul_bias_act_kernel, act=act),
        out_shape=jax.ShapeDtypeStruct((Mp, Cp), out_dtype),
        grid_spec=pltpu.PrefetchScalarGridSpec(
            num_scalar_prefetch=0,
            grid=(Mp // tile_m,),
            in_specs=[
                pl.BlockSpec((tile_m, K), lambda i: (i, 0)),
                pl.BlockSpec((K, Cp), lambda i: (0, 0)),
                pl.BlockSpec((1, Cp), lambda i: (0, 0)),
            ],
            out_specs=pl.BlockSpec((tile_m, Cp), lambda i: (i, 0)),
        ),
        compiler_params=pltpu.CompilerParams(
            dimension_semantics=("parallel",)),
    )(patches, w_mat, bias_row)
    return out[:M]


# ----------------------------------------------------------------------------
# JAX glue: patch extraction (im2col), layer wrappers
# ----------------------------------------------------------------------------
def _im2col(x_nhwc, k, stride, pad_h, pad_w):
    """Returns (N*Hout*Wout, k*k*C) patches (tap-major, channel-minor)."""
    N, H, W, C = x_nhwc.shape
    xp = jnp.pad(x_nhwc, ((0, 0), pad_h, pad_w, (0, 0)))
    Hout = (H + pad_h[0] + pad_h[1] - k) // stride + 1
    Wout = (W + pad_w[0] + pad_w[1] - k) // stride + 1
    cols = []
    for di in range(k):
        for dj in range(k):
            cols.append(xp[:, di:di + stride * Hout:stride,
                           dj:dj + stride * Wout:stride, :])
    patches = jnp.stack(cols, axis=3)                # (N,Hout,Wout,k*k,C)
    return patches.reshape(N * Hout * Wout, k * k * C), Hout, Wout


def conv2d(x, w, bias_row, cout, act, out_dtype):
    """3x3, stride=2, padding=1 conv as one fused Pallas matmul."""
    N = x.shape[0]
    patches, Ho, Wo = _im2col(x, 3, 2, (1, 1), (1, 1))
    patches = patches.astype(jnp.bfloat16)
    K = w.shape[0]
    if patches.shape[1] != K:                        # only layer 1 (K=36 -> 48)
        patches = jnp.pad(patches, ((0, 0), (0, K - patches.shape[1])))
    out = matmul_bias_act(patches, w, bias_row, act, out_dtype)
    return out[:, :cout].reshape(N, Ho, Wo, cout)


def conv_transpose2d(x, w, bias_row, cout, act, out_dtype):
    """3x3, stride=2, padding=1, output_padding=1 ConvTranspose2d via the
    sub-pixel decomposition: k=2 stride-1 conv producing the 4 output phases
    as channel groups, then interleave to (N, 2H, 2W, Cout)."""
    N, H, W, _ = x.shape
    patches, _, _ = _im2col(x, 2, 1, (0, 1), (0, 1))     # (N*H*W, 4*Cin)
    patches = patches.astype(jnp.bfloat16)
    out = matmul_bias_act(patches, w, bias_row, act, out_dtype)
    out = out[:, :4 * cout].reshape(N, H, W, 2, 2, cout)   # (.., pi, pj, co)
    out = jnp.transpose(out, (0, 1, 3, 2, 4, 5)).reshape(N, 2 * H, 2 * W, cout)
    return out


# ----------------------------------------------------------------------------
# One-time weight preparation (outside the jitted forward)
# ----------------------------------------------------------------------------
def _prep_conv(W, b):
    """W: (Cout, Cin, 3, 3) -> bf16 (K[pad16], Cp=round128) matrix + f32 bias row."""
    Cout, Cin, k, _ = W.shape
    w = jnp.transpose(W, (2, 3, 1, 0)).reshape(k * k * Cin, Cout)
    K = w.shape[0]
    Kp = _round_up(K, 16)
    Cp = _round_up(Cout, LANE)
    w = jnp.pad(w, ((0, Kp - K), (0, Cp - Cout))).astype(jnp.bfloat16)
    br = jnp.pad(b.reshape(1, Cout), ((0, 0), (0, Cp - Cout))).astype(jnp.float32)
    return w, br


def _prep_convT(W, b):
    """W: (Cin, Cout, 3, 3) PyTorch ConvTranspose2d weight -> sub-pixel
    weight matrix (4*Cin, round128(4*Cout)) bf16 + f32 bias row.
    Phase (pi,pj) of the output uses kernel tap (pi+1-2dh, pj+1-2dw) for the
    input element at offset (dh, dw) (zero if the tap index falls outside)."""
    Cin, Cout = W.shape[0], W.shape[1]
    Wp = jnp.pad(W, ((0, 0), (0, 0), (1, 0), (1, 0)))     # spatial idx 0 <-> -1
    blocks = []
    for dh in (0, 1):
        for dw in (0, 1):
            blocks.append(Wp[:, :, 2 - 2 * dh:4 - 2 * dh, 2 - 2 * dw:4 - 2 * dw])
    Wb = jnp.stack(blocks, axis=0)                 # (4[dh*2+dw], Cin, Cout, pi, pj)
    Wb = jnp.transpose(Wb, (0, 1, 3, 4, 2))        # (4, Cin, pi, pj, Cout)
    w = Wb.reshape(4 * Cin, 4 * Cout)
    Cfull = 4 * Cout
    Cp = _round_up(Cfull, LANE)
    w = jnp.pad(w, ((0, 0), (0, Cp - Cfull))).astype(jnp.bfloat16)
    br = jnp.pad(jnp.tile(b, 4).reshape(1, Cfull),
                 ((0, 0), (0, Cp - Cfull))).astype(jnp.float32)
    return w, br


def prepare_params(params):
    return {
        "enc": [_prep_conv(w, b) for (w, b) in params["enc"]],
        "dec": [_prep_convT(w, b) for (w, b) in params["dec"]],
    }


# ----------------------------------------------------------------------------
# Parameters (deterministic init, PyTorch-like uniform bounds)
# ----------------------------------------------------------------------------
def init_params(key, num_channels):
    enc_ch = [(num_channels, 128), (128, 64), (64, 32), (32, 16), (16, 8)]
    dec_ch = [(8, 16), (16, 32), (32, 64), (64, 128), (128, num_channels)]
    params = {"enc": [], "dec": []}
    for cin, cout in enc_ch:
        key, k1, k2 = jax.random.split(key, 3)
        bound = (cin * 9) ** -0.5
        w = jax.random.uniform(k1, (cout, cin, 3, 3), jnp.float32, -bound, bound)
        bb = jax.random.uniform(k2, (cout,), jnp.float32, -bound, bound)
        params["enc"].append((w, bb))
    for cin, cout in dec_ch:
        key, k1, k2 = jax.random.split(key, 3)
        bound = (cout * 9) ** -0.5   # PyTorch ConvTranspose fan_in = size(1)*k*k
        w = jax.random.uniform(k1, (cin, cout, 3, 3), jnp.float32, -bound, bound)
        bb = jax.random.uniform(k2, (cout,), jnp.float32, -bound, bound)
        params["dec"].append((w, bb))
    return params


# ----------------------------------------------------------------------------
# Full AE forward (NCHW in, NCHW out — matches the PyTorch module)
# ----------------------------------------------------------------------------
def make_ae_forward(num_channels):
    enc_out = [128, 64, 32, 16, 8]
    dec_out = [16, 32, 64, 128, num_channels]
    enc_act = ["relu", "relu", "relu", "relu", "none"]
    dec_act = ["relu", "relu", "relu", "relu", "sigmoid"]

    def ae_forward(x_nchw, prep):
        x = jnp.transpose(x_nchw, (0, 2, 3, 1))     # NCHW -> NHWC
        for i, (w, br) in enumerate(prep["enc"]):
            x = conv2d(x, w, br, enc_out[i], enc_act[i], jnp.bfloat16)
        for i, (w, br) in enumerate(prep["dec"]):
            last = i == len(prep["dec"]) - 1
            odt = jnp.float32 if last else jnp.bfloat16
            x = conv_transpose2d(x, w, br, dec_out[i], dec_act[i], odt)
        return jnp.transpose(x, (0, 3, 1, 2))       # NHWC -> NCHW

    return ae_forward


if __name__ == "__main__":
    key = jax.random.PRNGKey(0)
    kx, kp = jax.random.split(key)
    num_channels = 4
    # spatial 32 so the 5x stride-2 encoder bottoms out at 1x1 and the decoder
    # reconstructs the input resolution exactly.
    x = jax.random.uniform(kx, (2, num_channels, 32, 32), jnp.float32)
    params = init_params(kp, num_channels)
    prep = prepare_params(params)      # one-time weight reshape/pad/bf16 cast

    fwd = jax.jit(make_ae_forward(num_channels))
    y = fwd(x, prep)
    jax.block_until_ready(y)

    assert y.shape == (2, num_channels, 32, 32), y.shape
    assert bool(jnp.all(jnp.isfinite(y)))
    assert bool(jnp.all((y >= 0.0) & (y <= 1.0)))  # sigmoid output range
    print("KERNEL_OK")
</pallas_src>

<mosaic_0001>
module attributes {stable_mosaic.version = 11 : i64} {
  func.func @_matmul_bias_act_kernel(%arg0: i32, %arg1: memref<256x48xbf16, #tpu.memory_space<vmem>>, %arg2: memref<48x128xbf16, #tpu.memory_space<vmem>>, %arg3: memref<1x128xf32, #tpu.memory_space<vmem>>, %arg4: memref<256x128xbf16, #tpu.memory_space<vmem>>) attributes {dimension_semantics = [#tpu.dimension_semantics<parallel>], iteration_bounds = array<i64: 2>, scalar_prefetch = 0 : i64, scratch_operands = 0 : i64, tpu.core_type = #tpu.core_type<tc>, window_params = [{transform_indices = @transform_0, window_bounds = array<i64: 256, 48>}, {pipeline_mode = #tpu.pipeline_mode<synchronous>, transform_indices = @transform_1, window_bounds = array<i64: 48, 128>}, {pipeline_mode = #tpu.pipeline_mode<synchronous>, transform_indices = @transform_2, window_bounds = array<i64: 1, 128>}, {transform_indices = @transform_3, window_bounds = array<i64: 256, 128>}]} {
    %c0 = arith.constant 0 : index
    %c0_0 = arith.constant 0 : index
    %0 = vector.load %arg1[%c0, %c0_0] : memref<256x48xbf16, #tpu.memory_space<vmem>>, vector<256x48xbf16>
    %c0_1 = arith.constant 0 : index
    %c0_2 = arith.constant 0 : index
    %1 = vector.load %arg2[%c0_1, %c0_2] : memref<48x128xbf16, #tpu.memory_space<vmem>>, vector<48x128xbf16>
    %cst = arith.constant dense<0.000000e+00> : vector<256x128xf32>
    %2 = tpu.matmul %0, %1, %cst {dimension_numbers = #tpu.dot_dimension_numbers<[1], [0], [0], [1], [0, 0, 1, 1], [], []>} : vector<256x48xbf16>, vector<48x128xbf16>, vector<256x128xf32> -> vector<256x128xf32>
    %c0_3 = arith.constant 0 : index
    %c0_4 = arith.constant 0 : index
    %3 = vector.load %arg3[%c0_3, %c0_4] : memref<1x128xf32, #tpu.memory_space<vmem>>, vector<1x128xf32>
    %4 = vector.broadcast %3 : vector<1x128xf32> to vector<256x128xf32>
    %5 = arith.addf %2, %4 : vector<256x128xf32>
    %cst_5 = arith.constant 0.000000e+00 : f32
    %6 = vector.broadcast %cst_5 : f32 to vector<256x128xf32>
    %7 = arith.maximumf %5, %6 : vector<256x128xf32>
    %8 = arith.truncf %7 : vector<256x128xf32> to vector<256x128xbf16>
    %c0_6 = arith.constant 0 : index
    %c0_7 = arith.constant 0 : index
    %9 = vector.load %arg4[%c0_6, %c0_7] : memref<256x128xbf16, #tpu.memory_space<vmem>>, vector<256x128xbf16>
    tpu.vector_store %arg4[%c0_6, %c0_7], %8 {strides = array<i32>} : memref<256x128xbf16, #tpu.memory_space<vmem>>, vector<256x128xbf16>,
    return
  }
  func.func @transform_0(%arg0: i32) -> (i32, i32) {
    %c0_i32 = arith.constant 0 : i32
    %c0_i32_0 = arith.constant 0 : i32
    return %arg0, %c0_i32 : i32, i32
  }
  func.func @transform_1(%arg0: i32) -> (i32, i32) {
    %c0_i32 = arith.constant 0 : i32
    %c0_i32_0 = arith.constant 0 : i32
    %c0_i32_1 = arith.constant 0 : i32
    return %c0_i32, %c0_i32_0 : i32, i32
  }
  func.func @transform_2(%arg0: i32) -> (i32, i32) {
    %c0_i32 = arith.constant 0 : i32
    %c0_i32_0 = arith.constant 0 : i32
    %c0_i32_1 = arith.constant 0 : i32
    return %c0_i32, %c0_i32_0 : i32, i32
  }
  func.func @transform_3(%arg0: i32) -> (i32, i32) {
    %c0_i32 = arith.constant 0 : i32
    %c0_i32_0 = arith.constant 0 : i32
    return %arg0, %c0_i32 : i32, i32
  }
}

module attributes {stable_mosaic.version = 11 : i64} {
  func.func @_matmul_bias_act_kernel(%arg0: i32, %arg1: memref<128x1152xbf16, #tpu.memory_space<vmem>>, %arg2: memref<1152x128xbf16, #tpu.memory_space<vmem>>, %arg3: memref<1x128xf32, #tpu.memory_space<vmem>>, %arg4: memref<128x128xbf16, #tpu.memory_space<vmem>>) attributes {dimension_semantics = [#tpu.dimension_semantics<parallel>], iteration_bounds = array<i64: 1>, scalar_prefetch = 0 : i64, scratch_operands = 0 : i64, tpu.core_type = #tpu.core_type<tc>, window_params = [{transform_indices = @transform_0, window_bounds = array<i64: 128, 1152>}, {pipeline_mode = #tpu.pipeline_mode<synchronous>, transform_indices = @transform_1, window_bounds = array<i64: 1152, 128>}, {pipeline_mode = #tpu.pipeline_mode<synchronous>, transform_indices = @transform_2, window_bounds = array<i64: 1, 128>}, {transform_indices = @transform_3, window_bounds = array<i64: 128, 128>}]} {
    %c0 = arith.constant 0 : index
    %c0_0 = arith.constant 0 : index
    %0 = vector.load %arg1[%c0, %c0_0] : memref<128x1152xbf16, #tpu.memory_space<vmem>>, vector<128x1152xbf16>
    %c0_1 = arith.constant 0 : index
    %c0_2 = arith.constant 0 : index
    %1 = vector.load %arg2[%c0_1, %c0_2] : memref<1152x128xbf16, #tpu.memory_space<vmem>>, vector<1152x128xbf16>
    %cst = arith.constant dense<0.000000e+00> : vector<128x128xf32>
    %2 = tpu.matmul %0, %1, %cst {dimension_numbers = #tpu.dot_dimension_numbers<[1], [0], [0], [1], [0, 0, 1, 1], [], []>} : vector<128x1152xbf16>, vector<1152x128xbf16>, vector<128x128xf32> -> vector<128x128xf32>
    %c0_3 = arith.constant 0 : index
    %c0_4 = arith.constant 0 : index
    %3 = vector.load %arg3[%c0_3, %c0_4] : memref<1x128xf32, #tpu.memory_space<vmem>>, vector<1x128xf32>
    %4 = vector.broadcast %3 : vector<1x128xf32> to vector<128x128xf32>
    %5 = arith.addf %2, %4 : vector<128x128xf32>
    %cst_5 = arith.constant 0.000000e+00 : f32
    %6 = vector.broadcast %cst_5 : f32 to vector<128x128xf32>
    %7 = arith.maximumf %5, %6 : vector<128x128xf32>
    %8 = arith.truncf %7 : vector<128x128xf32> to vector<128x128xbf16>
    %c0_6 = arith.constant 0 : index
    %c0_7 = arith.constant 0 : index
    %9 = vector.load %arg4[%c0_6, %c0_7] : memref<128x128xbf16, #tpu.memory_space<vmem>>, vector<128x128xbf16>
    tpu.vector_store %arg4[%c0_6, %c0_7], %8 {strides = array<i32>} : memref<128x128xbf16, #tpu.memory_space<vmem>>, vector<128x128xbf16>,
    return
  }
  func.func @transform_0(%arg0: i32) -> (i32, i32) {
    %c0_i32 = arith.constant 0 : i32
    %c0_i32_0 = arith.constant 0 : i32
    return %arg0, %c0_i32 : i32, i32
  }
  func.func @transform_1(%arg0: i32) -> (i32, i32) {
    %c0_i32 = arith.constant 0 : i32
    %c0_i32_0 = arith.constant 0 : i32
    %c0_i32_1 = arith.constant 0 : i32
    return %c0_i32, %c0_i32_0 : i32, i32
  }
  func.func @transform_2(%arg0: i32) -> (i32, i32) {
    %c0_i32 = arith.constant 0 : i32
    %c0_i32_0 = arith.constant 0 : i32
    %c0_i32_1 = arith.constant 0 : i32
    return %c0_i32, %c0_i32_0 : i32, i32
  }
  func.func @transform_3(%arg0: i32) -> (i32, i32) {
    %c0_i32 = arith.constant 0 : i32
    %c0_i32_0 = arith.constant 0 : i32
    return %arg0, %c0_i32 : i32, i32
  }
}

module attributes {stable_mosaic.version = 11 : i64} {
  func.func @_matmul_bias_act_kernel(%arg0: i32, %arg1: memref<32x576xbf16, #tpu.memory_space<vmem>>, %arg2: memref<576x128xbf16, #tpu.memory_space<vmem>>, %arg3: memref<1x128xf32, #tpu.memory_space<vmem>>, %arg4: memref<32x128xbf16, #tpu.memory_space<vmem>>) attributes {dimension_semantics = [#tpu.dimension_semantics<parallel>], iteration_bounds = array<i64: 1>, scalar_prefetch = 0 : i64, scratch_operands = 0 : i64, tpu.core_type = #tpu.core_type<tc>, window_params = [{transform_indices = @transform_0, window_bounds = array<i64: 32, 576>}, {pipeline_mode = #tpu.pipeline_mode<synchronous>, transform_indices = @transform_1, window_bounds = array<i64: 576, 128>}, {pipeline_mode = #tpu.pipeline_mode<synchronous>, transform_indices = @transform_2, window_bounds = array<i64: 1, 128>}, {transform_indices = @transform_3, window_bounds = array<i64: 32, 128>}]} {
    %c0 = arith.constant 0 : index
    %c0_0 = arith.constant 0 : index
    %0 = vector.load %arg1[%c0, %c0_0] : memref<32x576xbf16, #tpu.memory_space<vmem>>, vector<32x576xbf16>
    %c0_1 = arith.constant 0 : index
    %c0_2 = arith.constant 0 : index
    %1 = vector.load %arg2[%c0_1, %c0_2] : memref<576x128xbf16, #tpu.memory_space<vmem>>, vector<576x128xbf16>
    %cst = arith.constant dense<0.000000e+00> : vector<32x128xf32>
    %2 = tpu.matmul %0, %1, %cst {dimension_numbers = #tpu.dot_dimension_numbers<[1], [0], [0], [1], [0, 0, 1, 1], [], []>} : vector<32x576xbf16>, vector<576x128xbf16>, vector<32x128xf32> -> vector<32x128xf32>
    %c0_3 = arith.constant 0 : index
    %c0_4 = arith.constant 0 : index
    %3 = vector.load %arg3[%c0_3, %c0_4] : memref<1x128xf32, #tpu.memory_space<vmem>>, vector<1x128xf32>
    %4 = vector.broadcast %3 : vector<1x128xf32> to vector<32x128xf32>
    %5 = arith.addf %2, %4 : vector<32x128xf32>
    %cst_5 = arith.constant 0.000000e+00 : f32
    %6 = vector.broadcast %cst_5 : f32 to vector<32x128xf32>
    %7 = arith.maximumf %5, %6 : vector<32x128xf32>
    %8 = arith.truncf %7 : vector<32x128xf32> to vector<32x128xbf16>
    %c0_6 = arith.constant 0 : index
    %c0_7 = arith.constant 0 : index
    %9 = vector.load %arg4[%c0_6, %c0_7] : memref<32x128xbf16, #tpu.memory_space<vmem>>, vector<32x128xbf16>
    tpu.vector_store %arg4[%c0_6, %c0_7], %8 {strides = array<i32>} : memref<32x128xbf16, #tpu.memory_space<vmem>>, vector<32x128xbf16>,
    return
  }
  func.func @transform_0(%arg0: i32) -> (i32, i32) {
    %c0_i32 = arith.constant 0 : i32
    %c0_i32_0 = arith.constant 0 : i32
    return %arg0, %c0_i32 : i32, i32
  }
  func.func @transform_1(%arg0: i32) -> (i32, i32) {
    %c0_i32 = arith.constant 0 : i32
    %c0_i32_0 = arith.constant 0 : i32
    %c0_i32_1 = arith.constant 0 : i32
    return %c0_i32, %c0_i32_0 : i32, i32
  }
  func.func @transform_2(%arg0: i32) -> (i32, i32) {
    %c0_i32 = arith.constant 0 : i32
    %c0_i32_0 = arith.constant 0 : i32
    %c0_i32_1 = arith.constant 0 : i32
    return %c0_i32, %c0_i32_0 : i32, i32
  }
  func.func @transform_3(%arg0: i32) -> (i32, i32) {
    %c0_i32 = arith.constant 0 : i32
    %c0_i32_0 = arith.constant 0 : i32
    return %arg0, %c0_i32 : i32, i32
  }
}

module attributes {stable_mosaic.version = 11 : i64} {
  func.func @_matmul_bias_act_kernel(%arg0: i32, %arg1: memref<2x144xbf16, #tpu.memory_space<vmem>>, %arg2: memref<144x128xbf16, #tpu.memory_space<vmem>>, %arg3: memref<1x128xf32, #tpu.memory_space<vmem>>, %arg4: memref<2x128xbf16, #tpu.memory_space<vmem>>) attributes {dimension_semantics = [#tpu.dimension_semantics<parallel>], iteration_bounds = array<i64: 1>, scalar_prefetch = 0 : i64, scratch_operands = 0 : i64, tpu.core_type = #tpu.core_type<tc>, window_params = [{transform_indices = @transform_0, window_bounds = array<i64: 2, 144>}, {pipeline_mode = #tpu.pipeline_mode<synchronous>, transform_indices = @transform_1, window_bounds = array<i64: 144, 128>}, {pipeline_mode = #tpu.pipeline_mode<synchronous>, transform_indices = @transform_2, window_bounds = array<i64: 1, 128>}, {transform_indices = @transform_3, window_bounds = array<i64: 2, 128>}]} {
    %c0 = arith.constant 0 : index
    %c0_0 = arith.constant 0 : index
    %0 = vector.load %arg1[%c0, %c0_0] : memref<2x144xbf16, #tpu.memory_space<vmem>>, vector<2x144xbf16>
    %c0_1 = arith.constant 0 : index
    %c0_2 = arith.constant 0 : index
    %1 = vector.load %arg2[%c0_1, %c0_2] : memref<144x128xbf16, #tpu.memory_space<vmem>>, vector<144x128xbf16>
    %cst = arith.constant dense<0.000000e+00> : vector<2x128xf32>
    %2 = tpu.matmul %0, %1, %cst {dimension_numbers = #tpu.dot_dimension_numbers<[1], [0], [0], [1], [0, 0, 1, 1], [], []>} : vector<2x144xbf16>, vector<144x128xbf16>, vector<2x128xf32> -> vector<2x128xf32>
    %c0_3 = arith.constant 0 : index
    %c0_4 = arith.constant 0 : index
    %3 = vector.load %arg3[%c0_3, %c0_4] : memref<1x128xf32, #tpu.memory_space<vmem>>, vector<1x128xf32>
    %4 = vector.broadcast %3 : vector<1x128xf32> to vector<2x128xf32>
    %5 = arith.addf %2, %4 : vector<2x128xf32>
    %6 = arith.truncf %5 : vector<2x128xf32> to vector<2x128xbf16>
    %c0_5 = arith.constant 0 : index
    %c0_6 = arith.constant 0 : index
    %7 = vector.load %arg4[%c0_5, %c0_6] : memref<2x128xbf16, #tpu.memory_space<vmem>>, vector<2x128xbf16>
    tpu.vector_store %arg4[%c0_5, %c0_6], %6 {strides = array<i32>} : memref<2x128xbf16, #tpu.memory_space<vmem>>, vector<2x128xbf16>,
    return
  }
  func.func @transform_0(%arg0: i32) -> (i32, i32) {
    %c0_i32 = arith.constant 0 : i32
    %c0_i32_0 = arith.constant 0 : i32
    return %arg0, %c0_i32 : i32, i32
  }
  func.func @transform_1(%arg0: i32) -> (i32, i32) {
    %c0_i32 = arith.constant 0 : i32
    %c0_i32_0 = arith.constant 0 : i32
    %c0_i32_1 = arith.constant 0 : i32
    return %c0_i32, %c0_i32_0 : i32, i32
  }
  func.func @transform_2(%arg0: i32) -> (i32, i32) {
    %c0_i32 = arith.constant 0 : i32
    %c0_i32_0 = arith.constant 0 : i32
    %c0_i32_1 = arith.constant 0 : i32
    return %c0_i32, %c0_i32_0 : i32, i32
  }
  func.func @transform_3(%arg0: i32) -> (i32, i32) {
    %c0_i32 = arith.constant 0 : i32
    %c0_i32_0 = arith.constant 0 : i32
    return %arg0, %c0_i32 : i32, i32
  }
}

module attributes {stable_mosaic.version = 11 : i64} {
  func.func @_matmul_bias_act_kernel(%arg0: i32, %arg1: memref<2x32xbf16, #tpu.memory_space<vmem>>, %arg2: memref<32x128xbf16, #tpu.memory_space<vmem>>, %arg3: memref<1x128xf32, #tpu.memory_space<vmem>>, %arg4: memref<2x128xbf16, #tpu.memory_space<vmem>>) attributes {dimension_semantics = [#tpu.dimension_semantics<parallel>], iteration_bounds = array<i64: 1>, scalar_prefetch = 0 : i64, scratch_operands = 0 : i64, tpu.core_type = #tpu.core_type<tc>, window_params = [{transform_indices = @transform_0, window_bounds = array<i64: 2, 32>}, {pipeline_mode = #tpu.pipeline_mode<synchronous>, transform_indices = @transform_1, window_bounds = array<i64: 32, 128>}, {pipeline_mode = #tpu.pipeline_mode<synchronous>, transform_indices = @transform_2, window_bounds = array<i64: 1, 128>}, {transform_indices = @transform_3, window_bounds = array<i64: 2, 128>}]} {
    %c0 = arith.constant 0 : index
    %c0_0 = arith.constant 0 : index
    %0 = vector.load %arg1[%c0, %c0_0] : memref<2x32xbf16, #tpu.memory_space<vmem>>, vector<2x32xbf16>
    %c0_1 = arith.constant 0 : index
    %c0_2 = arith.constant 0 : index
    %1 = vector.load %arg2[%c0_1, %c0_2] : memref<32x128xbf16, #tpu.memory_space<vmem>>, vector<32x128xbf16>
    %cst = arith.constant dense<0.000000e+00> : vector<2x128xf32>
    %2 = tpu.matmul %0, %1, %cst {dimension_numbers = #tpu.dot_dimension_numbers<[1], [0], [0], [1], [0, 0, 1, 1], [], []>} : vector<2x32xbf16>, vector<32x128xbf16>, vector<2x128xf32> -> vector<2x128xf32>
    %c0_3 = arith.constant 0 : index
    %c0_4 = arith.constant 0 : index
    %3 = vector.load %arg3[%c0_3, %c0_4] : memref<1x128xf32, #tpu.memory_space<vmem>>, vector<1x128xf32>
    %4 = vector.broadcast %3 : vector<1x128xf32> to vector<2x128xf32>
    %5 = arith.addf %2, %4 : vector<2x128xf32>
    %cst_5 = arith.constant 0.000000e+00 : f32
    %6 = vector.broadcast %cst_5 : f32 to vector<2x128xf32>
    %7 = arith.maximumf %5, %6 : vector<2x128xf32>
    %8 = arith.truncf %7 : vector<2x128xf32> to vector<2x128xbf16>
    %c0_6 = arith.constant 0 : index
    %c0_7 = arith.constant 0 : index
    %9 = vector.load %arg4[%c0_6, %c0_7] : memref<2x128xbf16, #tpu.memory_space<vmem>>, vector<2x128xbf16>
    tpu.vector_store %arg4[%c0_6, %c0_7], %8 {strides = array<i32>} : memref<2x128xbf16, #tpu.memory_space<vmem>>, vector<2x128xbf16>,
    return
  }
  func.func @transform_0(%arg0: i32) -> (i32, i32) {
    %c0_i32 = arith.constant 0 : i32
    %c0_i32_0 = arith.constant 0 : i32
    return %arg0, %c0_i32 : i32, i32
  }
  func.func @transform_1(%arg0: i32) -> (i32, i32) {
    %c0_i32 = arith.constant 0 : i32
    %c0_i32_0 = arith.constant 0 : i32
    %c0_i32_1 = arith.constant 0 : i32
    return %c0_i32, %c0_i32_0 : i32, i32
  }
  func.func @transform_2(%arg0: i32) -> (i32, i32) {
    %c0_i32 = arith.constant 0 : i32
    %c0_i32_0 = arith.constant 0 : i32
    %c0_i32_1 = arith.constant 0 : i32
    return %c0_i32, %c0_i32_0 : i32, i32
  }
  func.func @transform_3(%arg0: i32) -> (i32, i32) {
    %c0_i32 = arith.constant 0 : i32
    %c0_i32_0 = arith.constant 0 : i32
    return %arg0, %c0_i32 : i32, i32
  }
}

module attributes {stable_mosaic.version = 11 : i64} {
  func.func @_matmul_bias_act_kernel(%arg0: i32, %arg1: memref<8x288xbf16, #tpu.memory_space<vmem>>, %arg2: memref<288x128xbf16, #tpu.memory_space<vmem>>, %arg3: memref<1x128xf32, #tpu.memory_space<vmem>>, %arg4: memref<8x128xbf16, #tpu.memory_space<vmem>>) attributes {dimension_semantics = [#tpu.dimension_semantics<parallel>], iteration_bounds = array<i64: 1>, scalar_prefetch = 0 : i64, scratch_operands = 0 : i64, tpu.core_type = #tpu.core_type<tc>, window_params = [{transform_indices = @transform_0, window_bounds = array<i64: 8, 288>}, {pipeline_mode = #tpu.pipeline_mode<synchronous>, transform_indices = @transform_1, window_bounds = array<i64: 288, 128>}, {pipeline_mode = #tpu.pipeline_mode<synchronous>, transform_indices = @transform_2, window_bounds = array<i64: 1, 128>}, {transform_indices = @transform_3, window_bounds = array<i64: 8, 128>}]} {
    %c0 = arith.constant 0 : index
    %c0_0 = arith.constant 0 : index
    %0 = vector.load %arg1[%c0, %c0_0] : memref<8x288xbf16, #tpu.memory_space<vmem>>, vector<8x288xbf16>
    %c0_1 = arith.constant 0 : index
    %c0_2 = arith.constant 0 : index
    %1 = vector.load %arg2[%c0_1, %c0_2] : memref<288x128xbf16, #tpu.memory_space<vmem>>, vector<288x128xbf16>
    %cst = arith.constant dense<0.000000e+00> : vector<8x128xf32>
    %2 = tpu.matmul %0, %1, %cst {dimension_numbers = #tpu.dot_dimension_numbers<[1], [0], [0], [1], [0, 0, 1, 1], [], []>} : vector<8x288xbf16>, vector<288x128xbf16>, vector<8x128xf32> -> vector<8x128xf32>
    %c0_3 = arith.constant 0 : index
    %c0_4 = arith.constant 0 : index
    %3 = vector.load %arg3[%c0_3, %c0_4] : memref<1x128xf32, #tpu.memory_space<vmem>>, vector<1x128xf32>
    %4 = vector.broadcast %3 : vector<1x128xf32> to vector<8x128xf32>
    %5 = arith.addf %2, %4 : vector<8x128xf32>
    %cst_5 = arith.constant 0.000000e+00 : f32
    %6 = vector.broadcast %cst_5 : f32 to vector<8x128xf32>
    %7 = arith.maximumf %5, %6 : vector<8x128xf32>
    %8 = arith.truncf %7 : vector<8x128xf32> to vector<8x128xbf16>
    %c0_6 = arith.constant 0 : index
    %c0_7 = arith.constant 0 : index
    %9 = vector.load %arg4[%c0_6, %c0_7] : memref<8x128xbf16, #tpu.memory_space<vmem>>, vector<8x128xbf16>
    tpu.vector_store %arg4[%c0_6, %c0_7], %8 {strides = array<i32>} : memref<8x128xbf16, #tpu.memory_space<vmem>>, vector<8x128xbf16>,
    return
  }
  func.func @transform_0(%arg0: i32) -> (i32, i32) {
    %c0_i32 = arith.constant 0 : i32
    %c0_i32_0 = arith.constant 0 : i32
    return %arg0, %c0_i32 : i32, i32
  }
  func.func @transform_1(%arg0: i32) -> (i32, i32) {
    %c0_i32 = arith.constant 0 : i32
    %c0_i32_0 = arith.constant 0 : i32
    %c0_i32_1 = arith.constant 0 : i32
    return %c0_i32, %c0_i32_0 : i32, i32
  }
  func.func @transform_2(%arg0: i32) -> (i32, i32) {
    %c0_i32 = arith.constant 0 : i32
    %c0_i32_0 = arith.constant 0 : i32
    %c0_i32_1 = arith.constant 0 : i32
    return %c0_i32, %c0_i32_0 : i32, i32
  }
  func.func @transform_3(%arg0: i32) -> (i32, i32) {
    %c0_i32 = arith.constant 0 : i32
    %c0_i32_0 = arith.constant 0 : i32
    return %arg0, %c0_i32 : i32, i32
  }
}

module attributes {stable_mosaic.version = 11 : i64} {
  func.func @_matmul_bias_act_kernel(%arg0: i32, %arg1: memref<8x64xbf16, #tpu.memory_space<vmem>>, %arg2: memref<64x128xbf16, #tpu.memory_space<vmem>>, %arg3: memref<1x128xf32, #tpu.memory_space<vmem>>, %arg4: memref<8x128xbf16, #tpu.memory_space<vmem>>) attributes {dimension_semantics = [#tpu.dimension_semantics<parallel>], iteration_bounds = array<i64: 1>, scalar_prefetch = 0 : i64, scratch_operands = 0 : i64, tpu.core_type = #tpu.core_type<tc>, window_params = [{transform_indices = @transform_0, window_bounds = array<i64: 8, 64>}, {pipeline_mode = #tpu.pipeline_mode<synchronous>, transform_indices = @transform_1, window_bounds = array<i64: 64, 128>}, {pipeline_mode = #tpu.pipeline_mode<synchronous>, transform_indices = @transform_2, window_bounds = array<i64: 1, 128>}, {transform_indices = @transform_3, window_bounds = array<i64: 8, 128>}]} {
    %c0 = arith.constant 0 : index
    %c0_0 = arith.constant 0 : index
    %0 = vector.load %arg1[%c0, %c0_0] : memref<8x64xbf16, #tpu.memory_space<vmem>>, vector<8x64xbf16>
    %c0_1 = arith.constant 0 : index
    %c0_2 = arith.constant 0 : index
    %1 = vector.load %arg2[%c0_1, %c0_2] : memref<64x128xbf16, #tpu.memory_space<vmem>>, vector<64x128xbf16>
    %cst = arith.constant dense<0.000000e+00> : vector<8x128xf32>
    %2 = tpu.matmul %0, %1, %cst {dimension_numbers = #tpu.dot_dimension_numbers<[1], [0], [0], [1], [0, 0, 1, 1], [], []>} : vector<8x64xbf16>, vector<64x128xbf16>, vector<8x128xf32> -> vector<8x128xf32>
    %c0_3 = arith.constant 0 : index
    %c0_4 = arith.constant 0 : index
    %3 = vector.load %arg3[%c0_3, %c0_4] : memref<1x128xf32, #tpu.memory_space<vmem>>, vector<1x128xf32>
    %4 = vector.broadcast %3 : vector<1x128xf32> to vector<8x128xf32>
    %5 = arith.addf %2, %4 : vector<8x128xf32>
    %cst_5 = arith.constant 0.000000e+00 : f32
    %6 = vector.broadcast %cst_5 : f32 to vector<8x128xf32>
    %7 = arith.maximumf %5, %6 : vector<8x128xf32>
    %8 = arith.truncf %7 : vector<8x128xf32> to vector<8x128xbf16>
    %c0_6 = arith.constant 0 : index
    %c0_7 = arith.constant 0 : index
    %9 = vector.load %arg4[%c0_6, %c0_7] : memref<8x128xbf16, #tpu.memory_space<vmem>>, vector<8x128xbf16>
    tpu.vector_store %arg4[%c0_6, %c0_7], %8 {strides = array<i32>} : memref<8x128xbf16, #tpu.memory_space<vmem>>, vector<8x128xbf16>,
    return
  }
  func.func @transform_0(%arg0: i32) -> (i32, i32) {
    %c0_i32 = arith.constant 0 : i32
    %c0_i32_0 = arith.constant 0 : i32
    return %arg0, %c0_i32 : i32, i32
  }
  func.func @transform_1(%arg0: i32) -> (i32, i32) {
    %c0_i32 = arith.constant 0 : i32
    %c0_i32_0 = arith.constant 0 : i32
    %c0_i32_1 = arith.constant 0 : i32
    return %c0_i32, %c0_i32_0 : i32, i32
  }
  func.func @transform_2(%arg0: i32) -> (i32, i32) {
    %c0_i32 = arith.constant 0 : i32
    %c0_i32_0 = arith.constant 0 : i32
    %c0_i32_1 = arith.constant 0 : i32
    return %c0_i32, %c0_i32_0 : i32, i32
  }
  func.func @transform_3(%arg0: i32) -> (i32, i32) {
    %c0_i32 = arith.constant 0 : i32
    %c0_i32_0 = arith.constant 0 : i32
    return %arg0, %c0_i32 : i32, i32
  }
}

module attributes {stable_mosaic.version = 11 : i64} {
  func.func @_matmul_bias_act_kernel(%arg0: i32, %arg1: memref<32x128xbf16, #tpu.memory_space<vmem>>, %arg2: memref<128x256xbf16, #tpu.memory_space<vmem>>, %arg3: memref<1x256xf32, #tpu.memory_space<vmem>>, %arg4: memref<32x256xbf16, #tpu.memory_space<vmem>>) attributes {dimension_semantics = [#tpu.dimension_semantics<parallel>], iteration_bounds = array<i64: 1>, scalar_prefetch = 0 : i64, scratch_operands = 0 : i64, tpu.core_type = #tpu.core_type<tc>, window_params = [{transform_indices = @transform_0, window_bounds = array<i64: 32, 128>}, {pipeline_mode = #tpu.pipeline_mode<synchronous>, transform_indices = @transform_1, window_bounds = array<i64: 128, 256>}, {pipeline_mode = #tpu.pipeline_mode<synchronous>, transform_indices = @transform_2, window_bounds = array<i64: 1, 256>}, {transform_indices = @transform_3, window_bounds = array<i64: 32, 256>}]} {
    %c0 = arith.constant 0 : index
    %c0_0 = arith.constant 0 : index
    %0 = vector.load %arg1[%c0, %c0_0] : memref<32x128xbf16, #tpu.memory_space<vmem>>, vector<32x128xbf16>
    %c0_1 = arith.constant 0 : index
    %c0_2 = arith.constant 0 : index
    %1 = vector.load %arg2[%c0_1, %c0_2] : memref<128x256xbf16, #tpu.memory_space<vmem>>, vector<128x256xbf16>
    %cst = arith.constant dense<0.000000e+00> : vector<32x256xf32>
    %2 = tpu.matmul %0, %1, %cst {dimension_numbers = #tpu.dot_dimension_numbers<[1], [0], [0], [1], [0, 0, 1, 1], [], []>} : vector<32x128xbf16>, vector<128x256xbf16>, vector<32x256xf32> -> vector<32x256xf32>
    %c0_3 = arith.constant 0 : index
    %c0_4 = arith.constant 0 : index
    %3 = vector.load %arg3[%c0_3, %c0_4] : memref<1x256xf32, #tpu.memory_space<vmem>>, vector<1x256xf32>
    %4 = vector.broadcast %3 : vector<1x256xf32> to vector<32x256xf32>
    %5 = arith.addf %2, %4 : vector<32x256xf32>
    %cst_5 = arith.constant 0.000000e+00 : f32
    %6 = vector.broadcast %cst_5 : f32 to vector<32x256xf32>
    %7 = arith.maximumf %5, %6 : vector<32x256xf32>
    %8 = arith.truncf %7 : vector<32x256xf32> to vector<32x256xbf16>
    %c0_6 = arith.constant 0 : index
    %c0_7 = arith.constant 0 : index
    %9 = vector.load %arg4[%c0_6, %c0_7] : memref<32x256xbf16, #tpu.memory_space<vmem>>, vector<32x256xbf16>
    tpu.vector_store %arg4[%c0_6, %c0_7], %8 {strides = array<i32>} : memref<32x256xbf16, #tpu.memory_space<vmem>>, vector<32x256xbf16>,
    return
  }
  func.func @transform_0(%arg0: i32) -> (i32, i32) {
    %c0_i32 = arith.constant 0 : i32
    %c0_i32_0 = arith.constant 0 : i32
    return %arg0, %c0_i32 : i32, i32
  }
  func.func @transform_1(%arg0: i32) -> (i32, i32) {
    %c0_i32 = arith.constant 0 : i32
    %c0_i32_0 = arith.constant 0 : i32
    %c0_i32_1 = arith.constant 0 : i32
    return %c0_i32, %c0_i32_0 : i32, i32
  }
  func.func @transform_2(%arg0: i32) -> (i32, i32) {
    %c0_i32 = arith.constant 0 : i32
    %c0_i32_0 = arith.constant 0 : i32
    %c0_i32_1 = arith.constant 0 : i32
    return %c0_i32, %c0_i32_0 : i32, i32
  }
  func.func @transform_3(%arg0: i32) -> (i32, i32) {
    %c0_i32 = arith.constant 0 : i32
    %c0_i32_0 = arith.constant 0 : i32
    return %arg0, %c0_i32 : i32, i32
  }
}

module attributes {stable_mosaic.version = 11 : i64} {
  func.func @_matmul_bias_act_kernel(%arg0: i32, %arg1: memref<128x256xbf16, #tpu.memory_space<vmem>>, %arg2: memref<256x512xbf16, #tpu.memory_space<vmem>>, %arg3: memref<1x512xf32, #tpu.memory_space<vmem>>, %arg4: memref<128x512xbf16, #tpu.memory_space<vmem>>) attributes {dimension_semantics = [#tpu.dimension_semantics<parallel>], iteration_bounds = array<i64: 1>, scalar_prefetch = 0 : i64, scratch_operands = 0 : i64, tpu.core_type = #tpu.core_type<tc>, window_params = [{transform_indices = @transform_0, window_bounds = array<i64: 128, 256>}, {pipeline_mode = #tpu.pipeline_mode<synchronous>, transform_indices = @transform_1, window_bounds = array<i64: 256, 512>}, {pipeline_mode = #tpu.pipeline_mode<synchronous>, transform_indices = @transform_2, window_bounds = array<i64: 1, 512>}, {transform_indices = @transform_3, window_bounds = array<i64: 128, 512>}]} {
    %c0 = arith.constant 0 : index
    %c0_0 = arith.constant 0 : index
    %0 = vector.load %arg1[%c0, %c0_0] : memref<128x256xbf16, #tpu.memory_space<vmem>>, vector<128x256xbf16>
    %c0_1 = arith.constant 0 : index
    %c0_2 = arith.constant 0 : index
    %1 = vector.load %arg2[%c0_1, %c0_2] : memref<256x512xbf16, #tpu.memory_space<vmem>>, vector<256x512xbf16>
    %cst = arith.constant dense<0.000000e+00> : vector<128x512xf32>
    %2 = tpu.matmul %0, %1, %cst {dimension_numbers = #tpu.dot_dimension_numbers<[1], [0], [0], [1], [0, 0, 1, 1], [], []>} : vector<128x256xbf16>, vector<256x512xbf16>, vector<128x512xf32> -> vector<128x512xf32>
    %c0_3 = arith.constant 0 : index
    %c0_4 = arith.constant 0 : index
    %3 = vector.load %arg3[%c0_3, %c0_4] : memref<1x512xf32, #tpu.memory_space<vmem>>, vector<1x512xf32>
    %4 = vector.broadcast %3 : vector<1x512xf32> to vector<128x512xf32>
    %5 = arith.addf %2, %4 : vector<128x512xf32>
    %cst_5 = arith.constant 0.000000e+00 : f32
    %6 = vector.broadcast %cst_5 : f32 to vector<128x512xf32>
    %7 = arith.maximumf %5, %6 : vector<128x512xf32>
    %8 = arith.truncf %7 : vector<128x512xf32> to vector<128x512xbf16>
    %c0_6 = arith.constant 0 : index
    %c0_7 = arith.constant 0 : index
    %9 = vector.load %arg4[%c0_6, %c0_7] : memref<128x512xbf16, #tpu.memory_space<vmem>>, vector<128x512xbf16>
    tpu.vector_store %arg4[%c0_6, %c0_7], %8 {strides = array<i32>} : memref<128x512xbf16, #tpu.memory_space<vmem>>, vector<128x512xbf16>,
    return
  }
  func.func @transform_0(%arg0: i32) -> (i32, i32) {
    %c0_i32 = arith.constant 0 : i32
    %c0_i32_0 = arith.constant 0 : i32
    return %arg0, %c0_i32 : i32, i32
  }
  func.func @transform_1(%arg0: i32) -> (i32, i32) {
    %c0_i32 = arith.constant 0 : i32
    %c0_i32_0 = arith.constant 0 : i32
    %c0_i32_1 = arith.constant 0 : i32
    return %c0_i32, %c0_i32_0 : i32, i32
  }
  func.func @transform_2(%arg0: i32) -> (i32, i32) {
    %c0_i32 = arith.constant 0 : i32
    %c0_i32_0 = arith.constant 0 : i32
    %c0_i32_1 = arith.constant 0 : i32
    return %c0_i32, %c0_i32_0 : i32, i32
  }
  func.func @transform_3(%arg0: i32) -> (i32, i32) {
    %c0_i32 = arith.constant 0 : i32
    %c0_i32_0 = arith.constant 0 : i32
    return %arg0, %c0_i32 : i32, i32
  }
}

module attributes {stable_mosaic.version = 11 : i64} {
  func.func @_matmul_bias_act_kernel(%arg0: i32, %arg1: memref<256x512xbf16, #tpu.memory_space<vmem>>, %arg2: memref<512x128xbf16, #tpu.memory_space<vmem>>, %arg3: memref<1x128xf32, #tpu.memory_space<vmem>>, %arg4: memref<256x128xf32, #tpu.memory_space<vmem>>) attributes {dimension_semantics = [#tpu.dimension_semantics<parallel>], iteration_bounds = array<i64: 2>, scalar_prefetch = 0 : i64, scratch_operands = 0 : i64, tpu.core_type = #tpu.core_type<tc>, window_params = [{transform_indices = @transform_0, window_bounds = array<i64: 256, 512>}, {pipeline_mode = #tpu.pipeline_mode<synchronous>, transform_indices = @transform_1, window_bounds = array<i64: 512, 128>}, {pipeline_mode = #tpu.pipeline_mode<synchronous>, transform_indices = @transform_2, window_bounds = array<i64: 1, 128>}, {transform_indices = @transform_3, window_bounds = array<i64: 256, 128>}]} {
    %c0 = arith.constant 0 : index
    %c0_0 = arith.constant 0 : index
    %0 = vector.load %arg1[%c0, %c0_0] : memref<256x512xbf16, #tpu.memory_space<vmem>>, vector<256x512xbf16>
    %c0_1 = arith.constant 0 : index
    %c0_2 = arith.constant 0 : index
    %1 = vector.load %arg2[%c0_1, %c0_2] : memref<512x128xbf16, #tpu.memory_space<vmem>>, vector<512x128xbf16>
    %cst = arith.constant dense<0.000000e+00> : vector<256x128xf32>
    %2 = tpu.matmul %0, %1, %cst {dimension_numbers = #tpu.dot_dimension_numbers<[1], [0], [0], [1], [0, 0, 1, 1], [], []>} : vector<256x512xbf16>, vector<512x128xbf16>, vector<256x128xf32> -> vector<256x128xf32>
    %c0_3 = arith.constant 0 : index
    %c0_4 = arith.constant 0 : index
    %3 = vector.load %arg3[%c0_3, %c0_4] : memref<1x128xf32, #tpu.memory_space<vmem>>, vector<1x128xf32>
    %4 = vector.broadcast %3 : vector<1x128xf32> to vector<256x128xf32>
    %5 = arith.addf %2, %4 : vector<256x128xf32>
    %cst_5 = arith.constant 0.000000e+00 : f32
    %6 = vector.broadcast %cst_5 : f32 to vector<256x128xf32>
    %7 = arith.subf %6, %5 : vector<256x128xf32>
    %8 = math.exp %7 : vector<256x128xf32>
    %cst_6 = arith.constant 1.000000e+00 : f32
    %9 = vector.broadcast %cst_6 : f32 to vector<256x128xf32>
    %10 = arith.addf %9, %8 : vector<256x128xf32>
    %11 = tpu.reciprocal %10 {approx = true} : vector<256x128xf32> -> vector<256x128xf32>
    %cst_7 = arith.constant 0.000000e+00 : f32
    %12 = vector.broadcast %cst_7 : f32 to vector<256x128xf32>
    %13 = arith.maximumf %11, %12 : vector<256x128xf32>
    %cst_8 = arith.constant 1.000000e+00 : f32
    %14 = vector.broadcast %cst_8 : f32 to vector<256x128xf32>
    %15 = arith.minimumf %13, %14 : vector<256x128xf32>
    %c0_9 = arith.constant 0 : index
    %c0_10 = arith.constant 0 : index
    %16 = vector.load %arg4[%c0_9, %c0_10] : memref<256x128xf32, #tpu.memory_space<vmem>>, vector<256x128xf32>
    tpu.vector_store %arg4[%c0_9, %c0_10], %15 {strides = array<i32>} : memref<256x128xf32, #tpu.memory_space<vmem>>, vector<256x128xf32>,
    return
  }
  func.func @transform_0(%arg0: i32) -> (i32, i32) {
    %c0_i32 = arith.constant 0 : i32
    %c0_i32_0 = arith.constant 0 : i32
    return %arg0, %c0_i32 : i32, i32
  }
  func.func @transform_1(%arg0: i32) -> (i32, i32) {
    %c0_i32 = arith.constant 0 : i32
    %c0_i32_0 = arith.constant 0 : i32
    %c0_i32_1 = arith.constant 0 : i32
    return %c0_i32, %c0_i32_0 : i32, i32
  }
  func.func @transform_2(%arg0: i32) -> (i32, i32) {
    %c0_i32 = arith.constant 0 : i32
    %c0_i32_0 = arith.constant 0 : i32
    %c0_i32_1 = arith.constant 0 : i32
    return %c0_i32, %c0_i32_0 : i32, i32
  }
  func.func @transform_3(%arg0: i32) -> (i32, i32) {
    %c0_i32 = arith.constant 0 : i32
    %c0_i32_0 = arith.constant 0 : i32
    return %arg0, %c0_i32 : i32, i32
  }
}

</mosaic_0001>

<llo_original>
// kernel: ae_forward.10
$region0: #{ae_forward.10}
  #allocation0 [shape = 'u32[]', space=smem, size = 0x4, offset = 0x4, fixed_abs, tag = 'smem constant byte address 0x4 - core index']
  #allocation1 [shape = 'u32[72,128]{1,0:T(1,128)}', space=vmem, size = 0x9000, scoped, tag = 'internal scratch']
  %s0 = inlined_call_operand.vmem [shape: bf16[512,48], index: 0, kind: input, shape index: {}]
  %s1 = inlined_call_operand.vmem [shape: bf16[48,128], index: 1, kind: input, shape index: {}]
  %s2 = inlined_call_operand.vmem [shape: f32[1,128], index: 2, kind: input, shape index: {}]
  %s3 = inlined_call_operand.vmem [shape: bf16[512,128], index: 3, kind: output, shape index: {}]
  %s4 = sld [smem:[#allocation0]]
  $region45: #{ae_forward.10} parent=0
    _
  %s6 = ssub.s32 1, %s4
  %s7 = scalar_select 0, %s6, %s4
  loop: start=0, step=1, limit=4
  $region2: #{ae_forward.10} parent=0 // loop_pre_header
    _
  $region3: #{ae_forward.10} parent=0 // loop_header
    %s9 = sphi 0, %s13
    %p10 = scmp.ge.s32.totalorder %s9, 4
    %s19 = sphi 0, %s21
    %s22 = sphi 0, %s19
    %s23 = sphi 0, %s22
    %s39 = sphi 0, %s23
    %s43 = sphi 0, %s43
    %s45 = sphi 0, %s43
    %s46 = sphi 0, %s45
    %s60 = sphi 0, %s46
    %s64 = sphi 0, %s64
    %s66 = sphi 0, %s64
    %s67 = sphi 0, %s66
    %s81 = sphi 0, %s67
    %s87 = sphi 0, %s89
    %s90 = sphi 0, %s87
    %s91 = sphi 0, %s90
    %s107 = sphi 0, %s91
  $region4: #{ae_forward.10} parent=0 // loop_header_branch
    %12 = sbr.rel (%p10) target = $region8
  $region5: #{ae_forward.10} parent=0 // loop_body
    %s14 = ssub.s32 %s9, 1
    %s15 = ssub.s32 %s9, 2
    %s16 = sadd.s32 %s9, 1
    %s17 = ssub.s32 %s9, %s16
    %p18 = scmp.eq.s32.totalorder %s17, 0
    %s20 = sadd.s32 %s19, 1
    %s21 = scalar_select %p18, %s19, %s20
    %p24 = pneg %p18
    %p25 = scmp.eq.s32.totalorder %s9, 1
    %p26 = por %p24, %p25
    %p27 = scmp.ne.s32.totalorder %s19, %s22
    %p28 = scmp.eq.s32.totalorder %s9, 0
    %p29 = por %p27, %p28
    %p30 = scmp.ne.s32.totalorder %s19, %s22
    %p31 = scmp.eq.s32.totalorder %s14, 1
    %p32 = por %p30, %p31
    %p33 = scmp.ne.s32.totalorder %s22, %s23
    %p34 = scmp.eq.s32.totalorder %s14, 0
    %p35 = por %p33, %p34
    %p36 = scmp.ne.s32.totalorder %s22, %s23
    %p37 = scmp.eq.s32.totalorder %s15, 1
    %p38 = por %p36, %p37
    %p40 = scmp.ne.s32.totalorder %s23, %s39
    %p41 = scmp.eq.s32.totalorder %s15, 0
    %p42 = por %p40, %p41
    %s44 = sadd.s32 %s43, 1
    %p47 = scmp.eq.s32.totalorder %s9, 1
    %p48 = scmp.ne.s32.totalorder %s43, %s45
    %p49 = scmp.eq.s32.totalorder %s9, 0
    %p50 = por %p48, %p49
    %p51 = scmp.ne.s32.totalorder %s43, %s45
    %p52 = scmp.eq.s32.totalorder %s14, 1
    %p53 = por %p51, %p52
    %p54 = scmp.ne.s32.totalorder %s45, %s46
    %p55 = scmp.eq.s32.totalorder %s14, 0
    %p56 = por %p54, %p55
    %p57 = scmp.ne.s32.totalorder %s45, %s46
    %p58 = scmp.eq.s32.totalorder %s15, 1
    %p59 = por %p57, %p58
    %p61 = scmp.ne.s32.totalorder %s46, %s60
    %p62 = scmp.eq.s32.totalorder %s15, 0
    %p63 = por %p61, %p62
    %s65 = sadd.s32 %s64, 1
    %p68 = scmp.eq.s32.totalorder %s9, 1
    %p69 = scmp.ne.s32.totalorder %s64, %s66
    %p70 = scmp.eq.s32.totalorder %s9, 0
    %p71 = por %p69, %p70
    %p72 = scmp.ne.s32.totalorder %s64, %s66
    %p73 = scmp.eq.s32.totalorder %s14, 1
    %p74 = por %p72, %p73
    %p75 = scmp.ne.s32.totalorder %s66, %s67
    %p76 = scmp.eq.s32.totalorder %s14, 0
    %p77 = por %p75, %p76
    %p78 = scmp.ne.s32.totalorder %s66, %s67
    %p79 = scmp.eq.s32.totalorder %s15, 1
    %p80 = por %p78, %p79
    %p82 = scmp.ne.s32.totalorder %s67, %s81
    %p83 = scmp.eq.s32.totalorder %s15, 0
    %p84 = por %p82, %p83
    %s85 = ssub.s32 %s9, %s16
    %p86 = scmp.eq.s32.totalorder %s85, 0
    %s88 = sadd.s32 %s87, 1
    %s89 = scalar_select %p86, %s87, %s88
    %p92 = pneg %p86
    %p93 = scmp.eq.s32.totalorder %s9, 1
    %p94 = por %p92, %p93
    %p95 = scmp.ne.s32.totalorder %s87, %s90
    %p96 = scmp.eq.s32.totalorder %s9, 0
    %p97 = por %p95, %p96
    %p98 = scmp.ne.s32.totalorder %s87, %s90
    %p99 = scmp.eq.s32.totalorder %s14, 1
    %p100 = por %p98, %p99
    %p101 = scmp.ne.s32.totalorder %s90, %s91
    %p102 = scmp.eq.s32.totalorder %s14, 0
    %p103 = por %p101, %p102
    %p104 = scmp.ne.s32.totalorder %s90, %s91
    %p105 = scmp.eq.s32.totalorder %s15, 1
    %p106 = por %p104, %p105
    %p108 = scmp.ne.s32.totalorder %s91, %s107
    %p109 = scmp.eq.s32.totalorder %s15, 0
    %p110 = por %p108, %p109
    %p111 = scmp.le.s32.totalorder 1, %s9
    %p112 = scmp.lt.s32.totalorder %s9, 3
    %p113 = pnand %p111, %p112
    %p114 = pneg %p113
    // Predicated region
    $region9: #{ae_forward.10} parent=5 // pred_check
      _
    $region10: #{ae_forward.10} parent=5 // pred_check_branch
      %116 = sbr.rel (%p113) target = $region12
    $region11: #{ae_forward.10} parent=5 // pred_region
      %s117 = ssub.s32 %s9, 1
      // Predicated region
      $region13: #{ae_forward.10} parent=11 // pred_check
        %p118 = pneg %p56
      $region14: #{ae_forward.10} parent=11 // pred_check_branch
        %120 = sbr.rel (%p118) target = $region16
      $region15: #{ae_forward.10} parent=11 // pred_region
        _
      $region16: #{ae_forward.10} parent=11 // pred_fallthru
        _
      // Predicated region
      $region17: #{ae_forward.10} parent=11 // pred_check
        %p121 = pneg %p77
      $region18: #{ae_forward.10} parent=11 // pred_check_branch
        %123 = sbr.rel (%p121) target = $region20
      $region19: #{ae_forward.10} parent=11 // pred_region
        _
      $region20: #{ae_forward.10} parent=11 // pred_fallthru
        _
    $region12: #{ae_forward.10} parent=5 // pred_fallthru
      _
    %p124 = scmp.lt.s32.totalorder %s9, 2
    // Predicated region
    $region21: #{ae_forward.10} parent=5 // pred_check
      %p125 = pneg %p124
    $region22: #{ae_forward.10} parent=5 // pred_check_branch
      %127 = sbr.rel (%p125) target = $region24
    $region23: #{ae_forward.10} parent=5 // pred_region
      // Predicated region
      $region25: #{ae_forward.10} parent=23 // pred_check
        %p128 = pneg %p29
      $region26: #{ae_forward.10} parent=23 // pred_check_branch
        %130 = sbr.rel (%p128) target = $region28
      $region27: #{ae_forward.10} parent=23 // pred_region
        %s131 = smul.u32 32, %s9
        %p132 = scmp.lt.s32.totalorder %s131, 63
        %s133 = scalar_select %p132, %s131, 63
        %s134 = smul.addr %s133, 4
        %s135 = scalar_lea.vmem %s0, %s134
        %s136 = smul.u32 32, %s9
      $region28: #{ae_forward.10} parent=23 // pred_fallthru
        _
    $region24: #{ae_forward.10} parent=5 // pred_fallthru
      _
    %p137 = scmp.le.s32.totalorder 1, %s9
    %p138 = scmp.lt.s32.totalorder %s9, 3
    %p139 = pnand %p137, %p138
    %p140 = pneg %p139
    // Predicated region
    $region29: #{ae_forward.10} parent=5 // pred_check
      _
    $region30: #{ae_forward.10} parent=5 // pred_check_branch
      %142 = sbr.rel (%p139) target = $region32
    $region31: #{ae_forward.10} parent=5 // pred_region
      %s143 = ssub.s32 %s9, 1
      %s144 = smul.u32 32, %s14
      %p145 = scmp.lt.s32.totalorder %s144, 63
      %s146 = scalar_select %p145, %s144, 63
      %s147 = smul.addr %s146, 4
      %s148 = scalar_lea.vmem %s0, %s147
      %p149 = pneg %p35
      %p150 = pneg %p32
      %p151 = pneg %p56
      %p152 = pneg %p53
      %p153 = pneg %p77
      %p154 = pneg %p74
      %p155 = pneg %p103
      %p156 = pneg %p100
      %s157 = smul.u32 32, %s14
      %p158 = scmp.lt.s32.totalorder %s157, 63
      %s159 = scalar_select %p158, %s157, 63
      %s160 = smul.addr %s159, 4
      %s161 = scalar_lea.vmem %s3, %s160
      %s162 = smul.u32 32, %s14
      %p163 = scmp.lt.s32.totalorder %s162, 63
      %s164 = scalar_select %p163, %s162, 63
      %s165 = smul.addr %s164, 4
      %s166 = scalar_lea.vmem %s0, %s165
      %s167 = smul.u32 32, %s14
      %s168 = smul.u32 32, %s14
      %p169 = scmp.lt.s32.totalorder %s168, 63
      %s170 = scalar_select %p169, %s168, 63
      %s171 = smul.addr %s170, 4
      %s172 = scalar_lea.vmem %s3, %s171
      %s173 = smul.u32 32, %s14
      %v175 = vld [vmem:[%s166] sm:$0xf]
      %v176 = vld [vmem:[%s166 + $0x4] sm:$0xf]
      %v177 = vld [vmem:[%s166 + $0x8] sm:$0xf]
      %v178 = vld [vmem:[%s166 + $0xc] sm:$0xf]
      %v179 = vld [vmem:[%s166 + $0x10] sm:$0xf]
      %v180 = vld [vmem:[%s166 + $0x14] sm:$0xf]
      %v181 = vld [vmem:[%s166 + $0x18] sm:$0xf]
      %v182 = vld [vmem:[%s166 + $0x1c] sm:$0xf]
      %v183 = vld [vmem:[%s166 + $0x20] sm:$0xf]
      %v184 = vld [vmem:[%s166 + $0x24] sm:$0xf]
      %v185 = vld [vmem:[%s166 + $0x28] sm:$0xf]
      %v186 = vld [vmem:[%s166 + $0x2c] sm:$0xf]
      %v187 = vld [vmem:[%s166 + $0x30] sm:$0xf]
      %v188 = vld [vmem:[%s166 + $0x34] sm:$0xf]
      %v189 = vld [vmem:[%s166 + $0x38] sm:$0xf]
      %v190 = vld [vmem:[%s166 + $0x3c] sm:$0xf]
      %v191 = vld [vmem:[%s166 + $0x40] sm:$0xf]
      %v192 = vld [vmem:[%s166 + $0x44] sm:$0xf]
      %v193 = vld [vmem:[%s166 + $0x48] sm:$0xf]
      %v194 = vld [vmem:[%s166 + $0x4c] sm:$0xf]
      %v195 = vld [vmem:[%s166 + $0x50] sm:$0xf]
      %v196 = vld [vmem:[%s166 + $0x54] sm:$0xf]
      %v197 = vld [vmem:[%s166 + $0x58] sm:$0xf]
      %v198 = vld [vmem:[%s166 + $0x5c] sm:$0xf]
      %v199 = vld [vmem:[%s166 + $0x60] sm:$0xf]
      %v200 = vld [vmem:[%s166 + $0x64] sm:$0xf]
      %v201 = vld [vmem:[%s166 + $0x68] sm:$0xf]
      %v202 = vld [vmem:[%s166 + $0x6c] sm:$0xf]
      %v203 = vld [vmem:[%s166 + $0x70] sm:$0xf]
      %v204 = vld [vmem:[%s166 + $0x74] sm:$0xf]
      %v205 = vld [vmem:[%s166 + $0x78] sm:$0xf]
      %v206 = vld [vmem:[%s166 + $0x7c] sm:$0xf]
      %v207 = vld [vmem:[%s1] sm:$0xf]
      %v208 = vld [vmem:[%s1 + $0x4] sm:$0xf]
      %v209 = vld [vmem:[%s1 + $0x8] sm:$0xf]
      %v210 = vld [vmem:[%s1 + $0xc] sm:$0xf]
      %v211 = vld [vmem:[%s1 + $0x10] sm:$0xf]
      %v212 = vld [vmem:[%s1 + $0x14] sm:$0xf]
      %v213 = vld [vmem:[%s2] sm:$0x1]
      %v215 = vperm.slane %v213, 0
      %v249 = vunpack.c.l.b16 %v175
      %v250 = vunpack.c.l.b16 %v176
      %v251 = vunpack.c.l.b16 %v177
      %v252 = vunpack.c.l.b16 %v178
      %v253 = vunpack.c.l.b16 %v179
      %v254 = vunpack.c.l.b16 %v180
      %v255 = vunpack.c.l.b16 %v181
      %v256 = vunpack.c.l.b16 %v182
      %v257 = vunpack.c.l.b16 %v183
      %v258 = vunpack.c.l.b16 %v184
      %v259 = vunpack.c.l.b16 %v185
      %v260 = vunpack.c.l.b16 %v186
      %v261 = vunpack.c.l.b16 %v187
      %v262 = vunpack.c.l.b16 %v188
      %v263 = vunpack.c.l.b16 %v189
      %v264 = vunpack.c.l.b16 %v190
      %v265 = vunpack.c.l.b16 %v191
      %v266 = vunpack.c.l.b16 %v192
      %v267 = vunpack.c.l.b16 %v193
      %v268 = vunpack.c.l.b16 %v194
      %v269 = vunpack.c.l.b16 %v195
      %v270 = vunpack.c.l.b16 %v196
      %v271 = vunpack.c.l.b16 %v197
      %v272 = vunpack.c.l.b16 %v198
      %v273 = vunpack.c.l.b16 %v199
      %v274 = vunpack.c.l.b16 %v200
      %v275 = vunpack.c.l.b16 %v201
      %v276 = vunpack.c.l.b16 %v202
      %v277 = vunpack.c.l.b16 %v203
      %v278 = vunpack.c.l.b16 %v204
      %v279 = vunpack.c.l.b16 %v205
      %v280 = vunpack.c.l.b16 %v206
      %v281 = vpack.c.b16 %v250, %v249
      %v282 = vpack.c.b16 %v252, %v251
      %v283 = vpack.c.b16 %v254, %v253
      %v284 = vpack.c.b16 %v256, %v255
      %v285 = vpack.c.b16 %v258, %v257
      %v286 = vpack.c.b16 %v260, %v259
      %v287 = vpack.c.b16 %v262, %v261
      %v288 = vpack.c.b16 %v264, %v263
      %v289 = vpack.c.b16 %v266, %v265
      %v290 = vpack.c.b16 %v268, %v267
      %v291 = vpack.c.b16 %v270, %v269
      %v292 = vpack.c.b16 %v272, %v271
      %v293 = vpack.c.b16 %v274, %v273
      %v294 = vpack.c.b16 %v276, %v275
      %v295 = vpack.c.b16 %v278, %v277
      %v296 = vpack.c.b16 %v280, %v279
      %v303 = vunpack.c.l.b16 %v207
      %v304 = vunpack.c.l.b16 %v208
      %v305 = vunpack.c.l.b16 %v209
      %v306 = vunpack.c.l.b16 %v210
      %v307 = vunpack.c.l.b16 %v211
      %v308 = vunpack.c.l.b16 %v212
      %v309 = vpack.c.b16 %v304, %v303
      %v310 = vpack.c.b16 %v306, %v305
      %v311 = vpack.c.b16 %v308, %v307
      %vm315 = vcmask 392192
      %v317 = vsel %vm315, %v281, 0
      %v320 = vsel %vm315, %v282, 0
      %v323 = vsel %vm315, %v283, 0
      %v326 = vsel %vm315, %v284, 0
      %v329 = vsel %vm315, %v285, 0
      %v332 = vsel %vm315, %v286, 0
      %v335 = vsel %vm315, %v287, 0
      %v338 = vsel %vm315, %v288, 0
      %v341 = vsel %vm315, %v289, 0
      %v344 = vsel %vm315, %v290, 0
      %v347 = vsel %vm315, %v291, 0
      %v350 = vsel %vm315, %v292, 0
      %v353 = vsel %vm315, %v293, 0
      %v356 = vsel %vm315, %v294, 0
      %v359 = vsel %vm315, %v295, 0
      %v362 = vsel %vm315, %v296, 0
      %364 = vmatpush.bf16.msra.mxu0 0
      %365 = vmatpush.bf16.msra.mxu0 0
      %366 = vmatpush.bf16.msra.mxu0 0
      %367 = vmatpush.bf16.msra.mxu0 0
      %368 = vmatpush.bf16.msra.mxu0 0
      %369 = vmatpush.bf16.msra.mxu0 %v311
      %370 = vmatpush.bf16.msra.mxu0 %v310
      %371 = vmatpush.bf16.msra.mxu0 %v309
      %372 = vmatmul.bf16.gmra.mxu0 %v317
      %v373 = vpop.f32.mrf.mxu0
      %v374 = vadd.f32 %v215, %v373
      %v375 = vpop.f32.mrf.mxu0
      %v376 = vadd.f32 %v215, %v375
      %377 = vmatmul.bf16.gmra.mxu0 %v320
      %v378 = vpop.f32.mrf.mxu0
      %v379 = vadd.f32 %v215, %v378
      %v380 = vpop.f32.mrf.mxu0
      %v381 = vadd.f32 %v215, %v380
      %382 = vmatmul.bf16.gmra.mxu0 %v323
      %v383 = vpop.f32.mrf.mxu0
      %v384 = vadd.f32 %v215, %v383
      %v385 = vpop.f32.mrf.mxu0
      %v386 = vadd.f32 %v215, %v385
      %387 = vmatmul.bf16.gmra.mxu0 %v326
      %v388 = vpop.f32.mrf.mxu0
      %v389 = vadd.f32 %v215, %v388
      %v390 = vpop.f32.mrf.mxu0
      %v391 = vadd.f32 %v215, %v390
      %392 = vmatmul.bf16.gmra.mxu0 %v329
      %v393 = vpop.f32.mrf.mxu0
      %v394 = vadd.f32 %v215, %v393
      %v395 = vpop.f32.mrf.mxu0
      %v396 = vadd.f32 %v215, %v395
      %397 = vmatmul.bf16.gmra.mxu0 %v332
      %v398 = vpop.f32.mrf.mxu0
      %v399 = vadd.f32 %v215, %v398
      %v400 = vpop.f32.mrf.mxu0
      %v401 = vadd.f32 %v215, %v400
      %402 = vmatmul.bf16.gmra.mxu0 %v335
      %v403 = vpop.f32.mrf.mxu0
      %v404 = vadd.f32 %v215, %v403
      %v405 = vpop.f32.mrf.mxu0
      %v406 = vadd.f32 %v215, %v405
      %407 = vmatmul.bf16.gmra.mxu0 %v338
      %v408 = vpop.f32.mrf.mxu0
      %v409 = vadd.f32 %v215, %v408
      %v410 = vpop.f32.mrf.mxu0
      %v411 = vadd.f32 %v215, %v410
      %412 = vmatmul.bf16.gmra.mxu0 %v341
      %v413 = vpop.f32.mrf.mxu0
      %v414 = vadd.f32 %v215, %v413
      %v415 = vpop.f32.mrf.mxu0
      %v416 = vadd.f32 %v215, %v415
      %417 = vmatmul.bf16.gmra.mxu0 %v344
      %v418 = vpop.f32.mrf.mxu0
      %v419 = vadd.f32 %v215, %v418
      %v420 = vpop.f32.mrf.mxu0
      %v421 = vadd.f32 %v215, %v420
      %422 = vmatmul.bf16.gmra.mxu0 %v347
      %v423 = vpop.f32.mrf.mxu0
      %v424 = vadd.f32 %v215, %v423
      %v425 = vpop.f32.mrf.mxu0
      %v426 = vadd.f32 %v215, %v425
      %427 = vmatmul.bf16.gmra.mxu0 %v350
      %v428 = vpop.f32.mrf.mxu0
      %v429 = vadd.f32 %v215, %v428
      %v430 = vpop.f32.mrf.mxu0
      %v431 = vadd.f32 %v215, %v430
      %432 = vmatmul.bf16.gmra.mxu0 %v353
      %v433 = vpop.f32.mrf.mxu0
      %v434 = vadd.f32 %v215, %v433
      %v435 = vpop.f32.mrf.mxu0
      %v436 = vadd.f32 %v215, %v435
      %437 = vmatmul.bf16.gmra.mxu0 %v356
      %v438 = vpop.f32.mrf.mxu0
      %v439 = vadd.f32 %v215, %v438
      %v440 = vpop.f32.mrf.mxu0
      %v441 = vadd.f32 %v215, %v440
      %442 = vmatmul.bf16.gmra.mxu0 %v359
      %v443 = vpop.f32.mrf.mxu0
      %v444 = vadd.f32 %v215, %v443
      %v445 = vpop.f32.mrf.mxu0
      %v446 = vadd.f32 %v215, %v445
      %447 = vmatmul.bf16.gmra.mxu0 %v362
      %v448 = vpop.f32.mrf.mxu0
      %v449 = vadd.f32 %v215, %v448
      %v450 = vpop.f32.mrf.mxu0
      %v451 = vadd.f32 %v215, %v450
      %452 = vdwg.mxu0
      %v453 = vmax.f32 %v374, 0.0
      %v454 = vmax.f32 %v376, 0.0
      %v455 = vmax.f32 %v379, 0.0
      %v456 = vmax.f32 %v381, 0.0
      %v457 = vmax.f32 %v384, 0.0
      %v458 = vmax.f32 %v386, 0.0
      %v459 = vmax.f32 %v389, 0.0
      %v460 = vmax.f32 %v391, 0.0
      %v461 = vmax.f32 %v394, 0.0
      %v462 = vmax.f32 %v396, 0.0
      %v463 = vmax.f32 %v399, 0.0
      %v464 = vmax.f32 %v401, 0.0
      %v465 = vmax.f32 %v404, 0.0
      %v466 = vmax.f32 %v406, 0.0
      %v467 = vmax.f32 %v409, 0.0
      %v468 = vmax.f32 %v411, 0.0
      %v469 = vmax.f32 %v414, 0.0
      %v470 = vmax.f32 %v416, 0.0
      %v471 = vmax.f32 %v419, 0.0
      %v472 = vmax.f32 %v421, 0.0
      %v473 = vmax.f32 %v424, 0.0
      %v474 = vmax.f32 %v426, 0.0
      %v475 = vmax.f32 %v429, 0.0
      %v476 = vmax.f32 %v431, 0.0
      %v477 = vmax.f32 %v434, 0.0
      %v478 = vmax.f32 %v436, 0.0
      %v479 = vmax.f32 %v439, 0.0
      %v480 = vmax.f32 %v441, 0.0
      %v481 = vmax.f32 %v444, 0.0
      %v482 = vmax.f32 %v446, 0.0
      %v483 = vmax.f32 %v449, 0.0
      %v484 = vmax.f32 %v451, 0.0
      %v485 = vpack.c.bf16 %v453, %v453
      %v486 = vpack.c.bf16 %v454, %v454
      %v487 = vpack.c.bf16 %v455, %v455
      %v488 = vpack.c.bf16 %v456, %v456
      %v489 = vpack.c.bf16 %v457, %v457
      %v490 = vpack.c.bf16 %v458, %v458
      %v491 = vpack.c.bf16 %v459, %v459
      %v492 = vpack.c.bf16 %v460, %v460
      %v493 = vpack.c.bf16 %v461, %v461
      %v494 = vpack.c.bf16 %v462, %v462
      %v495 = vpack.c.bf16 %v463, %v463
      %v496 = vpack.c.bf16 %v464, %v464
      %v497 = vpack.c.bf16 %v465, %v465
      %v498 = vpack.c.bf16 %v466, %v466
      %v499 = vpack.c.bf16 %v467, %v467
      %v500 = vpack.c.bf16 %v468, %v468
      %v501 = vpack.c.bf16 %v469, %v469
      %v502 = vpack.c.bf16 %v470, %v470
      %v503 = vpack.c.bf16 %v471, %v471
      %v504 = vpack.c.bf16 %v472, %v472
      %v505 = vpack.c.bf16 %v473, %v473
      %v506 = vpack.c.bf16 %v474, %v474
      %v507 = vpack.c.bf16 %v475, %v475
      %v508 = vpack.c.bf16 %v476, %v476
      %v509 = vpack.c.bf16 %v477, %v477
      %v510 = vpack.c.bf16 %v478, %v478
      %v511 = vpack.c.bf16 %v479, %v479
      %v512 = vpack.c.bf16 %v480, %v480
      %v513 = vpack.c.bf16 %v481, %v481
      %v514 = vpack.c.bf16 %v482, %v482
      %v515 = vpack.c.bf16 %v483, %v483
      %v516 = vpack.c.bf16 %v484, %v484
      %517 = vst [vmem:[%s172] sm:$0xf] %v485
      %518 = vst [vmem:[%s172 + $0x4] sm:$0xf] %v486
      %519 = vst [vmem:[%s172 + $0x8] sm:$0xf] %v487
      %520 = vst [vmem:[%s172 + $0xc] sm:$0xf] %v488
      %521 = vst [vmem:[%s172 + $0x10] sm:$0xf] %v489
      %522 = vst [vmem:[%s172 + $0x14] sm:$0xf] %v490
      %523 = vst [vmem:[%s172 + $0x18] sm:$0xf] %v491
      %524 = vst [vmem:[%s172 + $0x1c] sm:$0xf] %v492
      %525 = vst [vmem:[%s172 + $0x20] sm:$0xf] %v493
      %526 = vst [vmem:[%s172 + $0x24] sm:$0xf] %v494
      %527 = vst [vmem:[%s172 + $0x28] sm:$0xf] %v495
      %528 = vst [vmem:[%s172 + $0x2c] sm:$0xf] %v496
      %529 = vst [vmem:[%s172 + $0x30] sm:$0xf] %v497
      %530 = vst [vmem:[%s172 + $0x34] sm:$0xf] %v498
      %531 = vst [vmem:[%s172 + $0x38] sm:$0xf] %v499
      %532 = vst [vmem:[%s172 + $0x3c] sm:$0xf] %v500
      %533 = vst [vmem:[%s172 + $0x40] sm:$0xf] %v501
      %534 = vst [vmem:[%s172 + $0x44] sm:$0xf] %v502
      %535 = vst [vmem:[%s172 + $0x48] sm:$0xf] %v503
      %536 = vst [vmem:[%s172 + $0x4c] sm:$0xf] %v504
      %537 = vst [vmem:[%s172 + $0x50] sm:$0xf] %v505
      %538 = vst [vmem:[%s172 + $0x54] sm:$0xf] %v506
      %539 = vst [vmem:[%s172 + $0x58] sm:$0xf] %v507
      %540 = vst [vmem:[%s172 + $0x5c] sm:$0xf] %v508
      %541 = vst [vmem:[%s172 + $0x60] sm:$0xf] %v509
      %542 = vst [vmem:[%s172 + $0x64] sm:$0xf] %v510
      %543 = vst [vmem:[%s172 + $0x68] sm:$0xf] %v511
      %544 = vst [vmem:[%s172 + $0x6c] sm:$0xf] %v512
      %545 = vst [vmem:[%s172 + $0x70] sm:$0xf] %v513
      %546 = vst [vmem:[%s172 + $0x74] sm:$0xf] %v514
      %547 = vst [vmem:[%s172 + $0x78] sm:$0xf] %v515
      %548 = vst [vmem:[%s172 + $0x7c] sm:$0xf] %v516
      %s549 = smul.u32 32, %s14
      %p550 = scmp.lt.s32.totalorder %s549, 63
      %s551 = scalar_select %p550, %s549, 63
      %s552 = smul.addr %s551, 4
      %s553 = scalar_lea.vmem %s3, %s552
      // Predicated region
      $region33: #{ae_forward.10} parent=31 // pred_check
        %p554 = pneg %p100
      $region34: #{ae_forward.10} parent=31 // pred_check_branch
        %556 = sbr.rel (%p554) target = $region36
      $region35: #{ae_forward.10} parent=31 // pred_region
        %s557 = smul.u32 32, %s14
      $region36: #{ae_forward.10} parent=31 // pred_fallthru
        _
    $region32: #{ae_forward.10} parent=5 // pred_fallthru
      _
    %p558 = scmp.le.s32.totalorder 2, %s9
    // Predicated region
    $region37: #{ae_forward.10} parent=5 // pred_check
      %p559 = pneg %p558
    $region38: #{ae_forward.10} parent=5 // pred_check_branch
      %561 = sbr.rel (%p559) target = $region40
    $region39: #{ae_forward.10} parent=5 // pred_region
      %s562 = ssub.s32 %s9, 2
      // Predicated region
      $region41: #{ae_forward.10} parent=39 // pred_check
        %p563 = pneg %p106
      $region42: #{ae_forward.10} parent=39 // pred_check_branch
        %565 = sbr.rel (%p563) target = $region44
      $region43: #{ae_forward.10} parent=39 // pred_region
        %s566 = smul.u32 32, %s15
        %p567 = scmp.lt.s32.totalorder %s566, 63
        %s568 = scalar_select %p567, %s566, 63
        %s569 = smul.addr %s568, 4
        %s570 = scalar_lea.vmem %s3, %s569
      $region44: #{ae_forward.10} parent=39 // pred_fallthru
        _
    $region40: #{ae_forward.10} parent=5 // pred_fallthru
      _
  $region6: #{ae_forward.10} parent=0 // loop_footer
    %s13 = sadd.s32 1, %s9
  $region7: #{ae_forward.10} parent=0 // loop_footer_branch
    %8 = sbr.rel target = $region3
  $region8: #{ae_forward.10} parent=0 // loop_exit
    _

// kernel: ae_forward.11
$region0: #{ae_forward.11}
  #allocation0 [shape = 'u32[]', space=smem, size = 0x4, offset = 0x4, fixed_abs, tag = 'smem constant byte address 0x4 - core index']
  #allocation1 [shape = 'u32[72,128]{1,0:T(1,128)}', space=vmem, size = 0x9000, scoped, tag = 'internal scratch']
  %s0 = inlined_call_operand.vmem [shape: bf16[128,1152], index: 0, kind: input, shape index: {}]
  %s1 = inlined_call_operand.vmem [shape: bf16[1152,128], index: 1, kind: input, shape index: {}]
  %s2 = inlined_call_operand.vmem [shape: f32[1,128], index: 2, kind: input, shape index: {}]
  %s3 = inlined_call_operand.vmem [shape: bf16[128,128], index: 3, kind: output, shape index: {}]
  %s4 = sld [smem:[#allocation0]]
  $region22: #{ae_forward.11} parent=0
    _
  %s6 = ssub.s32 1, %s4
  %s7 = scalar_select 0, %s6, %s4
  // Predicated region
  $region2: #{ae_forward.11} parent=0 // pred_check
    _
  $region3: #{ae_forward.11} parent=0 // pred_check_branch
    %9 = sbr.rel (0) target = $region5
  $region4: #{ae_forward.11} parent=0 // pred_region
    _
  $region5: #{ae_forward.11} parent=0 // pred_fallthru
    _
  // Predicated region
  $region6: #{ae_forward.11} parent=0 // pred_check
    _
  $region7: #{ae_forward.11} parent=0 // pred_check_branch
    %11 = sbr.rel (0) target = $region9
  $region8: #{ae_forward.11} parent=0 // pred_region
    _
  $region9: #{ae_forward.11} parent=0 // pred_fallthru
    _
  // Predicated region
  $region10: #{ae_forward.11} parent=0 // pred_check
    _
  $region11: #{ae_forward.11} parent=0 // pred_check_branch
    %13 = sbr.rel (0) target = $region13
  $region12: #{ae_forward.11} parent=0 // pred_region
    _
  $region13: #{ae_forward.11} parent=0 // pred_fallthru
    _
  %v14 = vld [vmem:[%s0] sm:$0xff]
  %v15 = vld [vmem:[%s0 + $0x8] sm:$0xff]
  %v16 = vld [vmem:[%s0 + $0x10] sm:$0xff]
  %v17 = vld [vmem:[%s0 + $0x18] sm:$0xff]
  %v18 = vld [vmem:[%s0 + $0x20] sm:$0xf]
  %v19 = vld [vmem:[%s0 + $0x24] sm:$0xff]
  %v20 = vld [vmem:[%s0 + $0x2c] sm:$0xff]
  %v21 = vld [vmem:[%s0 + $0x34] sm:$0xff]
  %v22 = vld [vmem:[%s0 + $0x3c] sm:$0xff]
  %v23 = vld [vmem:[%s0 + $0x44] sm:$0xf]
  %v24 = vld [vmem:[%s0 + $0x48] sm:$0xff]
  %v25 = vld [vmem:[%s0 + $0x50] sm:$0xff]
  %v26 = vld [vmem:[%s0 + $0x58] sm:$0xff]
  %v27 = vld [vmem:[%s0 + $0x60] sm:$0xff]
  %v28 = vld [vmem:[%s0 + $0x68] sm:$0xf]
  %v29 = vld [vmem:[%s0 + $0x6c] sm:$0xff]
  %v30 = vld [vmem:[%s0 + $0x74] sm:$0xff]
  %v31 = vld [vmem:[%s0 + $0x7c] sm:$0xff]
  %v32 = vld [vmem:[%s0 + $0x84] sm:$0xff]
  %v33 = vld [vmem:[%s0 + $0x8c] sm:$0xf]
  %v34 = vld [vmem:[%s0 + $0x90] sm:$0xff]
  %v35 = vld [vmem:[%s0 + $0x98] sm:$0xff]
  %v36 = vld [vmem:[%s0 + $0xa0] sm:$0xff]
  %v37 = vld [vmem:[%s0 + $0xa8] sm:$0xff]
  %v38 = vld [vmem:[%s0 + $0xb0] sm:$0xf]
  %v39 = vld [vmem:[%s0 + $0xb4] sm:$0xff]
  %v40 = vld [vmem:[%s0 + $0xbc] sm:$0xff]
  %v41 = vld [vmem:[%s0 + $0xc4] sm:$0xff]
  %v42 = vld [vmem:[%s0 + $0xcc] sm:$0xff]
  %v43 = vld [vmem:[%s0 + $0xd4] sm:$0xf]
  %v44 = vld [vmem:[%s0 + $0xd8] sm:$0xff]
  %v45 = vld [vmem:[%s0 + $0xe0] sm:$0xff]
  %v46 = vld [vmem:[%s0 + $0xe8] sm:$0xff]
  %v47 = vld [vmem:[%s0 + $0xf0] sm:$0xff]
  %v48 = vld [vmem:[%s0 + $0xf8] sm:$0xf]
  %v49 = vld [vmem:[%s0 + $0xfc] sm:$0xff]
  %v50 = vld [vmem:[%s0 + $0x104] sm:$0xff]
  %v51 = vld [vmem:[%s0 + $0x10c] sm:$0xff]
  %v52 = vld [vmem:[%s0 + $0x114] sm:$0xff]
  %v53 = vld [vmem:[%s0 + $0x11c] sm:$0xf]
  %v54 = vld [vmem:[%s0 + $0x120] sm:$0xff]
  %v55 = vld [vmem:[%s0 + $0x128] sm:$0xff]
  %v56 = vld [vmem:[%s0 + $0x130] sm:$0xff]
  %v57 = vld [vmem:[%s0 + $0x138] sm:$0xff]
  %v58 = vld [vmem:[%s0 + $0x140] sm:$0xf]
  %v59 = vld [vmem:[%s0 + $0x144] sm:$0xff]
  %v60 = vld [vmem:[%s0 + $0x14c] sm:$0xff]
  %v61 = vld [vmem:[%s0 + $0x154] sm:$0xff]
  %v62 = vld [vmem:[%s0 + $0x15c] sm:$0xff]
  %v63 = vld [vmem:[%s0 + $0x164] sm:$0xf]
  %v64 = vld [vmem:[%s0 + $0x168] sm:$0xff]
  %v65 = vld [vmem:[%s0 + $0x170] sm:$0xff]
  %v66 = vld [vmem:[%s0 + $0x178] sm:$0xff]
  %v67 = vld [vmem:[%s0 + $0x180] sm:$0xff]
  %v68 = vld [vmem:[%s0 + $0x188] sm:$0xf]
  %v69 = vld [vmem:[%s0 + $0x18c] sm:$0xff]
  %v70 = vld [vmem:[%s0 + $0x194] sm:$0xff]
  %v71 = vld [vmem:[%s0 + $0x19c] sm:$0xff]
  %v72 = vld [vmem:[%s0 + $0x1a4] sm:$0xff]
  %v73 = vld [vmem:[%s0 + $0x1ac] sm:$0xf]
  %v74 = vld [vmem:[%s0 + $0x1b0] sm:$0xff]
  %v75 = vld [vmem:[%s0 + $0x1b8] sm:$0xff]
  %v76 = vld [vmem:[%s0 + $0x1c0] sm:$0xff]
  %v77 = vld [vmem:[%s0 + $0x1c8] sm:$0xff]
  %v78 = vld [vmem:[%s0 + $0x1d0] sm:$0xf]
  %v79 = vld [vmem:[%s0 + $0x1d4] sm:$0xff]
  %v80 = vld [vmem:[%s0 + $0x1dc] sm:$0xff]
  %v81 = vld [vmem:[%s0 + $0x1e4] sm:$0xff]
  %v82 = vld [vmem:[%s0 + $0x1ec] sm:$0xff]
  %v83 = vld [vmem:[%s0 + $0x1f4] sm:$0xf]
  %v84 = vld [vmem:[%s0 + $0x1f8] sm:$0xff]
  %v85 = vld [vmem:[%s0 + $0x200] sm:$0xff]
  %v86 = vld [vmem:[%s0 + $0x208] sm:$0xff]
  %v87 = vld [vmem:[%s0 + $0x210] sm:$0xff]
  %v88 = vld [vmem:[%s0 + $0x218] sm:$0xf]
  %v89 = vld [vmem:[%s0 + $0x21c] sm:$0xff]
  %v90 = vld [vmem:[%s0 + $0x224] sm:$0xff]
  %v91 = vld [vmem:[%s0 + $0x22c] sm:$0xff]
  %v92 = vld [vmem:[%s0 + $0x234] sm:$0xff]
  %v93 = vld [vmem:[%s0 + $0x23c] sm:$0xf]
  %v94 = vld [vmem:[%s1] sm:$0xf]
  %v95 = vld [vmem:[%s1 + $0x4] sm:$0xf]
  %v96 = vld [vmem:[%s1 + $0x8] sm:$0xf]
  %v97 = vld [vmem:[%s1 + $0xc] sm:$0xf]
  %v98 = vld [vmem:[%s1 + $0x10] sm:$0xf]
  %v99 = vld [vmem:[%s1 + $0x14] sm:$0xf]
  %v100 = vld [vmem:[%s1 + $0x18] sm:$0xf]
  %v101 = vld [vmem:[%s1 + $0x1c] sm:$0xf]
  %v102 = vld [vmem:[%s1 + $0x20] sm:$0xf]
  %v103 = vld [vmem:[%s1 + $0x24] sm:$0xf]
  %v104 = vld [vmem:[%s1 + $0x28] sm:$0xf]
  %v105 = vld [vmem:[%s1 + $0x2c] sm:$0xf]
  %v106 = vld [vmem:[%s1 + $0x30] sm:$0xf]
  %v107 = vld [vmem:[%s1 + $0x34] sm:$0xf]
  %v108 = vld [vmem:[%s1 + $0x38] sm:$0xf]
  %v109 = vld [vmem:[%s1 + $0x3c] sm:$0xf]
  %v110 = vld [vmem:[%s1 + $0x40] sm:$0xf]
  %v111 = vld [vmem:[%s1 + $0x44] sm:$0xf]
  %v112 = vld [vmem:[%s1 + $0x48] sm:$0xf]
  %v113 = vld [vmem:[%s1 + $0x4c] sm:$0xf]
  %v114 = vld [vmem:[%s1 + $0x50] sm:$0xf]
  %v115 = vld [vmem:[%s1 + $0x54] sm:$0xf]
  %v116 = vld [vmem:[%s1 + $0x58] sm:$0xf]
  %v117 = vld [vmem:[%s1 + $0x5c] sm:$0xf]
  %v118 = vld [vmem:[%s1 + $0x60] sm:$0xf]
  %v119 = vld [vmem:[%s1 + $0x64] sm:$0xf]
  %v120 = vld [vmem:[%s1 + $0x68] sm:$0xf]
  %v121 = vld [vmem:[%s1 + $0x6c] sm:$0xf]
  %v122 = vld [vmem:[%s1 + $0x70] sm:$0xf]
  %v123 = vld [vmem:[%s1 + $0x74] sm:$0xf]
  %v124 = vld [vmem:[%s1 + $0x78] sm:$0xf]
  %v125 = vld [vmem:[%s1 + $0x7c] sm:$0xf]
  %v126 = vld [vmem:[%s1 + $0x80] sm:$0xf]
  %v127 = vld [vmem:[%s1 + $0x84] sm:$0xf]
  %v128 = vld [vmem:[%s1 + $0x88] sm:$0xf]
  %v129 = vld [vmem:[%s1 + $0x8c] sm:$0xf]
  %v130 = vld [vmem:[%s1 + $0x90] sm:$0xf]
  %v131 = vld [vmem:[%s1 + $0x94] sm:$0xf]
  %v132 = vld [vmem:[%s1 + $0x98] sm:$0xf]
  %v133 = vld [vmem:[%s1 + $0x9c] sm:$0xf]
  %v134 = vld [vmem:[%s1 + $0xa0] sm:$0xf]
  %v135 = vld [vmem:[%s1 + $0xa4] sm:$0xf]
  %v136 = vld [vmem:[%s1 + $0xa8] sm:$0xf]
  %v137 = vld [vmem:[%s1 + $0xac] sm:$0xf]
  %v138 = vld [vmem:[%s1 + $0xb0] sm:$0xf]
  %v139 = vld [vmem:[%s1 + $0xb4] sm:$0xf]
  %v140 = vld [vmem:[%s1 + $0xb8] sm:$0xf]
  %v141 = vld [vmem:[%s1 + $0xbc] sm:$0xf]
  %v142 = vld [vmem:[%s1 + $0xc0] sm:$0xf]
  %v143 = vld [vmem:[%s1 + $0xc4] sm:$0xf]
  %v144 = vld [vmem:[%s1 + $0xc8] sm:$0xf]
  %v145 = vld [vmem:[%s1 + $0xcc] sm:$0xf]
  %v146 = vld [vmem:[%s1 + $0xd0] sm:$0xf]
  %v147 = vld [vmem:[%s1 + $0xd4] sm:$0xf]
  %v148 = vld [vmem:[%s1 + $0xd8] sm:$0xf]
  %v149 = vld [vmem:[%s1 + $0xdc] sm:$0xf]
  %v150 = vld [vmem:[%s1 + $0xe0] sm:$0xf]
  %v151 = vld [vmem:[%s1 + $0xe4] sm:$0xf]
  %v152 = vld [vmem:[%s1 + $0xe8] sm:$0xf]
  %v153 = vld [vmem:[%s1 + $0xec] sm:$0xf]
  %v154 = vld [vmem:[%s1 + $0xf0] sm:$0xf]
  %v155 = vld [vmem:[%s1 + $0xf4] sm:$0xf]
  %v156 = vld [vmem:[%s1 + $0xf8] sm:$0xf]
  %v157 = vld [vmem:[%s1 + $0xfc] sm:$0xf]
  %v158 = vld [vmem:[%s1 + $0x100] sm:$0xf]
  %v159 = vld [vmem:[%s1 + $0x104] sm:$0xf]
  %v160 = vld [vmem:[%s1 + $0x108] sm:$0xf]
  %v161 = vld [vmem:[%s1 + $0x10c] sm:$0xf]
  %v162 = vld [vmem:[%s1 + $0x110] sm:$0xf]
  %v163 = vld [vmem:[%s1 + $0x114] sm:$0xf]
  %v164 = vld [vmem:[%s1 + $0x118] sm:$0xf]
  %v165 = vld [vmem:[%s1 + $0x11c] sm:$0xf]
  %v166 = vld [vmem:[%s1 + $0x120] sm:$0xf]
  %v167 = vld [vmem:[%s1 + $0x124] sm:$0xf]
  %v168 = vld [vmem:[%s1 + $0x128] sm:$0xf]
  %v169 = vld [vmem:[%s1 + $0x12c] sm:$0xf]
  %v170 = vld [vmem:[%s1 + $0x130] sm:$0xf]
  %v171 = vld [vmem:[%s1 + $0x134] sm:$0xf]
  %v172 = vld [vmem:[%s1 + $0x138] sm:$0xf]
  %v173 = vld [vmem:[%s1 + $0x13c] sm:$0xf]
  %v174 = vld [vmem:[%s1 + $0x140] sm:$0xf]
  %v175 = vld [vmem:[%s1 + $0x144] sm:$0xf]
  %v176 = vld [vmem:[%s1 + $0x148] sm:$0xf]
  %v177 = vld [vmem:[%s1 + $0x14c] sm:$0xf]
  %v178 = vld [vmem:[%s1 + $0x150] sm:$0xf]
  %v179 = vld [vmem:[%s1 + $0x154] sm:$0xf]
  %v180 = vld [vmem:[%s1 + $0x158] sm:$0xf]
  %v181 = vld [vmem:[%s1 + $0x15c] sm:$0xf]
  %v182 = vld [vmem:[%s1 + $0x160] sm:$0xf]
  %v183 = vld [vmem:[%s1 + $0x164] sm:$0xf]
  %v184 = vld [vmem:[%s1 + $0x168] sm:$0xf]
  %v185 = vld [vmem:[%s1 + $0x16c] sm:$0xf]
  %v186 = vld [vmem:[%s1 + $0x170] sm:$0xf]
  %v187 = vld [vmem:[%s1 + $0x174] sm:$0xf]
  %v188 = vld [vmem:[%s1 + $0x178] sm:$0xf]
  %v189 = vld [vmem:[%s1 + $0x17c] sm:$0xf]
  %v190 = vld [vmem:[%s1 + $0x180] sm:$0xf]
  %v191 = vld [vmem:[%s1 + $0x184] sm:$0xf]
  %v192 = vld [vmem:[%s1 + $0x188] sm:$0xf]
  %v193 = vld [vmem:[%s1 + $0x18c] sm:$0xf]
  %v194 = vld [vmem:[%s1 + $0x190] sm:$0xf]
  %v195 = vld [vmem:[%s1 + $0x194] sm:$0xf]
  %v196 = vld [vmem:[%s1 + $0x198] sm:$0xf]
  %v197 = vld [vmem:[%s1 + $0x19c] sm:$0xf]
  %v198 = vld [vmem:[%s1 + $0x1a0] sm:$0xf]
  %v199 = vld [vmem:[%s1 + $0x1a4] sm:$0xf]
  %v200 = vld [vmem:[%s1 + $0x1a8] sm:$0xf]
  %v201 = vld [vmem:[%s1 + $0x1ac] sm:$0xf]
  %v202 = vld [vmem:[%s1 + $0x1b0] sm:$0xf]
  %v203 = vld [vmem:[%s1 + $0x1b4] sm:$0xf]
  %v204 = vld [vmem:[%s1 + $0x1b8] sm:$0xf]
  %v205 = vld [vmem:[%s1 + $0x1bc] sm:$0xf]
  %v206 = vld [vmem:[%s1 + $0x1c0] sm:$0xf]
  %v207 = vld [vmem:[%s1 + $0x1c4] sm:$0xf]
  %v208 = vld [vmem:[%s1 + $0x1c8] sm:$0xf]
  %v209 = vld [vmem:[%s1 + $0x1cc] sm:$0xf]
  %v210 = vld [vmem:[%s1 + $0x1d0] sm:$0xf]
  %v211 = vld [vmem:[%s1 + $0x1d4] sm:$0xf]
  %v212 = vld [vmem:[%s1 + $0x1d8] sm:$0xf]
  %v213 = vld [vmem:[%s1 + $0x1dc] sm:$0xf]
  %v214 = vld [vmem:[%s1 + $0x1e0] sm:$0xf]
  %v215 = vld [vmem:[%s1 + $0x1e4] sm:$0xf]
  %v216 = vld [vmem:[%s1 + $0x1e8] sm:$0xf]
  %v217 = vld [vmem:[%s1 + $0x1ec] sm:$0xf]
  %v218 = vld [vmem:[%s1 + $0x1f0] sm:$0xf]
  %v219 = vld [vmem:[%s1 + $0x1f4] sm:$0xf]
  %v220 = vld [vmem:[%s1 + $0x1f8] sm:$0xf]
  %v221 = vld [vmem:[%s1 + $0x1fc] sm:$0xf]
  %v222 = vld [vmem:[%s1 + $0x200] sm:$0xf]
  %v223 = vld [vmem:[%s1 + $0x204] sm:$0xf]
  %v224 = vld [vmem:[%s1 + $0x208] sm:$0xf]
  %v225 = vld [vmem:[%s1 + $0x20c] sm:$0xf]
  %v226 = vld [vmem:[%s1 + $0x210] sm:$0xf]
  %v227 = vld [vmem:[%s1 + $0x214] sm:$0xf]
  %v228 = vld [vmem:[%s1 + $0x218] sm:$0xf]
  %v229 = vld [vmem:[%s1 + $0x21c] sm:$0xf]
  %v230 = vld [vmem:[%s1 + $0x220] sm:$0xf]
  %v231 = vld [vmem:[%s1 + $0x224] sm:$0xf]
  %v232 = vld [vmem:[%s1 + $0x228] sm:$0xf]
  %v233 = vld [vmem:[%s1 + $0x22c] sm:$0xf]
  %v234 = vld [vmem:[%s1 + $0x230] sm:$0xf]
  %v235 = vld [vmem:[%s1 + $0x234] sm:$0xf]
  %v236 = vld [vmem:[%s1 + $0x238] sm:$0xf]
  %v237 = vld [vmem:[%s1 + $0x23c] sm:$0xf]
  %v238 = vld [vmem:[%s2] sm:$0x1]
  %v240 = vperm.slane %v238, 0
  %v322 = vunpack.c.l.b16 %v14
  %v323 = vunpack.c.h.b16 %v14
  %v324 = vunpack.c.l.b16 %v15
  %v325 = vunpack.c.h.b16 %v15
  %v326 = vunpack.c.l.b16 %v16
  %v327 = vunpack.c.h.b16 %v16
  %v328 = vunpack.c.l.b16 %v17
  %v329 = vunpack.c.h.b16 %v17
  %v330 = vunpack.c.l.b16 %v18
  %v331 = vunpack.c.l.b16 %v19
  %v332 = vunpack.c.h.b16 %v19
  %v333 = vunpack.c.l.b16 %v20
  %v334 = vunpack.c.h.b16 %v20
  %v335 = vunpack.c.l.b16 %v21
  %v336 = vunpack.c.h.b16 %v21
  %v337 = vunpack.c.l.b16 %v22
  %v338 = vunpack.c.h.b16 %v22
  %v339 = vunpack.c.l.b16 %v23
  %v340 = vunpack.c.l.b16 %v24
  %v341 = vunpack.c.h.b16 %v24
  %v342 = vunpack.c.l.b16 %v25
  %v343 = vunpack.c.h.b16 %v25
  %v344 = vunpack.c.l.b16 %v26
  %v345 = vunpack.c.h.b16 %v26
  %v346 = vunpack.c.l.b16 %v27
  %v347 = vunpack.c.h.b16 %v27
  %v348 = vunpack.c.l.b16 %v28
  %v349 = vunpack.c.l.b16 %v29
  %v350 = vunpack.c.h.b16 %v29
  %v351 = vunpack.c.l.b16 %v30
  %v352 = vunpack.c.h.b16 %v30
  %v353 = vunpack.c.l.b16 %v31
  %v354 = vunpack.c.h.b16 %v31
  %v355 = vunpack.c.l.b16 %v32
  %v356 = vunpack.c.h.b16 %v32
  %v357 = vunpack.c.l.b16 %v33
  %v358 = vunpack.c.l.b16 %v34
  %v359 = vunpack.c.h.b16 %v34
  %v360 = vunpack.c.l.b16 %v35
  %v361 = vunpack.c.h.b16 %v35
  %v362 = vunpack.c.l.b16 %v36
  %v363 = vunpack.c.h.b16 %v36
  %v364 = vunpack.c.l.b16 %v37
  %v365 = vunpack.c.h.b16 %v37
  %v366 = vunpack.c.l.b16 %v38
  %v367 = vunpack.c.l.b16 %v39
  %v368 = vunpack.c.h.b16 %v39
  %v369 = vunpack.c.l.b16 %v40
  %v370 = vunpack.c.h.b16 %v40
  %v371 = vunpack.c.l.b16 %v41
  %v372 = vunpack.c.h.b16 %v41
  %v373 = vunpack.c.l.b16 %v42
  %v374 = vunpack.c.h.b16 %v42
  %v375 = vunpack.c.l.b16 %v43
  %v376 = vunpack.c.l.b16 %v44
  %v377 = vunpack.c.h.b16 %v44
  %v378 = vunpack.c.l.b16 %v45
  %v379 = vunpack.c.h.b16 %v45
  %v380 = vunpack.c.l.b16 %v46
  %v381 = vunpack.c.h.b16 %v46
  %v382 = vunpack.c.l.b16 %v47
  %v383 = vunpack.c.h.b16 %v47
  %v384 = vunpack.c.l.b16 %v48
  %v385 = vunpack.c.l.b16 %v49
  %v386 = vunpack.c.h.b16 %v49
  %v387 = vunpack.c.l.b16 %v50
  %v388 = vunpack.c.h.b16 %v50
  %v389 = vunpack.c.l.b16 %v51
  %v390 = vunpack.c.h.b16 %v51
  %v391 = vunpack.c.l.b16 %v52
  %v392 = vunpack.c.h.b16 %v52
  %v393 = vunpack.c.l.b16 %v53
  %v394 = vunpack.c.l.b16 %v54
  %v395 = vunpack.c.h.b16 %v54
  %v396 = vunpack.c.l.b16 %v55
  %v397 = vunpack.c.h.b16 %v55
  %v398 = vunpack.c.l.b16 %v56
  %v399 = vunpack.c.h.b16 %v56
  %v400 = vunpack.c.l.b16 %v57
  %v401 = vunpack.c.h.b16 %v57
  %v402 = vunpack.c.l.b16 %v58
  %v403 = vunpack.c.l.b16 %v59
  %v404 = vunpack.c.h.b16 %v59
  %v405 = vunpack.c.l.b16 %v60
  %v406 = vunpack.c.h.b16 %v60
  %v407 = vunpack.c.l.b16 %v61
  %v408 = vunpack.c.h.b16 %v61
  %v409 = vunpack.c.l.b16 %v62
  %v410 = vunpack.c.h.b16 %v62
  %v411 = vunpack.c.l.b16 %v63
  %v412 = vunpack.c.l.b16 %v64
  %v413 = vunpack.c.h.b16 %v64
  %v414 = vunpack.c.l.b16 %v65
  %v415 = vunpack.c.h.b16 %v65
  %v416 = vunpack.c.l.b16 %v66
  %v417 = vunpack.c.h.b16 %v66
  %v418 = vunpack.c.l.b16 %v67
  %v419 = vunpack.c.h.b16 %v67
  %v420 = vunpack.c.l.b16 %v68
  %v421 = vunpack.c.l.b16 %v69
  %v422 = vunpack.c.h.b16 %v69
  %v423 = vunpack.c.l.b16 %v70
  %v424 = vunpack.c.h.b16 %v70
  %v425 = vunpack.c.l.b16 %v71
  %v426 = vunpack.c.h.b16 %v71
  %v427 = vunpack.c.l.b16 %v72
  %v428 = vunpack.c.h.b16 %v72
  %v429 = vunpack.c.l.b16 %v73
  %v430 = vunpack.c.l.b16 %v74
  %v431 = vunpack.c.h.b16 %v74
  %v432 = vunpack.c.l.b16 %v75
  %v433 = vunpack.c.h.b16 %v75
  %v434 = vunpack.c.l.b16 %v76
  %v435 = vunpack.c.h.b16 %v76
  %v436 = vunpack.c.l.b16 %v77
  %v437 = vunpack.c.h.b16 %v77
  %v438 = vunpack.c.l.b16 %v78
  %v439 = vunpack.c.l.b16 %v79
  %v440 = vunpack.c.h.b16 %v79
  %v441 = vunpack.c.l.b16 %v80
  %v442 = vunpack.c.h.b16 %v80
  %v443 = vunpack.c.l.b16 %v81
  %v444 = vunpack.c.h.b16 %v81
  %v445 = vunpack.c.l.b16 %v82
  %v446 = vunpack.c.h.b16 %v82
  %v447 = vunpack.c.l.b16 %v83
  %v448 = vunpack.c.l.b16 %v84
  %v449 = vunpack.c.h.b16 %v84
  %v450 = vunpack.c.l.b16 %v85
  %v451 = vunpack.c.h.b16 %v85
  %v452 = vunpack.c.l.b16 %v86
  %v453 = vunpack.c.h.b16 %v86
  %v454 = vunpack.c.l.b16 %v87
  %v455 = vunpack.c.h.b16 %v87
  %v456 = vunpack.c.l.b16 %v88
  %v457 = vunpack.c.l.b16 %v89
  %v458 = vunpack.c.h.b16 %v89
  %v459 = vunpack.c.l.b16 %v90
  %v460 = vunpack.c.h.b16 %v90
  %v461 = vunpack.c.l.b16 %v91
  %v462 = vunpack.c.h.b16 %v91
  %v463 = vunpack.c.l.b16 %v92
  %v464 = vunpack.c.h.b16 %v92
  %v465 = vunpack.c.l.b16 %v93
  %v466 = vpack.c.b16 %v331, %v322
  %v467 = vpack.c.b16 %v332, %v323
  %v468 = vpack.c.b16 %v333, %v324
  %v469 = vpack.c.b16 %v334, %v325
  %v470 = vpack.c.b16 %v335, %v326
  %v471 = vpack.c.b16 %v336, %v327
  %v472 = vpack.c.b16 %v337, %v328
  %v473 = vpack.c.b16 %v338, %v329
  %v474 = vpack.c.b16 %v339, %v330
  %v475 = vpack.c.b16 %v349, %v340
  %v476 = vpack.c.b16 %v350, %v341
  %v477 = vpack.c.b16 %v351, %v342
  %v478 = vpack.c.b16 %v352, %v343
  %v479 = vpack.c.b16 %v353, %v344
  %v480 = vpack.c.b16 %v354, %v345
  %v481 = vpack.c.b16 %v355, %v346
  %v482 = vpack.c.b16 %v356, %v347
  %v483 = vpack.c.b16 %v357, %v348
  %v484 = vpack.c.b16 %v367, %v358
  %v485 = vpack.c.b16 %v368, %v359
  %v486 = vpack.c.b16 %v369, %v360
  %v487 = vpack.c.b16 %v370, %v361
  %v488 = vpack.c.b16 %v371, %v362
  %v489 = vpack.c.b16 %v372, %v363
  %v490 = vpack.c.b16 %v373, %v364
  %v491 = vpack.c.b16 %v374, %v365
  %v492 = vpack.c.b16 %v375, %v366
  %v493 = vpack.c.b16 %v385, %v376
  %v494 = vpack.c.b16 %v386, %v377
  %v495 = vpack.c.b16 %v387, %v378
  %v496 = vpack.c.b16 %v388, %v379
  %v497 = vpack.c.b16 %v389, %v380
  %v498 = vpack.c.b16 %v390, %v381
  %v499 = vpack.c.b16 %v391, %v382
  %v500 = vpack.c.b16 %v392, %v383
  %v501 = vpack.c.b16 %v393, %v384
  %v502 = vpack.c.b16 %v403, %v394
  %v503 = vpack.c.b16 %v404, %v395
  %v504 = vpack.c.b16 %v405, %v396
  %v505 = vpack.c.b16 %v406, %v397
  %v506 = vpack.c.b16 %v407, %v398
  %v507 = vpack.c.b16 %v408, %v399
  %v508 = vpack.c.b16 %v409, %v400
  %v509 = vpack.c.b16 %v410, %v401
  %v510 = vpack.c.b16 %v411, %v402
  %v511 = vpack.c.b16 %v421, %v412
  %v512 = vpack.c.b16 %v422, %v413
  %v513 = vpack.c.b16 %v423, %v414
  %v514 = vpack.c.b16 %v424, %v415
  %v515 = vpack.c.b16 %v425, %v416
  %v516 = vpack.c.b16 %v426, %v417
  %v517 = vpack.c.b16 %v427, %v418
  %v518 = vpack.c.b16 %v428, %v419
  %v519 = vpack.c.b16 %v429, %v420
  %v520 = vpack.c.b16 %v439, %v430
  %v521 = vpack.c.b16 %v440, %v431
  %v522 = vpack.c.b16 %v441, %v432
  %v523 = vpack.c.b16 %v442, %v433
  %v524 = vpack.c.b16 %v443, %v434
  %v525 = vpack.c.b16 %v444, %v435
  %v526 = vpack.c.b16 %v445, %v436
  %v527 = vpack.c.b16 %v446, %v437
  %v528 = vpack.c.b16 %v447, %v438
  %v529 = vpack.c.b16 %v457, %v448
  %v530 = vpack.c.b16 %v458, %v449
  %v531 = vpack.c.b16 %v459, %v450
  %v532 = vpack.c.b16 %v460, %v451
  %v533 = vpack.c.b16 %v461, %v452
  %v534 = vpack.c.b16 %v462, %v453
  %v535 = vpack.c.b16 %v463, %v454
  %v536 = vpack.c.b16 %v464, %v455
  %v537 = vpack.c.b16 %v465, %v456
  %v754 = vunpack.c.l.b16 %v94
  %v755 = vunpack.c.l.b16 %v95
  %v756 = vunpack.c.l.b16 %v96
  %v757 = vunpack.c.l.b16 %v97
  %v758 = vunpack.c.l.b16 %v98
  %v759 = vunpack.c.l.b16 %v99
  %v760 = vunpack.c.l.b16 %v100
  %v761 = vunpack.c.l.b16 %v101
  %v762 = vunpack.c.l.b16 %v102
  %v763 = vunpack.c.l.b16 %v103
  %v764 = vunpack.c.l.b16 %v104
  %v765 = vunpack.c.l.b16 %v105
  %v766 = vunpack.c.l.b16 %v106
  %v767 = vunpack.c.l.b16 %v107
  %v768 = vunpack.c.l.b16 %v108
  %v769 = vunpack.c.l.b16 %v109
  %v770 = vunpack.c.l.b16 %v110
  %v771 = vunpack.c.l.b16 %v111
  %v772 = vunpack.c.l.b16 %v112
  %v773 = vunpack.c.l.b16 %v113
  %v774 = vunpack.c.l.b16 %v114
  %v775 = vunpack.c.l.b16 %v115
  %v776 = vunpack.c.l.b16 %v116
  %v777 = vunpack.c.l.b16 %v117
  %v778 = vunpack.c.l.b16 %v118
  %v779 = vunpack.c.l.b16 %v119
  %v780 = vunpack.c.l.b16 %v120
  %v781 = vunpack.c.l.b16 %v121
  %v782 = vunpack.c.l.b16 %v122
  %v783 = vunpack.c.l.b16 %v123
  %v784 = vunpack.c.l.b16 %v124
  %v785 = vunpack.c.l.b16 %v125
  %v786 = vunpack.c.l.b16 %v126
  %v787 = vunpack.c.l.b16 %v127
  %v788 = vunpack.c.l.b16 %v128
  %v789 = vunpack.c.l.b16 %v129
  %v790 = vunpack.c.l.b16 %v130
  %v791 = vunpack.c.l.b16 %v131
  %v792 = vunpack.c.l.b16 %v132
  %v793 = vunpack.c.l.b16 %v133
  %v794 = vunpack.c.l.b16 %v134
  %v795 = vunpack.c.l.b16 %v135
  %v796 = vunpack.c.l.b16 %v136
  %v797 = vunpack.c.l.b16 %v137
  %v798 = vunpack.c.l.b16 %v138
  %v799 = vunpack.c.l.b16 %v139
  %v800 = vunpack.c.l.b16 %v140
  %v801 = vunpack.c.l.b16 %v141
  %v802 = vunpack.c.l.b16 %v142
  %v803 = vunpack.c.l.b16 %v143
  %v804 = vunpack.c.l.b16 %v144
  %v805 = vunpack.c.l.b16 %v145
  %v806 = vunpack.c.l.b16 %v146
  %v807 = vunpack.c.l.b16 %v147
  %v808 = vunpack.c.l.b16 %v148
  %v809 = vunpack.c.l.b16 %v149
  %v810 = vunpack.c.l.b16 %v150
  %v811 = vunpack.c.l.b16 %v151
  %v812 = vunpack.c.l.b16 %v152
  %v813 = vunpack.c.l.b16 %v153
  %v814 = vunpack.c.l.b16 %v154
  %v815 = vunpack.c.l.b16 %v155
  %v816 = vunpack.c.l.b16 %v156
  %v817 = vunpack.c.l.b16 %v157
  %v818 = vunpack.c.l.b16 %v158
  %v819 = vunpack.c.l.b16 %v159
  %v820 = vunpack.c.l.b16 %v160
  %v821 = vunpack.c.l.b16 %v161
  %v822 = vunpack.c.l.b16 %v162
  %v823 = vunpack.c.l.b16 %v163
  %v824 = vunpack.c.l.b16 %v164
  %v825 = vunpack.c.l.b16 %v165
  %v826 = vunpack.c.l.b16 %v166
  %v827 = vunpack.c.l.b16 %v167
  %v828 = vunpack.c.l.b16 %v168
  %v829 = vunpack.c.l.b16 %v169
  %v830 = vunpack.c.l.b16 %v170
  %v831 = vunpack.c.l.b16 %v171
  %v832 = vunpack.c.l.b16 %v172
  %v833 = vunpack.c.l.b16 %v173
  %v834 = vunpack.c.l.b16 %v174
  %v835 = vunpack.c.l.b16 %v175
  %v836 = vunpack.c.l.b16 %v176
  %v837 = vunpack.c.l.b16 %v177
  %v838 = vunpack.c.l.b16 %v178
  %v839 = vunpack.c.l.b16 %v179
  %v840 = vunpack.c.l.b16 %v180
  %v841 = vunpack.c.l.b16 %v181
  %v842 = vunpack.c.l.b16 %v182
  %v843 = vunpack.c.l.b16 %v183
  %v844 = vunpack.c.l.b16 %v184
  %v845 = vunpack.c.l.b16 %v185
  %v846 = vunpack.c.l.b16 %v186
  %v847 = vunpack.c.l.b16 %v187
  %v848 = vunpack.c.l.b16 %v188
  %v849 = vunpack.c.l.b16 %v189
  %v850 = vunpack.c.l.b16 %v190
  %v851 = vunpack.c.l.b16 %v191
  %v852 = vunpack.c.l.b16 %v192
  %v853 = vunpack.c.l.b16 %v193
  %v854 = vunpack.c.l.b16 %v194
  %v855 = vunpack.c.l.b16 %v195
  %v856 = vunpack.c.l.b16 %v196
  %v857 = vunpack.c.l.b16 %v197
  %v858 = vunpack.c.l.b16 %v198
  %v859 = vunpack.c.l.b16 %v199
  %v860 = vunpack.c.l.b16 %v200
  %v861 = vunpack.c.l.b16 %v201
  %v862 = vunpack.c.l.b16 %v202
  %v863 = vunpack.c.l.b16 %v203
  %v864 = vunpack.c.l.b16 %v204
  %v865 = vunpack.c.l.b16 %v205
  %v866 = vunpack.c.l.b16 %v206
  %v867 = vunpack.c.l.b16 %v207
  %v868 = vunpack.c.l.b16 %v208
  %v869 = vunpack.c.l.b16 %v209
  %v870 = vunpack.c.l.b16 %v210
  %v871 = vunpack.c.l.b16 %v211
  %v872 = vunpack.c.l.b16 %v212
  %v873 = vunpack.c.l.b16 %v213
  %v874 = vunpack.c.l.b16 %v214
  %v875 = vunpack.c.l.b16 %v215
  %v876 = vunpack.c.l.b16 %v216
  %v877 = vunpack.c.l.b16 %v217
  %v878 = vunpack.c.l.b16 %v218
  %v879 = vunpack.c.l.b16 %v219
  %v880 = vunpack.c.l.b16 %v220
  %v881 = vunpack.c.l.b16 %v221
  %v882 = vunpack.c.l.b16 %v222
  %v883 = vunpack.c.l.b16 %v223
  %v884 = vunpack.c.l.b16 %v224
  %v885 = vunpack.c.l.b16 %v225
  %v886 = vunpack.c.l.b16 %v226
  %v887 = vunpack.c.l.b16 %v227
  %v888 = vunpack.c.l.b16 %v228
  %v889 = vunpack.c.l.b16 %v229
  %v890 = vunpack.c.l.b16 %v230
  %v891 = vunpack.c.l.b16 %v231
  %v892 = vunpack.c.l.b16 %v232
  %v893 = vunpack.c.l.b16 %v233
  %v894 = vunpack.c.l.b16 %v234
  %v895 = vunpack.c.l.b16 %v235
  %v896 = vunpack.c.l.b16 %v236
  %v897 = vunpack.c.l.b16 %v237
  %v898 = vpack.c.b16 %v755, %v754
  %v899 = vpack.c.b16 %v757, %v756
  %v900 = vpack.c.b16 %v759, %v758
  %v901 = vpack.c.b16 %v761, %v760
  %v902 = vpack.c.b16 %v763, %v762
  %v903 = vpack.c.b16 %v765, %v764
  %v904 = vpack.c.b16 %v767, %v766
  %v905 = vpack.c.b16 %v769, %v768
  %v906 = vpack.c.b16 %v771, %v770
  %v907 = vpack.c.b16 %v773, %v772
  %v908 = vpack.c.b16 %v775, %v774
  %v909 = vpack.c.b16 %v777, %v776
  %v910 = vpack.c.b16 %v779, %v778
  %v911 = vpack.c.b16 %v781, %v780
  %v912 = vpack.c.b16 %v783, %v782
  %v913 = vpack.c.b16 %v785, %v784
  %v914 = vpack.c.b16 %v787, %v786
  %v915 = vpack.c.b16 %v789, %v788
  %v916 = vpack.c.b16 %v791, %v790
  %v917 = vpack.c.b16 %v793, %v792
  %v918 = vpack.c.b16 %v795, %v794
  %v919 = vpack.c.b16 %v797, %v796
  %v920 = vpack.c.b16 %v799, %v798
  %v921 = vpack.c.b16 %v801, %v800
  %v922 = vpack.c.b16 %v803, %v802
  %v923 = vpack.c.b16 %v805, %v804
  %v924 = vpack.c.b16 %v807, %v806
  %v925 = vpack.c.b16 %v809, %v808
  %v926 = vpack.c.b16 %v811, %v810
  %v927 = vpack.c.b16 %v813, %v812
  %v928 = vpack.c.b16 %v815, %v814
  %v929 = vpack.c.b16 %v817, %v816
  %v930 = vpack.c.b16 %v819, %v818
  %v931 = vpack.c.b16 %v821, %v820
  %v932 = vpack.c.b16 %v823, %v822
  %v933 = vpack.c.b16 %v825, %v824
  %v934 = vpack.c.b16 %v827, %v826
  %v935 = vpack.c.b16 %v829, %v828
  %v936 = vpack.c.b16 %v831, %v830
  %v937 = vpack.c.b16 %v833, %v832
  %v938 = vpack.c.b16 %v835, %v834
  %v939 = vpack.c.b16 %v837, %v836
  %v940 = vpack.c.b16 %v839, %v838
  %v941 = vpack.c.b16 %v841, %v840
  %v942 = vpack.c.b16 %v843, %v842
  %v943 = vpack.c.b16 %v845, %v844
  %v944 = vpack.c.b16 %v847, %v846
  %v945 = vpack.c.b16 %v849, %v848
  %v946 = vpack.c.b16 %v851, %v850
  %v947 = vpack.c.b16 %v853, %v852
  %v948 = vpack.c.b16 %v855, %v854
  %v949 = vpack.c.b16 %v857, %v856
  %v950 = vpack.c.b16 %v859, %v858
  %v951 = vpack.c.b16 %v861, %v860
  %v952 = vpack.c.b16 %v863, %v862
  %v953 = vpack.c.b16 %v865, %v864
  %v954 = vpack.c.b16 %v867, %v866
  %v955 = vpack.c.b16 %v869, %v868
  %v956 = vpack.c.b16 %v871, %v870
  %v957 = vpack.c.b16 %v873, %v872
  %v958 = vpack.c.b16 %v875, %v874
  %v959 = vpack.c.b16 %v877, %v876
  %v960 = vpack.c.b16 %v879, %v878
  %v961 = vpack.c.b16 %v881, %v880
  %v962 = vpack.c.b16 %v883, %v882
  %v963 = vpack.c.b16 %v885, %v884
  %v964 = vpack.c.b16 %v887, %v886
  %v965 = vpack.c.b16 %v889, %v888
  %v966 = vpack.c.b16 %v891, %v890
  %v967 = vpack.c.b16 %v893, %v892
  %v968 = vpack.c.b16 %v895, %v894
  %v969 = vpack.c.b16 %v897, %v896
  %1042 = vmatpush.bf16.msra.mxu0 %v905
  %1043 = vmatpush.bf16.msra.mxu0 %v904
  %1044 = vmatpush.bf16.msra.mxu0 %v903
  %1045 = vmatpush.bf16.msra.mxu0 %v902
  %1046 = vmatpush.bf16.msra.mxu0 %v901
  %1047 = vmatpush.bf16.msra.mxu0 %v900
  %1048 = vmatpush.bf16.msra.mxu0 %v899
  %1049 = vmatpush.bf16.msra.mxu0 %v898
  %1050 = vmatmul.bf16.gmra.mxu0 %v466
  %v1051 = vpop.f32.mrf.mxu0
  %v1052 = vadd.f32 %v240, %v1051
  %v1053 = vpop.f32.mrf.mxu0
  %v1054 = vadd.f32 %v240, %v1053
  %1055 = vmatmul.bf16.gmra.mxu0 %v475
  %v1056 = vpop.f32.mrf.mxu0
  %v1057 = vadd.f32 %v240, %v1056
  %v1058 = vpop.f32.mrf.mxu0
  %v1059 = vadd.f32 %v240, %v1058
  %1060 = vmatmul.bf16.gmra.mxu0 %v484
  %v1061 = vpop.f32.mrf.mxu0
  %v1062 = vadd.f32 %v240, %v1061
  %v1063 = vpop.f32.mrf.mxu0
  %v1064 = vadd.f32 %v240, %v1063
  %1065 = vmatmul.bf16.gmra.mxu0 %v493
  %v1066 = vpop.f32.mrf.mxu0
  %v1067 = vadd.f32 %v240, %v1066
  %v1068 = vpop.f32.mrf.mxu0
  %v1069 = vadd.f32 %v240, %v1068
  %1070 = vmatmul.bf16.gmra.mxu0 %v502
  %v1071 = vpop.f32.mrf.mxu0
  %v1072 = vadd.f32 %v240, %v1071
  %v1073 = vpop.f32.mrf.mxu0
  %v1074 = vadd.f32 %v240, %v1073
  %1075 = vmatmul.bf16.gmra.mxu0 %v511
  %v1076 = vpop.f32.mrf.mxu0
  %v1077 = vadd.f32 %v240, %v1076
  %v1078 = vpop.f32.mrf.mxu0
  %v1079 = vadd.f32 %v240, %v1078
  %1080 = vmatmul.bf16.gmra.mxu0 %v520
  %v1081 = vpop.f32.mrf.mxu0
  %v1082 = vadd.f32 %v240, %v1081
  %v1083 = vpop.f32.mrf.mxu0
  %v1084 = vadd.f32 %v240, %v1083
  %1085 = vmatmul.bf16.gmra.mxu0 %v529
  %v1086 = vpop.f32.mrf.mxu0
  %v1087 = vadd.f32 %v240, %v1086
  %v1088 = vpop.f32.mrf.mxu0
  %v1089 = vadd.f32 %v240, %v1088
  %1090 = vdwg.mxu0
  %1091 = vmatpush.bf16.msra.mxu0 %v913
  %1092 = vmatpush.bf16.msra.mxu0 %v912
  %1093 = vmatpush.bf16.msra.mxu0 %v911
  %1094 = vmatpush.bf16.msra.mxu0 %v910
  %1095 = vmatpush.bf16.msra.mxu0 %v909
  %1096 = vmatpush.bf16.msra.mxu0 %v908
  %1097 = vmatpush.bf16.msra.mxu0 %v907
  %1098 = vmatpush.bf16.msra.mxu0 %v906
  %1099 = vmatmul.bf16.gmra.mxu0 %v467
  %v1100 = vpop.f32.mrf.mxu0
  %v1101 = vadd.f32 %v1052, %v1100
  %v1102 = vpop.f32.mrf.mxu0
  %v1103 = vadd.f32 %v1054, %v1102
  %1104 = vmatmul.bf16.gmra.mxu0 %v476
  %v1105 = vpop.f32.mrf.mxu0
  %v1106 = vadd.f32 %v1057, %v1105
  %v1107 = vpop.f32.mrf.mxu0
  %v1108 = vadd.f32 %v1059, %v1107
  %1109 = vmatmul.bf16.gmra.mxu0 %v485
  %v1110 = vpop.f32.mrf.mxu0
  %v1111 = vadd.f32 %v1062, %v1110
  %v1112 = vpop.f32.mrf.mxu0
  %v1113 = vadd.f32 %v1064, %v1112
  %1114 = vmatmul.bf16.gmra.mxu0 %v494
  %v1115 = vpop.f32.mrf.mxu0
  %v1116 = vadd.f32 %v1067, %v1115
  %v1117 = vpop.f32.mrf.mxu0
  %v1118 = vadd.f32 %v1069, %v1117
  %1119 = vmatmul.bf16.gmra.mxu0 %v503
  %v1120 = vpop.f32.mrf.mxu0
  %v1121 = vadd.f32 %v1072, %v1120
  %v1122 = vpop.f32.mrf.mxu0
  %v1123 = vadd.f32 %v1074, %v1122
  %1124 = vmatmul.bf16.gmra.mxu0 %v512
  %v1125 = vpop.f32.mrf.mxu0
  %v1126 = vadd.f32 %v1077, %v1125
  %v1127 = vpop.f32.mrf.mxu0
  %v1128 = vadd.f32 %v1079, %v1127
  %1129 = vmatmul.bf16.gmra.mxu0 %v521
  %v1130 = vpop.f32.mrf.mxu0
  %v1131 = vadd.f32 %v1082, %v1130
  %v1132 = vpop.f32.mrf.mxu0
  %v1133 = vadd.f32 %v1084, %v1132
  %1134 = vmatmul.bf16.gmra.mxu0 %v530
  %v1135 = vpop.f32.mrf.mxu0
  %v1136 = vadd.f32 %v1087, %v1135
  %v1137 = vpop.f32.mrf.mxu0
  %v1138 = vadd.f32 %v1089, %v1137
  %1139 = vdwg.mxu0
  %1140 = vmatpush.bf16.msra.mxu0 %v921
  %1141 = vmatpush.bf16.msra.mxu0 %v920
  %1142 = vmatpush.bf16.msra.mxu0 %v919
  %1143 = vmatpush.bf16.msra.mxu0 %v918
  %1144 = vmatpush.bf16.msra.mxu0 %v917
  %1145 = vmatpush.bf16.msra.mxu0 %v916
  %1146 = vmatpush.bf16.msra.mxu0 %v915
  %1147 = vmatpush.bf16.msra.mxu0 %v914
  %1148 = vmatmul.bf16.gmra.mxu0 %v468
  %v1149 = vpop.f32.mrf.mxu0
  %v1150 = vadd.f32 %v1101, %v1149
  %v1151 = vpop.f32.mrf.mxu0
  %v1152 = vadd.f32 %v1103, %v1151
  %1153 = vmatmul.bf16.gmra.mxu0 %v477
  %v1154 = vpop.f32.mrf.mxu0
  %v1155 = vadd.f32 %v1106, %v1154
  %v1156 = vpop.f32.mrf.mxu0
  %v1157 = vadd.f32 %v1108, %v1156
  %1158 = vmatmul.bf16.gmra.mxu0 %v486
  %v1159 = vpop.f32.mrf.mxu0
  %v1160 = vadd.f32 %v1111, %v1159
  %v1161 = vpop.f32.mrf.mxu0
  %v1162 = vadd.f32 %v1113, %v1161
  %1163 = vmatmul.bf16.gmra.mxu0 %v495
  %v1164 = vpop.f32.mrf.mxu0
  %v1165 = vadd.f32 %v1116, %v1164
  %v1166 = vpop.f32.mrf.mxu0
  %v1167 = vadd.f32 %v1118, %v1166
  %1168 = vmatmul.bf16.gmra.mxu0 %v504
  %v1169 = vpop.f32.mrf.mxu0
  %v1170 = vadd.f32 %v1121, %v1169
  %v1171 = vpop.f32.mrf.mxu0
  %v1172 = vadd.f32 %v1123, %v1171
  %1173 = vmatmul.bf16.gmra.mxu0 %v513
  %v1174 = vpop.f32.mrf.mxu0
  %v1175 = vadd.f32 %v1126, %v1174
  %v1176 = vpop.f32.mrf.mxu0
  %v1177 = vadd.f32 %v1128, %v1176
  %1178 = vmatmul.bf16.gmra.mxu0 %v522
  %v1179 = vpop.f32.mrf.mxu0
  %v1180 = vadd.f32 %v1131, %v1179
  %v1181 = vpop.f32.mrf.mxu0
  %v1182 = vadd.f32 %v1133, %v1181
  %1183 = vmatmul.bf16.gmra.mxu0 %v531
  %v1184 = vpop.f32.mrf.mxu0
  %v1185 = vadd.f32 %v1136, %v1184
  %v1186 = vpop.f32.mrf.mxu0
  %v1187 = vadd.f32 %v1138, %v1186
  %1188 = vdwg.mxu0
  %1189 = vmatpush.bf16.msra.mxu0 %v929
  %1190 = vmatpush.bf16.msra.mxu0 %v928
  %1191 = vmatpush.bf16.msra.mxu0 %v927
  %1192 = vmatpush.bf16.msra.mxu0 %v926
  %1193 = vmatpush.bf16.msra.mxu0 %v925
  %1194 = vmatpush.bf16.msra.mxu0 %v924
  %1195 = vmatpush.bf16.msra.mxu0 %v923
  %1196 = vmatpush.bf16.msra.mxu0 %v922
  %1197 = vmatmul.bf16.gmra.mxu0 %v469
  %v1198 = vpop.f32.mrf.mxu0
  %v1199 = vadd.f32 %v1150, %v1198
  %v1200 = vpop.f32.mrf.mxu0
  %v1201 = vadd.f32 %v1152, %v1200
  %1202 = vmatmul.bf16.gmra.mxu0 %v478
  %v1203 = vpop.f32.mrf.mxu0
  %v1204 = vadd.f32 %v1155, %v1203
  %v1205 = vpop.f32.mrf.mxu0
  %v1206 = vadd.f32 %v1157, %v1205
  %1207 = vmatmul.bf16.gmra.mxu0 %v487
  %v1208 = vpop.f32.mrf.mxu0
  %v1209 = vadd.f32 %v1160, %v1208
  %v1210 = vpop.f32.mrf.mxu0
  %v1211 = vadd.f32 %v1162, %v1210
  %1212 = vmatmul.bf16.gmra.mxu0 %v496
  %v1213 = vpop.f32.mrf.mxu0
  %v1214 = vadd.f32 %v1165, %v1213
  %v1215 = vpop.f32.mrf.mxu0
  %v1216 = vadd.f32 %v1167, %v1215
  %1217 = vmatmul.bf16.gmra.mxu0 %v505
  %v1218 = vpop.f32.mrf.mxu0
  %v1219 = vadd.f32 %v1170, %v1218
  %v1220 = vpop.f32.mrf.mxu0
  %v1221 = vadd.f32 %v1172, %v1220
  %1222 = vmatmul.bf16.gmra.mxu0 %v514
  %v1223 = vpop.f32.mrf.mxu0
  %v1224 = vadd.f32 %v1175, %v1223
  %v1225 = vpop.f32.mrf.mxu0
  %v1226 = vadd.f32 %v1177, %v1225
  %1227 = vmatmul.bf16.gmra.mxu0 %v523
  %v1228 = vpop.f32.mrf.mxu0
  %v1229 = vadd.f32 %v1180, %v1228
  %v1230 = vpop.f32.mrf.mxu0
  %v1231 = vadd.f32 %v1182, %v1230
  %1232 = vmatmul.bf16.gmra.mxu0 %v532
  %v1233 = vpop.f32.mrf.mxu0
  %v1234 = vadd.f32 %v1185, %v1233
  %v1235 = vpop.f32.mrf.mxu0
  %v1236 = vadd.f32 %v1187, %v1235
  %1237 = vdwg.mxu0
  %1238 = vmatpush.bf16.msra.mxu0 %v937
  %1239 = vmatpush.bf16.msra.mxu0 %v936
  %1240 = vmatpush.bf16.msra.mxu0 %v935
  %1241 = vmatpush.bf16.msra.mxu0 %v934
  %1242 = vmatpush.bf16.msra.mxu0 %v933
  %1243 = vmatpush.bf16.msra.mxu0 %v932
  %1244 = vmatpush.bf16.msra.mxu0 %v931
  %1245 = vmatpush.bf16.msra.mxu0 %v930
  %1246 = vmatmul.bf16.gmra.mxu0 %v470
  %v1247 = vpop.f32.mrf.mxu0
  %v1248 = vadd.f32 %v1199, %v1247
  %v1249 = vpop.f32.mrf.mxu0
  %v1250 = vadd.f32 %v1201, %v1249
  %1251 = vmatmul.bf16.gmra.mxu0 %v479
  %v1252 = vpop.f32.mrf.mxu0
  %v1253 = vadd.f32 %v1204, %v1252
  %v1254 = vpop.f32.mrf.mxu0
  %v1255 = vadd.f32 %v1206, %v1254
  %1256 = vmatmul.bf16.gmra.mxu0 %v488
  %v1257 = vpop.f32.mrf.mxu0
  %v1258 = vadd.f32 %v1209, %v1257
  %v1259 = vpop.f32.mrf.mxu0
  %v1260 = vadd.f32 %v1211, %v1259
  %1261 = vmatmul.bf16.gmra.mxu0 %v497
  %v1262 = vpop.f32.mrf.mxu0
  %v1263 = vadd.f32 %v1214, %v1262
  %v1264 = vpop.f32.mrf.mxu0
  %v1265 = vadd.f32 %v1216, %v1264
  %1266 = vmatmul.bf16.gmra.mxu0 %v506
  %v1267 = vpop.f32.mrf.mxu0
  %v1268 = vadd.f32 %v1219, %v1267
  %v1269 = vpop.f32.mrf.mxu0
  %v1270 = vadd.f32 %v1221, %v1269
  %1271 = vmatmul.bf16.gmra.mxu0 %v515
  %v1272 = vpop.f32.mrf.mxu0
  %v1273 = vadd.f32 %v1224, %v1272
  %v1274 = vpop.f32.mrf.mxu0
  %v1275 = vadd.f32 %v1226, %v1274
  %1276 = vmatmul.bf16.gmra.mxu0 %v524
  %v1277 = vpop.f32.mrf.mxu0
  %v1278 = vadd.f32 %v1229, %v1277
  %v1279 = vpop.f32.mrf.mxu0
  %v1280 = vadd.f32 %v1231, %v1279
  %1281 = vmatmul.bf16.gmra.mxu0 %v533
  %v1282 = vpop.f32.mrf.mxu0
  %v1283 = vadd.f32 %v1234, %v1282
  %v1284 = vpop.f32.mrf.mxu0
  %v1285 = vadd.f32 %v1236, %v1284
  %1286 = vdwg.mxu0
  %1287 = vmatpush.bf16.msra.mxu0 %v945
  %1288 = vmatpush.bf16.msra.mxu0 %v944
  %1289 = vmatpush.bf16.msra.mxu0 %v943
  %1290 = vmatpush.bf16.msra.mxu0 %v942
  %1291 = vmatpush.bf16.msra.mxu0 %v941
  %1292 = vmatpush.bf16.msra.mxu0 %v940
  %1293 = vmatpush.bf16.msra.mxu0 %v939
  %1294 = vmatpush.bf16.msra.mxu0 %v938
  %1295 = vmatmul.bf16.gmra.mxu0 %v471
  %v1296 = vpop.f32.mrf.mxu0
  %v1297 = vadd.f32 %v1248, %v1296
  %v1298 = vpop.f32.mrf.mxu0
  %v1299 = vadd.f32 %v1250, %v1298
  %1300 = vmatmul.bf16.gmra.mxu0 %v480
  %v1301 = vpop.f32.mrf.mxu0
  %v1302 = vadd.f32 %v1253, %v1301
  %v1303 = vpop.f32.mrf.mxu0
  %v1304 = vadd.f32 %v1255, %v1303
  %1305 = vmatmul.bf16.gmra.mxu0 %v489
  %v1306 = vpop.f32.mrf.mxu0
  %v1307 = vadd.f32 %v1258, %v1306
  %v1308 = vpop.f32.mrf.mxu0
  %v1309 = vadd.f32 %v1260, %v1308
  %1310 = vmatmul.bf16.gmra.mxu0 %v498
  %v1311 = vpop.f32.mrf.mxu0
  %v1312 = vadd.f32 %v1263, %v1311
  %v1313 = vpop.f32.mrf.mxu0
  %v1314 = vadd.f32 %v1265, %v1313
  %1315 = vmatmul.bf16.gmra.mxu0 %v507
  %v1316 = vpop.f32.mrf.mxu0
  %v1317 = vadd.f32 %v1268, %v1316
  %v1318 = vpop.f32.mrf.mxu0
  %v1319 = vadd.f32 %v1270, %v1318
  %1320 = vmatmul.bf16.gmra.mxu0 %v516
  %v1321 = vpop.f32.mrf.mxu0
  %v1322 = vadd.f32 %v1273, %v1321
  %v1323 = vpop.f32.mrf.mxu0
  %v1324 = vadd.f32 %v1275, %v1323
  %1325 = vmatmul.bf16.gmra.mxu0 %v525
  %v1326 = vpop.f32.mrf.mxu0
  %v1327 = vadd.f32 %v1278, %v1326
  %v1328 = vpop.f32.mrf.mxu0
  %v1329 = vadd.f32 %v1280, %v1328
  %1330 = vmatmul.bf16.gmra.mxu0 %v534
  %v1331 = vpop.f32.mrf.mxu0
  %v1332 = vadd.f32 %v1283, %v1331
  %v1333 = vpop.f32.mrf.mxu0
  %v1334 = vadd.f32 %v1285, %v1333
  %1335 = vdwg.mxu0
  %1336 = vmatpush.bf16.msra.mxu0 %v953
  %1337 = vmatpush.bf16.msra.mxu0 %v952
  %1338 = vmatpush.bf16.msra.mxu0 %v951
  %1339 = vmatpush.bf16.msra.mxu0 %v950
  %1340 = vmatpush.bf16.msra.mxu0 %v949
  %1341 = vmatpush.bf16.msra.mxu0 %v948
  %1342 = vmatpush.bf16.msra.mxu0 %v947
  %1343 = vmatpush.bf16.msra.mxu0 %v946
  %1344 = vmatmul.bf16.gmra.mxu0 %v472
  %v1345 = vpop.f32.mrf.mxu0
  %v1346 = vadd.f32 %v1297, %v1345
  %v1347 = vpop.f32.mrf.mxu0
  %v1348 = vadd.f32 %v1299, %v1347
  %1349 = vmatmul.bf16.gmra.mxu0 %v481
  %v1350 = vpop.f32.mrf.mxu0
  %v1351 = vadd.f32 %v1302, %v1350
  %v1352 = vpop.f32.mrf.mxu0
  %v1353 = vadd.f32 %v1304, %v1352
  %1354 = vmatmul.bf16.gmra.mxu0 %v490
  %v1355 = vpop.f32.mrf.mxu0
  %v1356 = vadd.f32 %v1307, %v1355
  %v1357 = vpop.f32.mrf.mxu0
  %v1358 = vadd.f32 %v1309, %v1357
  %1359 = vmatmul.bf16.gmra.mxu0 %v499
  %v1360 = vpop.f32.mrf.mxu0
  %v1361 = vadd.f32 %v1312, %v1360
  %v1362 = vpop.f32.mrf.mxu0
  %v1363 = vadd.f32 %v1314, %v1362
  %1364 = vmatmul.bf16.gmra.mxu0 %v508
  %v1365 = vpop.f32.mrf.mxu0
  %v1366 = vadd.f32 %v1317, %v1365
  %v1367 = vpop.f32.mrf.mxu0
  %v1368 = vadd.f32 %v1319, %v1367
  %1369 = vmatmul.bf16.gmra.mxu0 %v517
  %v1370 = vpop.f32.mrf.mxu0
  %v1371 = vadd.f32 %v1322, %v1370
  %v1372 = vpop.f32.mrf.mxu0
  %v1373 = vadd.f32 %v1324, %v1372
  %1374 = vmatmul.bf16.gmra.mxu0 %v526
  %v1375 = vpop.f32.mrf.mxu0
  %v1376 = vadd.f32 %v1327, %v1375
  %v1377 = vpop.f32.mrf.mxu0
  %v1378 = vadd.f32 %v1329, %v1377
  %1379 = vmatmul.bf16.gmra.mxu0 %v535
  %v1380 = vpop.f32.mrf.mxu0
  %v1381 = vadd.f32 %v1332, %v1380
  %v1382 = vpop.f32.mrf.mxu0
  %v1383 = vadd.f32 %v1334, %v1382
  %1384 = vdwg.mxu0
  %1385 = vmatpush.bf16.msra.mxu0 %v961
  %1386 = vmatpush.bf16.msra.mxu0 %v960
  %1387 = vmatpush.bf16.msra.mxu0 %v959
  %1388 = vmatpush.bf16.msra.mxu0 %v958
  %1389 = vmatpush.bf16.msra.mxu0 %v957
  %1390 = vmatpush.bf16.msra.mxu0 %v956
  %1391 = vmatpush.bf16.msra.mxu0 %v955
  %1392 = vmatpush.bf16.msra.mxu0 %v954
  %1393 = vmatmul.bf16.gmra.mxu0 %v473
  %v1394 = vpop.f32.mrf.mxu0
  %v1395 = vadd.f32 %v1346, %v1394
  %v1396 = vpop.f32.mrf.mxu0
  %v1397 = vadd.f32 %v1348, %v1396
  %1398 = vmatmul.bf16.gmra.mxu0 %v482
  %v1399 = vpop.f32.mrf.mxu0
  %v1400 = vadd.f32 %v1351, %v1399
  %v1401 = vpop.f32.mrf.mxu0
  %v1402 = vadd.f32 %v1353, %v1401
  %1403 = vmatmul.bf16.gmra.mxu0 %v491
  %v1404 = vpop.f32.mrf.mxu0
  %v1405 = vadd.f32 %v1356, %v1404
  %v1406 = vpop.f32.mrf.mxu0
  %v1407 = vadd.f32 %v1358, %v1406
  %1408 = vmatmul.bf16.gmra.mxu0 %v500
  %v1409 = vpop.f32.mrf.mxu0
  %v1410 = vadd.f32 %v1361, %v1409
  %v1411 = vpop.f32.mrf.mxu0
  %v1412 = vadd.f32 %v1363, %v1411
  %1413 = vmatmul.bf16.gmra.mxu0 %v509
  %v1414 = vpop.f32.mrf.mxu0
  %v1415 = vadd.f32 %v1366, %v1414
  %v1416 = vpop.f32.mrf.mxu0
  %v1417 = vadd.f32 %v1368, %v1416
  %1418 = vmatmul.bf16.gmra.mxu0 %v518
  %v1419 = vpop.f32.mrf.mxu0
  %v1420 = vadd.f32 %v1371, %v1419
  %v1421 = vpop.f32.mrf.mxu0
  %v1422 = vadd.f32 %v1373, %v1421
  %1423 = vmatmul.bf16.gmra.mxu0 %v527
  %v1424 = vpop.f32.mrf.mxu0
  %v1425 = vadd.f32 %v1376, %v1424
  %v1426 = vpop.f32.mrf.mxu0
  %v1427 = vadd.f32 %v1378, %v1426
  %1428 = vmatmul.bf16.gmra.mxu0 %v536
  %v1429 = vpop.f32.mrf.mxu0
  %v1430 = vadd.f32 %v1381, %v1429
  %v1431 = vpop.f32.mrf.mxu0
  %v1432 = vadd.f32 %v1383, %v1431
  %1433 = vdwg.mxu0
  %1434 = vmatpush.bf16.msra.mxu0 %v969
  %1435 = vmatpush.bf16.msra.mxu0 %v968
  %1436 = vmatpush.bf16.msra.mxu0 %v967
  %1437 = vmatpush.bf16.msra.mxu0 %v966
  %1438 = vmatpush.bf16.msra.mxu0 %v965
  %1439 = vmatpush.bf16.msra.mxu0 %v964
  %1440 = vmatpush.bf16.msra.mxu0 %v963
  %1441 = vmatpush.bf16.msra.mxu0 %v962
  %1442 = vmatmul.bf16.gmra.mxu0 %v474
  %v1443 = vpop.f32.mrf.mxu0
  %v1444 = vadd.f32 %v1395, %v1443
  %v1445 = vpop.f32.mrf.mxu0
  %v1446 = vadd.f32 %v1397, %v1445
  %1447 = vmatmul.bf16.gmra.mxu0 %v483
  %v1448 = vpop.f32.mrf.mxu0
  %v1449 = vadd.f32 %v1400, %v1448
  %v1450 = vpop.f32.mrf.mxu0
  %v1451 = vadd.f32 %v1402, %v1450
  %1452 = vmatmul.bf16.gmra.mxu0 %v492
  %v1453 = vpop.f32.mrf.mxu0
  %v1454 = vadd.f32 %v1405, %v1453
  %v1455 = vpop.f32.mrf.mxu0
  %v1456 = vadd.f32 %v1407, %v1455
  %1457 = vmatmul.bf16.gmra.mxu0 %v501
  %v1458 = vpop.f32.mrf.mxu0
  %v1459 = vadd.f32 %v1410, %v1458
  %v1460 = vpop.f32.mrf.mxu0
  %v1461 = vadd.f32 %v1412, %v1460
  %1462 = vmatmul.bf16.gmra.mxu0 %v510
  %v1463 = vpop.f32.mrf.mxu0
  %v1464 = vadd.f32 %v1415, %v1463
  %v1465 = vpop.f32.mrf.mxu0
  %v1466 = vadd.f32 %v1417, %v1465
  %1467 = vmatmul.bf16.gmra.mxu0 %v519
  %v1468 = vpop.f32.mrf.mxu0
  %v1469 = vadd.f32 %v1420, %v1468
  %v1470 = vpop.f32.mrf.mxu0
  %v1471 = vadd.f32 %v1422, %v1470
  %1472 = vmatmul.bf16.gmra.mxu0 %v528
  %v1473 = vpop.f32.mrf.mxu0
  %v1474 = vadd.f32 %v1425, %v1473
  %v1475 = vpop.f32.mrf.mxu0
  %v1476 = vadd.f32 %v1427, %v1475
  %1477 = vmatmul.bf16.gmra.mxu0 %v537
  %v1478 = vpop.f32.mrf.mxu0
  %v1479 = vadd.f32 %v1430, %v1478
  %v1480 = vpop.f32.mrf.mxu0
  %v1481 = vadd.f32 %v1432, %v1480
  %1482 = vdwg.mxu0
  %v1483 = vmax.f32 %v1444, 0.0
  %v1484 = vmax.f32 %v1446, 0.0
  %v1485 = vmax.f32 %v1449, 0.0
  %v1486 = vmax.f32 %v1451, 0.0
  %v1487 = vmax.f32 %v1454, 0.0
  %v1488 = vmax.f32 %v1456, 0.0
  %v1489 = vmax.f32 %v1459, 0.0
  %v1490 = vmax.f32 %v1461, 0.0
  %v1491 = vmax.f32 %v1464, 0.0
  %v1492 = vmax.f32 %v1466, 0.0
  %v1493 = vmax.f32 %v1469, 0.0
  %v1494 = vmax.f32 %v1471, 0.0
  %v1495 = vmax.f32 %v1474, 0.0
  %v1496 = vmax.f32 %v1476, 0.0
  %v1497 = vmax.f32 %v1479, 0.0
  %v1498 = vmax.f32 %v1481, 0.0
  %v1499 = vpack.c.bf16 %v1483, %v1483
  %v1500 = vpack.c.bf16 %v1484, %v1484
  %v1501 = vpack.c.bf16 %v1485, %v1485
  %v1502 = vpack.c.bf16 %v1486, %v1486
  %v1503 = vpack.c.bf16 %v1487, %v1487
  %v1504 = vpack.c.bf16 %v1488, %v1488
  %v1505 = vpack.c.bf16 %v1489, %v1489
  %v1506 = vpack.c.bf16 %v1490, %v1490
  %v1507 = vpack.c.bf16 %v1491, %v1491
  %v1508 = vpack.c.bf16 %v1492, %v1492
  %v1509 = vpack.c.bf16 %v1493, %v1493
  %v1510 = vpack.c.bf16 %v1494, %v1494
  %v1511 = vpack.c.bf16 %v1495, %v1495
  %v1512 = vpack.c.bf16 %v1496, %v1496
  %v1513 = vpack.c.bf16 %v1497, %v1497
  %v1514 = vpack.c.bf16 %v1498, %v1498
  %1515 = vst [vmem:[%s3] sm:$0xf] %v1499
  %1516 = vst [vmem:[%s3 + $0x4] sm:$0xf] %v1500
  %1517 = vst [vmem:[%s3 + $0x8] sm:$0xf] %v1501
  %1518 = vst [vmem:[%s3 + $0xc] sm:$0xf] %v1502
  %1519 = vst [vmem:[%s3 + $0x10] sm:$0xf] %v1503
  %1520 = vst [vmem:[%s3 + $0x14] sm:$0xf] %v1504
  %1521 = vst [vmem:[%s3 + $0x18] sm:$0xf] %v1505
  %1522 = vst [vmem:[%s3 + $0x1c] sm:$0xf] %v1506
  %1523 = vst [vmem:[%s3 + $0x20] sm:$0xf] %v1507
  %1524 = vst [vmem:[%s3 + $0x24] sm:$0xf] %v1508
  %1525 = vst [vmem:[%s3 + $0x28] sm:$0xf] %v1509
  %1526 = vst [vmem:[%s3 + $0x2c] sm:$0xf] %v1510
  %1527 = vst [vmem:[%s3 + $0x30] sm:$0xf] %v1511
  %1528 = vst [vmem:[%s3 + $0x34] sm:$0xf] %v1512
  %1529 = vst [vmem:[%s3 + $0x38] sm:$0xf] %v1513
  %1530 = vst [vmem:[%s3 + $0x3c] sm:$0xf] %v1514
  // Predicated region
  $region14: #{ae_forward.11} parent=0 // pred_check
    _
  $region15: #{ae_forward.11} parent=0 // pred_check_branch
    %1532 = sbr.rel (0) target = $region17
  $region16: #{ae_forward.11} parent=0 // pred_region
    _
  $region17: #{ae_forward.11} parent=0 // pred_fallthru
    _
  // Predicated region
  $region18: #{ae_forward.11} parent=0 // pred_check
    _
  $region19: #{ae_forward.11} parent=0 // pred_check_branch
    %1534 = sbr.rel (0) target = $region21
  $region20: #{ae_forward.11} parent=0 // pred_region
    _
  $region21: #{ae_forward.11} parent=0 // pred_fallthru
    _

// kernel: ae_forward.12
$region0: #{ae_forward.12}
  #allocation0 [shape = 'u32[]', space=smem, size = 0x4, offset = 0x4, fixed_abs, tag = 'smem constant byte address 0x4 - core index']
  #allocation1 [shape = 'u32[72,128]{1,0:T(1,128)}', space=vmem, size = 0x9000, scoped, tag = 'internal scratch']
  %s0 = inlined_call_operand.vmem [shape: bf16[32,576], index: 0, kind: input, shape index: {}]
  %s1 = inlined_call_operand.vmem [shape: bf16[576,128], index: 1, kind: input, shape index: {}]
  %s2 = inlined_call_operand.vmem [shape: f32[1,128], index: 2, kind: input, shape index: {}]
  %s3 = inlined_call_operand.vmem [shape: bf16[32,128], index: 3, kind: output, shape index: {}]
  %s4 = sld [smem:[#allocation0]]
  $region22: #{ae_forward.12} parent=0
    _
  %s6 = ssub.s32 1, %s4
  %s7 = scalar_select 0, %s6, %s4
  // Predicated region
  $region2: #{ae_forward.12} parent=0 // pred_check
    _
  $region3: #{ae_forward.12} parent=0 // pred_check_branch
    %9 = sbr.rel (0) target = $region5
  $region4: #{ae_forward.12} parent=0 // pred_region
    _
  $region5: #{ae_forward.12} parent=0 // pred_fallthru
    _
  // Predicated region
  $region6: #{ae_forward.12} parent=0 // pred_check
    _
  $region7: #{ae_forward.12} parent=0 // pred_check_branch
    %11 = sbr.rel (0) target = $region9
  $region8: #{ae_forward.12} parent=0 // pred_region
    _
  $region9: #{ae_forward.12} parent=0 // pred_fallthru
    _
  // Predicated region
  $region10: #{ae_forward.12} parent=0 // pred_check
    _
  $region11: #{ae_forward.12} parent=0 // pred_check_branch
    %13 = sbr.rel (0) target = $region13
  $region12: #{ae_forward.12} parent=0 // pred_region
    _
  $region13: #{ae_forward.12} parent=0 // pred_fallthru
    _
  %v15 = vld [vmem:[%s0] sm:$0xff]
  %v16 = vld [vmem:[%s0 + $0x8] sm:$0xff]
  %v17 = vld [vmem:[%s0 + $0x10] sm:$0xf]
  %v18 = vld [vmem:[%s0 + $0x14] sm:$0xff]
  %v19 = vld [vmem:[%s0 + $0x1c] sm:$0xff]
  %v20 = vld [vmem:[%s0 + $0x24] sm:$0xf]
  %v21 = vld [vmem:[%s0 + $0x28] sm:$0xff]
  %v22 = vld [vmem:[%s0 + $0x30] sm:$0xff]
  %v23 = vld [vmem:[%s0 + $0x38] sm:$0xf]
  %v24 = vld [vmem:[%s0 + $0x3c] sm:$0xff]
  %v25 = vld [vmem:[%s0 + $0x44] sm:$0xff]
  %v26 = vld [vmem:[%s0 + $0x4c] sm:$0xf]
  %v27 = vld [vmem:[%s1] sm:$0xf]
  %v28 = vld [vmem:[%s1 + $0x4] sm:$0xf]
  %v29 = vld [vmem:[%s1 + $0x8] sm:$0xf]
  %v30 = vld [vmem:[%s1 + $0xc] sm:$0xf]
  %v31 = vld [vmem:[%s1 + $0x10] sm:$0xf]
  %v32 = vld [vmem:[%s1 + $0x14] sm:$0xf]
  %v33 = vld [vmem:[%s1 + $0x18] sm:$0xf]
  %v34 = vld [vmem:[%s1 + $0x1c] sm:$0xf]
  %v35 = vld [vmem:[%s1 + $0x20] sm:$0xf]
  %v36 = vld [vmem:[%s1 + $0x24] sm:$0xf]
  %v37 = vld [vmem:[%s1 + $0x28] sm:$0xf]
  %v38 = vld [vmem:[%s1 + $0x2c] sm:$0xf]
  %v39 = vld [vmem:[%s1 + $0x30] sm:$0xf]
  %v40 = vld [vmem:[%s1 + $0x34] sm:$0xf]
  %v41 = vld [vmem:[%s1 + $0x38] sm:$0xf]
  %v42 = vld [vmem:[%s1 + $0x3c] sm:$0xf]
  %v43 = vld [vmem:[%s1 + $0x40] sm:$0xf]
  %v44 = vld [vmem:[%s1 + $0x44] sm:$0xf]
  %v45 = vld [vmem:[%s1 + $0x48] sm:$0xf]
  %v46 = vld [vmem:[%s1 + $0x4c] sm:$0xf]
  %v47 = vld [vmem:[%s1 + $0x50] sm:$0xf]
  %v48 = vld [vmem:[%s1 + $0x54] sm:$0xf]
  %v49 = vld [vmem:[%s1 + $0x58] sm:$0xf]
  %v50 = vld [vmem:[%s1 + $0x5c] sm:$0xf]
  %v51 = vld [vmem:[%s1 + $0x60] sm:$0xf]
  %v52 = vld [vmem:[%s1 + $0x64] sm:$0xf]
  %v53 = vld [vmem:[%s1 + $0x68] sm:$0xf]
  %v54 = vld [vmem:[%s1 + $0x6c] sm:$0xf]
  %v55 = vld [vmem:[%s1 + $0x70] sm:$0xf]
  %v56 = vld [vmem:[%s1 + $0x74] sm:$0xf]
  %v57 = vld [vmem:[%s1 + $0x78] sm:$0xf]
  %v58 = vld [vmem:[%s1 + $0x7c] sm:$0xf]
  %v59 = vld [vmem:[%s1 + $0x80] sm:$0xf]
  %v60 = vld [vmem:[%s1 + $0x84] sm:$0xf]
  %v61 = vld [vmem:[%s1 + $0x88] sm:$0xf]
  %v62 = vld [vmem:[%s1 + $0x8c] sm:$0xf]
  %v63 = vld [vmem:[%s1 + $0x90] sm:$0xf]
  %v64 = vld [vmem:[%s1 + $0x94] sm:$0xf]
  %v65 = vld [vmem:[%s1 + $0x98] sm:$0xf]
  %v66 = vld [vmem:[%s1 + $0x9c] sm:$0xf]
  %v67 = vld [vmem:[%s1 + $0xa0] sm:$0xf]
  %v68 = vld [vmem:[%s1 + $0xa4] sm:$0xf]
  %v69 = vld [vmem:[%s1 + $0xa8] sm:$0xf]
  %v70 = vld [vmem:[%s1 + $0xac] sm:$0xf]
  %v71 = vld [vmem:[%s1 + $0xb0] sm:$0xf]
  %v72 = vld [vmem:[%s1 + $0xb4] sm:$0xf]
  %v73 = vld [vmem:[%s1 + $0xb8] sm:$0xf]
  %v74 = vld [vmem:[%s1 + $0xbc] sm:$0xf]
  %v75 = vld [vmem:[%s1 + $0xc0] sm:$0xf]
  %v76 = vld [vmem:[%s1 + $0xc4] sm:$0xf]
  %v77 = vld [vmem:[%s1 + $0xc8] sm:$0xf]
  %v78 = vld [vmem:[%s1 + $0xcc] sm:$0xf]
  %v79 = vld [vmem:[%s1 + $0xd0] sm:$0xf]
  %v80 = vld [vmem:[%s1 + $0xd4] sm:$0xf]
  %v81 = vld [vmem:[%s1 + $0xd8] sm:$0xf]
  %v82 = vld [vmem:[%s1 + $0xdc] sm:$0xf]
  %v83 = vld [vmem:[%s1 + $0xe0] sm:$0xf]
  %v84 = vld [vmem:[%s1 + $0xe4] sm:$0xf]
  %v85 = vld [vmem:[%s1 + $0xe8] sm:$0xf]
  %v86 = vld [vmem:[%s1 + $0xec] sm:$0xf]
  %v87 = vld [vmem:[%s1 + $0xf0] sm:$0xf]
  %v88 = vld [vmem:[%s1 + $0xf4] sm:$0xf]
  %v89 = vld [vmem:[%s1 + $0xf8] sm:$0xf]
  %v90 = vld [vmem:[%s1 + $0xfc] sm:$0xf]
  %v91 = vld [vmem:[%s1 + $0x100] sm:$0xf]
  %v92 = vld [vmem:[%s1 + $0x104] sm:$0xf]
  %v93 = vld [vmem:[%s1 + $0x108] sm:$0xf]
  %v94 = vld [vmem:[%s1 + $0x10c] sm:$0xf]
  %v95 = vld [vmem:[%s1 + $0x110] sm:$0xf]
  %v96 = vld [vmem:[%s1 + $0x114] sm:$0xf]
  %v97 = vld [vmem:[%s1 + $0x118] sm:$0xf]
  %v98 = vld [vmem:[%s1 + $0x11c] sm:$0xf]
  %v99 = vld [vmem:[%s2] sm:$0x1]
  %v101 = vperm.slane %v99, 0
  %v115 = vunpack.c.l.b16 %v15
  %v116 = vunpack.c.h.b16 %v15
  %v117 = vunpack.c.l.b16 %v16
  %v118 = vunpack.c.h.b16 %v16
  %v119 = vunpack.c.l.b16 %v17
  %v120 = vunpack.c.l.b16 %v18
  %v121 = vunpack.c.h.b16 %v18
  %v122 = vunpack.c.l.b16 %v19
  %v123 = vunpack.c.h.b16 %v19
  %v124 = vunpack.c.l.b16 %v20
  %v125 = vunpack.c.l.b16 %v21
  %v126 = vunpack.c.h.b16 %v21
  %v127 = vunpack.c.l.b16 %v22
  %v128 = vunpack.c.h.b16 %v22
  %v129 = vunpack.c.l.b16 %v23
  %v130 = vunpack.c.l.b16 %v24
  %v131 = vunpack.c.h.b16 %v24
  %v132 = vunpack.c.l.b16 %v25
  %v133 = vunpack.c.h.b16 %v25
  %v134 = vunpack.c.l.b16 %v26
  %v135 = vpack.c.b16 %v120, %v115
  %v136 = vpack.c.b16 %v121, %v116
  %v137 = vpack.c.b16 %v122, %v117
  %v138 = vpack.c.b16 %v123, %v118
  %v139 = vpack.c.b16 %v124, %v119
  %v140 = vpack.c.b16 %v130, %v125
  %v141 = vpack.c.b16 %v131, %v126
  %v142 = vpack.c.b16 %v132, %v127
  %v143 = vpack.c.b16 %v133, %v128
  %v144 = vpack.c.b16 %v134, %v129
  %v225 = vunpack.c.l.b16 %v27
  %v226 = vunpack.c.l.b16 %v28
  %v227 = vunpack.c.l.b16 %v29
  %v228 = vunpack.c.l.b16 %v30
  %v229 = vunpack.c.l.b16 %v31
  %v230 = vunpack.c.l.b16 %v32
  %v231 = vunpack.c.l.b16 %v33
  %v232 = vunpack.c.l.b16 %v34
  %v233 = vunpack.c.l.b16 %v35
  %v234 = vunpack.c.l.b16 %v36
  %v235 = vunpack.c.l.b16 %v37
  %v236 = vunpack.c.l.b16 %v38
  %v237 = vunpack.c.l.b16 %v39
  %v238 = vunpack.c.l.b16 %v40
  %v239 = vunpack.c.l.b16 %v41
  %v240 = vunpack.c.l.b16 %v42
  %v241 = vunpack.c.l.b16 %v43
  %v242 = vunpack.c.l.b16 %v44
  %v243 = vunpack.c.l.b16 %v45
  %v244 = vunpack.c.l.b16 %v46
  %v245 = vunpack.c.l.b16 %v47
  %v246 = vunpack.c.l.b16 %v48
  %v247 = vunpack.c.l.b16 %v49
  %v248 = vunpack.c.l.b16 %v50
  %v249 = vunpack.c.l.b16 %v51
  %v250 = vunpack.c.l.b16 %v52
  %v251 = vunpack.c.l.b16 %v53
  %v252 = vunpack.c.l.b16 %v54
  %v253 = vunpack.c.l.b16 %v55
  %v254 = vunpack.c.l.b16 %v56
  %v255 = vunpack.c.l.b16 %v57
  %v256 = vunpack.c.l.b16 %v58
  %v257 = vunpack.c.l.b16 %v59
  %v258 = vunpack.c.l.b16 %v60
  %v259 = vunpack.c.l.b16 %v61
  %v260 = vunpack.c.l.b16 %v62
  %v261 = vunpack.c.l.b16 %v63
  %v262 = vunpack.c.l.b16 %v64
  %v263 = vunpack.c.l.b16 %v65
  %v264 = vunpack.c.l.b16 %v66
  %v265 = vunpack.c.l.b16 %v67
  %v266 = vunpack.c.l.b16 %v68
  %v267 = vunpack.c.l.b16 %v69
  %v268 = vunpack.c.l.b16 %v70
  %v269 = vunpack.c.l.b16 %v71
  %v270 = vunpack.c.l.b16 %v72
  %v271 = vunpack.c.l.b16 %v73
  %v272 = vunpack.c.l.b16 %v74
  %v273 = vunpack.c.l.b16 %v75
  %v274 = vunpack.c.l.b16 %v76
  %v275 = vunpack.c.l.b16 %v77
  %v276 = vunpack.c.l.b16 %v78
  %v277 = vunpack.c.l.b16 %v79
  %v278 = vunpack.c.l.b16 %v80
  %v279 = vunpack.c.l.b16 %v81
  %v280 = vunpack.c.l.b16 %v82
  %v281 = vunpack.c.l.b16 %v83
  %v282 = vunpack.c.l.b16 %v84
  %v283 = vunpack.c.l.b16 %v85
  %v284 = vunpack.c.l.b16 %v86
  %v285 = vunpack.c.l.b16 %v87
  %v286 = vunpack.c.l.b16 %v88
  %v287 = vunpack.c.l.b16 %v89
  %v288 = vunpack.c.l.b16 %v90
  %v289 = vunpack.c.l.b16 %v91
  %v290 = vunpack.c.l.b16 %v92
  %v291 = vunpack.c.l.b16 %v93
  %v292 = vunpack.c.l.b16 %v94
  %v293 = vunpack.c.l.b16 %v95
  %v294 = vunpack.c.l.b16 %v96
  %v295 = vunpack.c.l.b16 %v97
  %v296 = vunpack.c.l.b16 %v98
  %v297 = vpack.c.b16 %v226, %v225
  %v298 = vpack.c.b16 %v228, %v227
  %v299 = vpack.c.b16 %v230, %v229
  %v300 = vpack.c.b16 %v232, %v231
  %v301 = vpack.c.b16 %v234, %v233
  %v302 = vpack.c.b16 %v236, %v235
  %v303 = vpack.c.b16 %v238, %v237
  %v304 = vpack.c.b16 %v240, %v239
  %v305 = vpack.c.b16 %v242, %v241
  %v306 = vpack.c.b16 %v244, %v243
  %v307 = vpack.c.b16 %v246, %v245
  %v308 = vpack.c.b16 %v248, %v247
  %v309 = vpack.c.b16 %v250, %v249
  %v310 = vpack.c.b16 %v252, %v251
  %v311 = vpack.c.b16 %v254, %v253
  %v312 = vpack.c.b16 %v256, %v255
  %v313 = vpack.c.b16 %v258, %v257
  %v314 = vpack.c.b16 %v260, %v259
  %v315 = vpack.c.b16 %v262, %v261
  %v316 = vpack.c.b16 %v264, %v263
  %v317 = vpack.c.b16 %v266, %v265
  %v318 = vpack.c.b16 %v268, %v267
  %v319 = vpack.c.b16 %v270, %v269
  %v320 = vpack.c.b16 %v272, %v271
  %v321 = vpack.c.b16 %v274, %v273
  %v322 = vpack.c.b16 %v276, %v275
  %v323 = vpack.c.b16 %v278, %v277
  %v324 = vpack.c.b16 %v280, %v279
  %v325 = vpack.c.b16 %v282, %v281
  %v326 = vpack.c.b16 %v284, %v283
  %v327 = vpack.c.b16 %v286, %v285
  %v328 = vpack.c.b16 %v288, %v287
  %v329 = vpack.c.b16 %v290, %v289
  %v330 = vpack.c.b16 %v292, %v291
  %v331 = vpack.c.b16 %v294, %v293
  %v332 = vpack.c.b16 %v296, %v295
  %vm369 = vcmask 523264
  %v371 = vsel %vm369, %v139, 0
  %v374 = vsel %vm369, %v144, 0
  %376 = vmatpush.bf16.msra.mxu0 %v304
  %377 = vmatpush.bf16.msra.mxu0 %v303
  %378 = vmatpush.bf16.msra.mxu0 %v302
  %379 = vmatpush.bf16.msra.mxu0 %v301
  %380 = vmatpush.bf16.msra.mxu0 %v300
  %381 = vmatpush.bf16.msra.mxu0 %v299
  %382 = vmatpush.bf16.msra.mxu0 %v298
  %383 = vmatpush.bf16.msra.mxu0 %v297
  %384 = vmatmul.bf16.gmra.mxu0 %v135
  %v385 = vpop.f32.mrf.mxu0
  %v386 = vadd.f32 %v101, %v385
  %v387 = vpop.f32.mrf.mxu0
  %v388 = vadd.f32 %v101, %v387
  %389 = vmatmul.bf16.gmra.mxu0 %v140
  %v390 = vpop.f32.mrf.mxu0
  %v391 = vadd.f32 %v101, %v390
  %v392 = vpop.f32.mrf.mxu0
  %v393 = vadd.f32 %v101, %v392
  %394 = vdwg.mxu0
  %395 = vmatpush.bf16.msra.mxu0 %v312
  %396 = vmatpush.bf16.msra.mxu0 %v311
  %397 = vmatpush.bf16.msra.mxu0 %v310
  %398 = vmatpush.bf16.msra.mxu0 %v309
  %399 = vmatpush.bf16.msra.mxu0 %v308
  %400 = vmatpush.bf16.msra.mxu0 %v307
  %401 = vmatpush.bf16.msra.mxu0 %v306
  %402 = vmatpush.bf16.msra.mxu0 %v305
  %403 = vmatmul.bf16.gmra.mxu0 %v136
  %v404 = vpop.f32.mrf.mxu0
  %v405 = vadd.f32 %v386, %v404
  %v406 = vpop.f32.mrf.mxu0
  %v407 = vadd.f32 %v388, %v406
  %408 = vmatmul.bf16.gmra.mxu0 %v141
  %v409 = vpop.f32.mrf.mxu0
  %v410 = vadd.f32 %v391, %v409
  %v411 = vpop.f32.mrf.mxu0
  %v412 = vadd.f32 %v393, %v411
  %413 = vdwg.mxu0
  %414 = vmatpush.bf16.msra.mxu0 %v320
  %415 = vmatpush.bf16.msra.mxu0 %v319
  %416 = vmatpush.bf16.msra.mxu0 %v318
  %417 = vmatpush.bf16.msra.mxu0 %v317
  %418 = vmatpush.bf16.msra.mxu0 %v316
  %419 = vmatpush.bf16.msra.mxu0 %v315
  %420 = vmatpush.bf16.msra.mxu0 %v314
  %421 = vmatpush.bf16.msra.mxu0 %v313
  %422 = vmatmul.bf16.gmra.mxu0 %v137
  %v423 = vpop.f32.mrf.mxu0
  %v424 = vadd.f32 %v405, %v423
  %v425 = vpop.f32.mrf.mxu0
  %v426 = vadd.f32 %v407, %v425
  %427 = vmatmul.bf16.gmra.mxu0 %v142
  %v428 = vpop.f32.mrf.mxu0
  %v429 = vadd.f32 %v410, %v428
  %v430 = vpop.f32.mrf.mxu0
  %v431 = vadd.f32 %v412, %v430
  %432 = vdwg.mxu0
  %433 = vmatpush.bf16.msra.mxu0 %v328
  %434 = vmatpush.bf16.msra.mxu0 %v327
  %435 = vmatpush.bf16.msra.mxu0 %v326
  %436 = vmatpush.bf16.msra.mxu0 %v325
  %437 = vmatpush.bf16.msra.mxu0 %v324
  %438 = vmatpush.bf16.msra.mxu0 %v323
  %439 = vmatpush.bf16.msra.mxu0 %v322
  %440 = vmatpush.bf16.msra.mxu0 %v321
  %441 = vmatmul.bf16.gmra.mxu0 %v138
  %v442 = vpop.f32.mrf.mxu0
  %v443 = vadd.f32 %v424, %v442
  %v444 = vpop.f32.mrf.mxu0
  %v445 = vadd.f32 %v426, %v444
  %446 = vmatmul.bf16.gmra.mxu0 %v143
  %v447 = vpop.f32.mrf.mxu0
  %v448 = vadd.f32 %v429, %v447
  %v449 = vpop.f32.mrf.mxu0
  %v450 = vadd.f32 %v431, %v449
  %451 = vdwg.mxu0
  %452 = vmatpush.bf16.msra.mxu0 0
  %453 = vmatpush.bf16.msra.mxu0 0
  %454 = vmatpush.bf16.msra.mxu0 0
  %455 = vmatpush.bf16.msra.mxu0 0
  %456 = vmatpush.bf16.msra.mxu0 %v332
  %457 = vmatpush.bf16.msra.mxu0 %v331
  %458 = vmatpush.bf16.msra.mxu0 %v330
  %459 = vmatpush.bf16.msra.mxu0 %v329
  %460 = vmatmul.bf16.gmra.mxu0 %v371
  %v461 = vpop.f32.mrf.mxu0
  %v462 = vadd.f32 %v443, %v461
  %v463 = vpop.f32.mrf.mxu0
  %v464 = vadd.f32 %v445, %v463
  %465 = vmatmul.bf16.gmra.mxu0 %v374
  %v466 = vpop.f32.mrf.mxu0
  %v467 = vadd.f32 %v448, %v466
  %v468 = vpop.f32.mrf.mxu0
  %v469 = vadd.f32 %v450, %v468
  %470 = vdwg.mxu0
  %v471 = vmax.f32 %v462, 0.0
  %v472 = vmax.f32 %v464, 0.0
  %v473 = vmax.f32 %v467, 0.0
  %v474 = vmax.f32 %v469, 0.0
  %v475 = vpack.c.bf16 %v471, %v471
  %v476 = vpack.c.bf16 %v472, %v472
  %v477 = vpack.c.bf16 %v473, %v473
  %v478 = vpack.c.bf16 %v474, %v474
  %479 = vst [vmem:[%s3] sm:$0xf] %v475
  %480 = vst [vmem:[%s3 + $0x4] sm:$0xf] %v476
  %481 = vst [vmem:[%s3 + $0x8] sm:$0xf] %v477
  %482 = vst [vmem:[%s3 + $0xc] sm:$0xf] %v478
  // Predicated region
  $region14: #{ae_forward.12} parent=0 // pred_check
    _
  $region15: #{ae_forward.12} parent=0 // pred_check_branch
    %484 = sbr.rel (0) target = $region17
  $region16: #{ae_forward.12} parent=0 // pred_region
    _
  $region17: #{ae_forward.12} parent=0 // pred_fallthru
    _
  // Predicated region
  $region18: #{ae_forward.12} parent=0 // pred_check
    _
  $region19: #{ae_forward.12} parent=0 // pred_check_branch
    %486 = sbr.rel (0) target = $region21
  $region20: #{ae_forward.12} parent=0 // pred_region
    _
  $region21: #{ae_forward.12} parent=0 // pred_fallthru
    _

// kernel: ae_forward.14
$region0: #{ae_forward.14}
  #allocation0 [shape = 'u32[]', space=smem, size = 0x4, offset = 0x4, fixed_abs, tag = 'smem constant byte address 0x4 - core index']
  #allocation1 [shape = 'u32[72,128]{1,0:T(1,128)}', space=vmem, size = 0x9000, scoped, tag = 'internal scratch']
  %s0 = inlined_call_operand.vmem [shape: bf16[2,144], index: 0, kind: input, shape index: {}]
  %s1 = inlined_call_operand.vmem [shape: bf16[144,128], index: 1, kind: input, shape index: {}]
  %s2 = inlined_call_operand.vmem [shape: f32[1,128], index: 2, kind: input, shape index: {}]
  %s3 = inlined_call_operand.vmem [shape: bf16[2,128], index: 3, kind: output, shape index: {}]
  %s4 = sld [smem:[#allocation0]]
  $region22: #{ae_forward.14} parent=0
    _
  %s6 = ssub.s32 1, %s4
  %s7 = scalar_select 0, %s6, %s4
  // Predicated region
  $region2: #{ae_forward.14} parent=0 // pred_check
    _
  $region3: #{ae_forward.14} parent=0 // pred_check_branch
    %9 = sbr.rel (0) target = $region5
  $region4: #{ae_forward.14} parent=0 // pred_region
    _
  $region5: #{ae_forward.14} parent=0 // pred_fallthru
    _
  // Predicated region
  $region6: #{ae_forward.14} parent=0 // pred_check
    _
  $region7: #{ae_forward.14} parent=0 // pred_check_branch
    %11 = sbr.rel (0) target = $region9
  $region8: #{ae_forward.14} parent=0 // pred_region
    _
  $region9: #{ae_forward.14} parent=0 // pred_fallthru
    _
  // Predicated region
  $region10: #{ae_forward.14} parent=0 // pred_check
    _
  $region11: #{ae_forward.14} parent=0 // pred_check_branch
    %13 = sbr.rel (0) target = $region13
  $region12: #{ae_forward.14} parent=0 // pred_region
    _
  $region13: #{ae_forward.14} parent=0 // pred_fallthru
    _
  %v15 = vld [vmem:[%s0] sm:$0x3]
  %v16 = vld [vmem:[%s1] sm:$0xf]
  %v17 = vld [vmem:[%s1 + $0x4] sm:$0xf]
  %v18 = vld [vmem:[%s1 + $0x8] sm:$0xf]
  %v19 = vld [vmem:[%s1 + $0xc] sm:$0xf]
  %v20 = vld [vmem:[%s1 + $0x10] sm:$0xf]
  %v21 = vld [vmem:[%s1 + $0x14] sm:$0xf]
  %v22 = vld [vmem:[%s1 + $0x18] sm:$0xf]
  %v23 = vld [vmem:[%s1 + $0x1c] sm:$0xf]
  %v24 = vld [vmem:[%s1 + $0x20] sm:$0xf]
  %v25 = vld [vmem:[%s1 + $0x24] sm:$0xf]
  %v26 = vld [vmem:[%s1 + $0x28] sm:$0xf]
  %v27 = vld [vmem:[%s1 + $0x2c] sm:$0xf]
  %v28 = vld [vmem:[%s1 + $0x30] sm:$0xf]
  %v29 = vld [vmem:[%s1 + $0x34] sm:$0xf]
  %v30 = vld [vmem:[%s1 + $0x38] sm:$0xf]
  %v31 = vld [vmem:[%s1 + $0x3c] sm:$0xf]
  %v32 = vld [vmem:[%s1 + $0x40] sm:$0xf]
  %v33 = vld [vmem:[%s1 + $0x44] sm:$0xf]
  %v34 = vld [vmem:[%s2] sm:$0x1]
  %v36 = vperm.slane %v34, 0
  %39 = vst [vmem:[#allocation1] ss:$9 sm:$0xff] %v15
  %v40 = vld [vmem:[#allocation1] sm:$0xff]
  %v41 = vld [vmem:[#allocation1 + $0x9] sm:$0xff]
  %v61 = vunpack.c.l.b16 %v16
  %v62 = vunpack.c.l.b16 %v17
  %v63 = vunpack.c.l.b16 %v18
  %v64 = vunpack.c.l.b16 %v19
  %v65 = vunpack.c.l.b16 %v20
  %v66 = vunpack.c.l.b16 %v21
  %v67 = vunpack.c.l.b16 %v22
  %v68 = vunpack.c.l.b16 %v23
  %v69 = vunpack.c.l.b16 %v24
  %v70 = vunpack.c.l.b16 %v25
  %v71 = vunpack.c.l.b16 %v26
  %v72 = vunpack.c.l.b16 %v27
  %v73 = vunpack.c.l.b16 %v28
  %v74 = vunpack.c.l.b16 %v29
  %v75 = vunpack.c.l.b16 %v30
  %v76 = vunpack.c.l.b16 %v31
  %v77 = vunpack.c.l.b16 %v32
  %v78 = vunpack.c.l.b16 %v33
  %v79 = vpack.c.b16 %v62, %v61
  %v80 = vpack.c.b16 %v64, %v63
  %v81 = vpack.c.b16 %v66, %v65
  %v82 = vpack.c.b16 %v68, %v67
  %v83 = vpack.c.b16 %v70, %v69
  %v84 = vpack.c.b16 %v72, %v71
  %v85 = vpack.c.b16 %v74, %v73
  %v86 = vpack.c.b16 %v76, %v75
  %v87 = vpack.c.b16 %v78, %v77
  %vm97 = vcmask 130048
  %v98 = vsel %vm97, %v41, 0
  %100 = vmatpush.bf16.msra.mxu0 %v86
  %101 = vmatpush.bf16.msra.mxu0 %v85
  %102 = vmatpush.bf16.msra.mxu0 %v84
  %103 = vmatpush.bf16.msra.mxu0 %v83
  %104 = vmatpush.bf16.msra.mxu0 %v82
  %105 = vmatpush.bf16.msra.mxu0 %v81
  %106 = vmatpush.bf16.msra.mxu0 %v80
  %107 = vmatpush.bf16.msra.mxu0 %v79
  %108 = vmatmul.bf16.gmra.mxu0 %v40
  %v109 = vpop.f32.mrf.mxu0
  %v110 = vadd.f32 %v36, %v109
  %v111 = vpop.f32.mrf.mxu0
  %112 = vdwg.mxu0
  %113 = vmatpush.bf16.msra.mxu0 0
  %114 = vmatpush.bf16.msra.mxu0 0
  %115 = vmatpush.bf16.msra.mxu0 0
  %116 = vmatpush.bf16.msra.mxu0 0
  %117 = vmatpush.bf16.msra.mxu0 0
  %118 = vmatpush.bf16.msra.mxu0 0
  %119 = vmatpush.bf16.msra.mxu0 0
  %120 = vmatpush.bf16.msra.mxu0 %v87
  %121 = vmatmul.bf16.gmra.mxu0 %v98
  %v122 = vpop.f32.mrf.mxu0
  %v123 = vadd.f32 %v110, %v122
  %v124 = vpop.f32.mrf.mxu0
  %125 = vdwg.mxu0
  %v126 = vpack.c.bf16 %v123, %v123
  %127 = vst [vmem:[%s3] sm:$0x1] %v126
  // Predicated region
  $region14: #{ae_forward.14} parent=0 // pred_check
    _
  $region15: #{ae_forward.14} parent=0 // pred_check_branch
    %129 = sbr.rel (0) target = $region17
  $region16: #{ae_forward.14} parent=0 // pred_region
    _
  $region17: #{ae_forward.14} parent=0 // pred_fallthru
    _
  // Predicated region
  $region18: #{ae_forward.14} parent=0 // pred_check
    _
  $region19: #{ae_forward.14} parent=0 // pred_check_branch
    %131 = sbr.rel (0) target = $region21
  $region20: #{ae_forward.14} parent=0 // pred_region
    _
  $region21: #{ae_forward.14} parent=0 // pred_fallthru
    _

// kernel: ae_forward.15
$region0: #{ae_forward.15}
  #allocation0 [shape = 'u32[]', space=smem, size = 0x4, offset = 0x4, fixed_abs, tag = 'smem constant byte address 0x4 - core index']
  #allocation1 [shape = 'u32[72,128]{1,0:T(1,128)}', space=vmem, size = 0x9000, scoped, tag = 'internal scratch']
  %s0 = inlined_call_operand.vmem [shape: bf16[2,32], index: 0, kind: input, shape index: {}]
  %s1 = inlined_call_operand.vmem [shape: bf16[32,128], index: 1, kind: input, shape index: {}]
  %s2 = inlined_call_operand.vmem [shape: f32[1,128], index: 2, kind: input, shape index: {}]
  %s3 = inlined_call_operand.vmem [shape: bf16[2,128], index: 3, kind: output, shape index: {}]
  %s4 = sld [smem:[#allocation0]]
  $region22: #{ae_forward.15} parent=0
    _
  %s6 = ssub.s32 1, %s4
  %s7 = scalar_select 0, %s6, %s4
  // Predicated region
  $region2: #{ae_forward.15} parent=0 // pred_check
    _
  $region3: #{ae_forward.15} parent=0 // pred_check_branch
    %9 = sbr.rel (0) target = $region5
  $region4: #{ae_forward.15} parent=0 // pred_region
    _
  $region5: #{ae_forward.15} parent=0 // pred_fallthru
    _
  // Predicated region
  $region6: #{ae_forward.15} parent=0 // pred_check
    _
  $region7: #{ae_forward.15} parent=0 // pred_check_branch
    %11 = sbr.rel (0) target = $region9
  $region8: #{ae_forward.15} parent=0 // pred_region
    _
  $region9: #{ae_forward.15} parent=0 // pred_fallthru
    _
  // Predicated region
  $region10: #{ae_forward.15} parent=0 // pred_check
    _
  $region11: #{ae_forward.15} parent=0 // pred_check_branch
    %13 = sbr.rel (0) target = $region13
  $region12: #{ae_forward.15} parent=0 // pred_region
    _
  $region13: #{ae_forward.15} parent=0 // pred_fallthru
    _
  %v15 = vld [vmem:[%s0] sm:$0x1]
  %v16 = vld [vmem:[%s1] sm:$0xf]
  %v17 = vld [vmem:[%s1 + $0x4] sm:$0xf]
  %v18 = vld [vmem:[%s1 + $0x8] sm:$0xf]
  %v19 = vld [vmem:[%s1 + $0xc] sm:$0xf]
  %v20 = vld [vmem:[%s2] sm:$0x1]
  %v22 = vperm.slane %v20, 0
  %v28 = vunpack.c.l.b16 %v16
  %v29 = vunpack.c.l.b16 %v17
  %v30 = vunpack.c.l.b16 %v18
  %v31 = vunpack.c.l.b16 %v19
  %v32 = vpack.c.b16 %v29, %v28
  %v33 = vpack.c.b16 %v31, %v30
  %vm36 = vcmask 261120
  %v38 = vsel %vm36, %v15, 0
  %40 = vmatpush.bf16.msra.mxu0 0
  %41 = vmatpush.bf16.msra.mxu0 0
  %42 = vmatpush.bf16.msra.mxu0 0
  %43 = vmatpush.bf16.msra.mxu0 0
  %44 = vmatpush.bf16.msra.mxu0 0
  %45 = vmatpush.bf16.msra.mxu0 0
  %46 = vmatpush.bf16.msra.mxu0 %v33
  %47 = vmatpush.bf16.msra.mxu0 %v32
  %48 = vmatmul.bf16.gmra.mxu0 %v38
  %v49 = vpop.f32.mrf.mxu0
  %v50 = vadd.f32 %v22, %v49
  %v51 = vpop.f32.mrf.mxu0
  %52 = vdwg.mxu0
  %v53 = vmax.f32 %v50, 0.0
  %v54 = vpack.c.bf16 %v53, %v53
  %55 = vst [vmem:[%s3] sm:$0x1] %v54
  // Predicated region
  $region14: #{ae_forward.15} parent=0 // pred_check
    _
  $region15: #{ae_forward.15} parent=0 // pred_check_branch
    %57 = sbr.rel (0) target = $region17
  $region16: #{ae_forward.15} parent=0 // pred_region
    _
  $region17: #{ae_forward.15} parent=0 // pred_fallthru
    _
  // Predicated region
  $region18: #{ae_forward.15} parent=0 // pred_check
    _
  $region19: #{ae_forward.15} parent=0 // pred_check_branch
    %59 = sbr.rel (0) target = $region21
  $region20: #{ae_forward.15} parent=0 // pred_region
    _
  $region21: #{ae_forward.15} parent=0 // pred_fallthru
    _

// kernel: ae_forward.13
$region0: #{ae_forward.13}
  #allocation0 [shape = 'u32[]', space=smem, size = 0x4, offset = 0x4, fixed_abs, tag = 'smem constant byte address 0x4 - core index']
  #allocation1 [shape = 'u32[72,128]{1,0:T(1,128)}', space=vmem, size = 0x9000, scoped, tag = 'internal scratch']
  %s0 = inlined_call_operand.vmem [shape: bf16[8,288], index: 0, kind: input, shape index: {}]
  %s1 = inlined_call_operand.vmem [shape: bf16[288,128], index: 1, kind: input, shape index: {}]
  %s2 = inlined_call_operand.vmem [shape: f32[1,128], index: 2, kind: input, shape index: {}]
  %s3 = inlined_call_operand.vmem [shape: bf16[8,128], index: 3, kind: output, shape index: {}]
  %s4 = sld [smem:[#allocation0]]
  $region22: #{ae_forward.13} parent=0
    _
  %s6 = ssub.s32 1, %s4
  %s7 = scalar_select 0, %s6, %s4
  // Predicated region
  $region2: #{ae_forward.13} parent=0 // pred_check
    _
  $region3: #{ae_forward.13} parent=0 // pred_check_branch
    %9 = sbr.rel (0) target = $region5
  $region4: #{ae_forward.13} parent=0 // pred_region
    _
  $region5: #{ae_forward.13} parent=0 // pred_fallthru
    _
  // Predicated region
  $region6: #{ae_forward.13} parent=0 // pred_check
    _
  $region7: #{ae_forward.13} parent=0 // pred_check_branch
    %11 = sbr.rel (0) target = $region9
  $region8: #{ae_forward.13} parent=0 // pred_region
    _
  $region9: #{ae_forward.13} parent=0 // pred_fallthru
    _
  // Predicated region
  $region10: #{ae_forward.13} parent=0 // pred_check
    _
  $region11: #{ae_forward.13} parent=0 // pred_check_branch
    %13 = sbr.rel (0) target = $region13
  $region12: #{ae_forward.13} parent=0 // pred_region
    _
  $region13: #{ae_forward.13} parent=0 // pred_fallthru
    _
  %v15 = vld [vmem:[%s0] sm:$0xff]
  %v16 = vld [vmem:[%s0 + $0x8] sm:$0xf]
  %v17 = vld [vmem:[%s1] sm:$0xf]
  %v18 = vld [vmem:[%s1 + $0x4] sm:$0xf]
  %v19 = vld [vmem:[%s1 + $0x8] sm:$0xf]
  %v20 = vld [vmem:[%s1 + $0xc] sm:$0xf]
  %v21 = vld [vmem:[%s1 + $0x10] sm:$0xf]
  %v22 = vld [vmem:[%s1 + $0x14] sm:$0xf]
  %v23 = vld [vmem:[%s1 + $0x18] sm:$0xf]
  %v24 = vld [vmem:[%s1 + $0x1c] sm:$0xf]
  %v25 = vld [vmem:[%s1 + $0x20] sm:$0xf]
  %v26 = vld [vmem:[%s1 + $0x24] sm:$0xf]
  %v27 = vld [vmem:[%s1 + $0x28] sm:$0xf]
  %v28 = vld [vmem:[%s1 + $0x2c] sm:$0xf]
  %v29 = vld [vmem:[%s1 + $0x30] sm:$0xf]
  %v30 = vld [vmem:[%s1 + $0x34] sm:$0xf]
  %v31 = vld [vmem:[%s1 + $0x38] sm:$0xf]
  %v32 = vld [vmem:[%s1 + $0x3c] sm:$0xf]
  %v33 = vld [vmem:[%s1 + $0x40] sm:$0xf]
  %v34 = vld [vmem:[%s1 + $0x44] sm:$0xf]
  %v35 = vld [vmem:[%s1 + $0x48] sm:$0xf]
  %v36 = vld [vmem:[%s1 + $0x4c] sm:$0xf]
  %v37 = vld [vmem:[%s1 + $0x50] sm:$0xf]
  %v38 = vld [vmem:[%s1 + $0x54] sm:$0xf]
  %v39 = vld [vmem:[%s1 + $0x58] sm:$0xf]
  %v40 = vld [vmem:[%s1 + $0x5c] sm:$0xf]
  %v41 = vld [vmem:[%s1 + $0x60] sm:$0xf]
  %v42 = vld [vmem:[%s1 + $0x64] sm:$0xf]
  %v43 = vld [vmem:[%s1 + $0x68] sm:$0xf]
  %v44 = vld [vmem:[%s1 + $0x6c] sm:$0xf]
  %v45 = vld [vmem:[%s1 + $0x70] sm:$0xf]
  %v46 = vld [vmem:[%s1 + $0x74] sm:$0xf]
  %v47 = vld [vmem:[%s1 + $0x78] sm:$0xf]
  %v48 = vld [vmem:[%s1 + $0x7c] sm:$0xf]
  %v49 = vld [vmem:[%s1 + $0x80] sm:$0xf]
  %v50 = vld [vmem:[%s1 + $0x84] sm:$0xf]
  %v51 = vld [vmem:[%s1 + $0x88] sm:$0xf]
  %v52 = vld [vmem:[%s1 + $0x8c] sm:$0xf]
  %v53 = vld [vmem:[%s2] sm:$0x1]
  %v55 = vperm.slane %v53, 0
  %v59 = vunpack.c.l.b16 %v15
  %v60 = vunpack.c.h.b16 %v15
  %v61 = vunpack.c.l.b16 %v16
  %v62 = vpack.c.b16 %v59, %v59
  %v63 = vpack.c.b16 %v60, %v60
  %v64 = vpack.c.b16 %v61, %v61
  %v103 = vunpack.c.l.b16 %v17
  %v104 = vunpack.c.l.b16 %v18
  %v105 = vunpack.c.l.b16 %v19
  %v106 = vunpack.c.l.b16 %v20
  %v107 = vunpack.c.l.b16 %v21
  %v108 = vunpack.c.l.b16 %v22
  %v109 = vunpack.c.l.b16 %v23
  %v110 = vunpack.c.l.b16 %v24
  %v111 = vunpack.c.l.b16 %v25
  %v112 = vunpack.c.l.b16 %v26
  %v113 = vunpack.c.l.b16 %v27
  %v114 = vunpack.c.l.b16 %v28
  %v115 = vunpack.c.l.b16 %v29
  %v116 = vunpack.c.l.b16 %v30
  %v117 = vunpack.c.l.b16 %v31
  %v118 = vunpack.c.l.b16 %v32
  %v119 = vunpack.c.l.b16 %v33
  %v120 = vunpack.c.l.b16 %v34
  %v121 = vunpack.c.l.b16 %v35
  %v122 = vunpack.c.l.b16 %v36
  %v123 = vunpack.c.l.b16 %v37
  %v124 = vunpack.c.l.b16 %v38
  %v125 = vunpack.c.l.b16 %v39
  %v126 = vunpack.c.l.b16 %v40
  %v127 = vunpack.c.l.b16 %v41
  %v128 = vunpack.c.l.b16 %v42
  %v129 = vunpack.c.l.b16 %v43
  %v130 = vunpack.c.l.b16 %v44
  %v131 = vunpack.c.l.b16 %v45
  %v132 = vunpack.c.l.b16 %v46
  %v133 = vunpack.c.l.b16 %v47
  %v134 = vunpack.c.l.b16 %v48
  %v135 = vunpack.c.l.b16 %v49
  %v136 = vunpack.c.l.b16 %v50
  %v137 = vunpack.c.l.b16 %v51
  %v138 = vunpack.c.l.b16 %v52
  %v139 = vpack.c.b16 %v104, %v103
  %v140 = vpack.c.b16 %v106, %v105
  %v141 = vpack.c.b16 %v108, %v107
  %v142 = vpack.c.b16 %v110, %v109
  %v143 = vpack.c.b16 %v112, %v111
  %v144 = vpack.c.b16 %v114, %v113
  %v145 = vpack.c.b16 %v116, %v115
  %v146 = vpack.c.b16 %v118, %v117
  %v147 = vpack.c.b16 %v120, %v119
  %v148 = vpack.c.b16 %v122, %v121
  %v149 = vpack.c.b16 %v124, %v123
  %v150 = vpack.c.b16 %v126, %v125
  %v151 = vpack.c.b16 %v128, %v127
  %v152 = vpack.c.b16 %v130, %v129
  %v153 = vpack.c.b16 %v132, %v131
  %v154 = vpack.c.b16 %v134, %v133
  %v155 = vpack.c.b16 %v136, %v135
  %v156 = vpack.c.b16 %v138, %v137
  %vm175 = vcmask 261120
  %v177 = vsel %vm175, %v64, 0
  %179 = vmatpush.bf16.msra.mxu0 %v146
  %180 = vmatpush.bf16.msra.mxu0 %v145
  %181 = vmatpush.bf16.msra.mxu0 %v144
  %182 = vmatpush.bf16.msra.mxu0 %v143
  %183 = vmatpush.bf16.msra.mxu0 %v142
  %184 = vmatpush.bf16.msra.mxu0 %v141
  %185 = vmatpush.bf16.msra.mxu0 %v140
  %186 = vmatpush.bf16.msra.mxu0 %v139
  %187 = vmatmul.bf16.gmra.mxu0 %v62
  %v188 = vpop.f32.mrf.mxu0
  %v189 = vadd.f32 %v55, %v188
  %v190 = vpop.f32.mrf.mxu0
  %191 = vdwg.mxu0
  %192 = vmatpush.bf16.msra.mxu0 %v154
  %193 = vmatpush.bf16.msra.mxu0 %v153
  %194 = vmatpush.bf16.msra.mxu0 %v152
  %195 = vmatpush.bf16.msra.mxu0 %v151
  %196 = vmatpush.bf16.msra.mxu0 %v150
  %197 = vmatpush.bf16.msra.mxu0 %v149
  %198 = vmatpush.bf16.msra.mxu0 %v148
  %199 = vmatpush.bf16.msra.mxu0 %v147
  %200 = vmatmul.bf16.gmra.mxu0 %v63
  %v201 = vpop.f32.mrf.mxu0
  %v202 = vadd.f32 %v189, %v201
  %v203 = vpop.f32.mrf.mxu0
  %204 = vdwg.mxu0
  %205 = vmatpush.bf16.msra.mxu0 0
  %206 = vmatpush.bf16.msra.mxu0 0
  %207 = vmatpush.bf16.msra.mxu0 0
  %208 = vmatpush.bf16.msra.mxu0 0
  %209 = vmatpush.bf16.msra.mxu0 0
  %210 = vmatpush.bf16.msra.mxu0 0
  %211 = vmatpush.bf16.msra.mxu0 %v156
  %212 = vmatpush.bf16.msra.mxu0 %v155
  %213 = vmatmul.bf16.gmra.mxu0 %v177
  %v214 = vpop.f32.mrf.mxu0
  %v215 = vadd.f32 %v202, %v214
  %v216 = vpop.f32.mrf.mxu0
  %217 = vdwg.mxu0
  %v218 = vmax.f32 %v215, 0.0
  %v219 = vpack.c.bf16 %v218, %v218
  %220 = vst [vmem:[%s3] sm:$0xf] %v219
  // Predicated region
  $region14: #{ae_forward.13} parent=0 // pred_check
    _
  $region15: #{ae_forward.13} parent=0 // pred_check_branch
    %222 = sbr.rel (0) target = $region17
  $region16: #{ae_forward.13} parent=0 // pred_region
    _
  $region17: #{ae_forward.13} parent=0 // pred_fallthru
    _
  // Predicated region
  $region18: #{ae_forward.13} parent=0 // pred_check
    _
  $region19: #{ae_forward.13} parent=0 // pred_check_branch
    %224 = sbr.rel (0) target = $region21
  $region20: #{ae_forward.13} parent=0 // pred_region
    _
  $region21: #{ae_forward.13} parent=0 // pred_fallthru
    _

// kernel: ae_forward.16
$region0: #{ae_forward.16}
  #allocation0 [shape = 'u32[]', space=smem, size = 0x4, offset = 0x4, fixed_abs, tag = 'smem constant byte address 0x4 - core index']
  #allocation1 [shape = 'u32[72,128]{1,0:T(1,128)}', space=vmem, size = 0x9000, scoped, tag = 'internal scratch']
  %s0 = inlined_call_operand.vmem [shape: bf16[8,64], index: 0, kind: input, shape index: {}]
  %s1 = inlined_call_operand.vmem [shape: bf16[64,128], index: 1, kind: input, shape index: {}]
  %s2 = inlined_call_operand.vmem [shape: f32[1,128], index: 2, kind: input, shape index: {}]
  %s3 = inlined_call_operand.vmem [shape: bf16[8,128], index: 3, kind: output, shape index: {}]
  %s4 = sld [smem:[#allocation0]]
  $region22: #{ae_forward.16} parent=0
    _
  %s6 = ssub.s32 1, %s4
  %s7 = scalar_select 0, %s6, %s4
  // Predicated region
  $region2: #{ae_forward.16} parent=0 // pred_check
    _
  $region3: #{ae_forward.16} parent=0 // pred_check_branch
    %9 = sbr.rel (0) target = $region5
  $region4: #{ae_forward.16} parent=0 // pred_region
    _
  $region5: #{ae_forward.16} parent=0 // pred_fallthru
    _
  // Predicated region
  $region6: #{ae_forward.16} parent=0 // pred_check
    _
  $region7: #{ae_forward.16} parent=0 // pred_check_branch
    %11 = sbr.rel (0) target = $region9
  $region8: #{ae_forward.16} parent=0 // pred_region
    _
  $region9: #{ae_forward.16} parent=0 // pred_fallthru
    _
  // Predicated region
  $region10: #{ae_forward.16} parent=0 // pred_check
    _
  $region11: #{ae_forward.16} parent=0 // pred_check_branch
    %13 = sbr.rel (0) target = $region13
  $region12: #{ae_forward.16} parent=0 // pred_region
    _
  $region13: #{ae_forward.16} parent=0 // pred_fallthru
    _
  %v15 = vld [vmem:[%s0] sm:$0xf]
  %v16 = vld [vmem:[%s1] sm:$0xf]
  %v17 = vld [vmem:[%s1 + $0x4] sm:$0xf]
  %v18 = vld [vmem:[%s1 + $0x8] sm:$0xf]
  %v19 = vld [vmem:[%s1 + $0xc] sm:$0xf]
  %v20 = vld [vmem:[%s1 + $0x10] sm:$0xf]
  %v21 = vld [vmem:[%s1 + $0x14] sm:$0xf]
  %v22 = vld [vmem:[%s1 + $0x18] sm:$0xf]
  %v23 = vld [vmem:[%s1 + $0x1c] sm:$0xf]
  %v24 = vld [vmem:[%s2] sm:$0x1]
  %v26 = vperm.slane %v24, 0
  %v36 = vunpack.c.l.b16 %v16
  %v37 = vunpack.c.l.b16 %v17
  %v38 = vunpack.c.l.b16 %v18
  %v39 = vunpack.c.l.b16 %v19
  %v40 = vunpack.c.l.b16 %v20
  %v41 = vunpack.c.l.b16 %v21
  %v42 = vunpack.c.l.b16 %v22
  %v43 = vunpack.c.l.b16 %v23
  %v44 = vpack.c.b16 %v37, %v36
  %v45 = vpack.c.b16 %v39, %v38
  %v46 = vpack.c.b16 %v41, %v40
  %v47 = vpack.c.b16 %v43, %v42
  %vm52 = vcmask 523264
  %v54 = vsel %vm52, %v15, 0
  %56 = vmatpush.bf16.msra.mxu0 0
  %57 = vmatpush.bf16.msra.mxu0 0
  %58 = vmatpush.bf16.msra.mxu0 0
  %59 = vmatpush.bf16.msra.mxu0 0
  %60 = vmatpush.bf16.msra.mxu0 %v47
  %61 = vmatpush.bf16.msra.mxu0 %v46
  %62 = vmatpush.bf16.msra.mxu0 %v45
  %63 = vmatpush.bf16.msra.mxu0 %v44
  %64 = vmatmul.bf16.gmra.mxu0 %v54
  %v65 = vpop.f32.mrf.mxu0
  %v66 = vadd.f32 %v26, %v65
  %v67 = vpop.f32.mrf.mxu0
  %68 = vdwg.mxu0
  %v69 = vmax.f32 %v66, 0.0
  %v70 = vpack.c.bf16 %v69, %v69
  %71 = vst [vmem:[%s3] sm:$0xf] %v70
  // Predicated region
  $region14: #{ae_forward.16} parent=0 // pred_check
    _
  $region15: #{ae_forward.16} parent=0 // pred_check_branch
    %73 = sbr.rel (0) target = $region17
  $region16: #{ae_forward.16} parent=0 // pred_region
    _
  $region17: #{ae_forward.16} parent=0 // pred_fallthru
    _
  // Predicated region
  $region18: #{ae_forward.16} parent=0 // pred_check
    _
  $region19: #{ae_forward.16} parent=0 // pred_check_branch
    %75 = sbr.rel (0) target = $region21
  $region20: #{ae_forward.16} parent=0 // pred_region
    _
  $region21: #{ae_forward.16} parent=0 // pred_fallthru
    _

// kernel: ae_forward.17
$region0: #{ae_forward.17}
  #allocation0 [shape = 'u32[]', space=smem, size = 0x4, offset = 0x4, fixed_abs, tag = 'smem constant byte address 0x4 - core index']
  #allocation1 [shape = 'u32[72,128]{1,0:T(1,128)}', space=vmem, size = 0x9000, scoped, tag = 'internal scratch']
  %s0 = inlined_call_operand.vmem [shape: bf16[32,128], index: 0, kind: input, shape index: {}]
  %s1 = inlined_call_operand.vmem [shape: bf16[128,256], index: 1, kind: input, shape index: {}]
  %s2 = inlined_call_operand.vmem [shape: f32[1,256], index: 2, kind: input, shape index: {}]
  %s3 = inlined_call_operand.vmem [shape: bf16[32,256], index: 3, kind: output, shape index: {}]
  %s4 = sld [smem:[#allocation0]]
  $region22: #{ae_forward.17} parent=0
    _
  %s6 = ssub.s32 1, %s4
  %s7 = scalar_select 0, %s6, %s4
  // Predicated region
  $region2: #{ae_forward.17} parent=0 // pred_check
    _
  $region3: #{ae_forward.17} parent=0 // pred_check_branch
    %9 = sbr.rel (0) target = $region5
  $region4: #{ae_forward.17} parent=0 // pred_region
    _
  $region5: #{ae_forward.17} parent=0 // pred_fallthru
    _
  // Predicated region
  $region6: #{ae_forward.17} parent=0 // pred_check
    _
  $region7: #{ae_forward.17} parent=0 // pred_check_branch
    %11 = sbr.rel (0) target = $region9
  $region8: #{ae_forward.17} parent=0 // pred_region
    _
  $region9: #{ae_forward.17} parent=0 // pred_fallthru
    _
  // Predicated region
  $region10: #{ae_forward.17} parent=0 // pred_check
    _
  $region11: #{ae_forward.17} parent=0 // pred_check_branch
    %13 = sbr.rel (0) target = $region13
  $region12: #{ae_forward.17} parent=0 // pred_region
    _
  $region13: #{ae_forward.17} parent=0 // pred_fallthru
    _
  %v14 = vld [vmem:[%s0] sm:$0xf]
  %v15 = vld [vmem:[%s0 + $0x4] sm:$0xf]
  %v16 = vld [vmem:[%s0 + $0x8] sm:$0xf]
  %v17 = vld [vmem:[%s0 + $0xc] sm:$0xf]
  %v18 = vld [vmem:[%s1] sm:$0xff]
  %v19 = vld [vmem:[%s1 + $0x8] sm:$0xff]
  %v20 = vld [vmem:[%s1 + $0x10] sm:$0xff]
  %v21 = vld [vmem:[%s1 + $0x18] sm:$0xff]
  %v22 = vld [vmem:[%s1 + $0x20] sm:$0xff]
  %v23 = vld [vmem:[%s1 + $0x28] sm:$0xff]
  %v24 = vld [vmem:[%s1 + $0x30] sm:$0xff]
  %v25 = vld [vmem:[%s1 + $0x38] sm:$0xff]
  %v26 = vld [vmem:[%s1 + $0x40] sm:$0xff]
  %v27 = vld [vmem:[%s1 + $0x48] sm:$0xff]
  %v28 = vld [vmem:[%s1 + $0x50] sm:$0xff]
  %v29 = vld [vmem:[%s1 + $0x58] sm:$0xff]
  %v30 = vld [vmem:[%s1 + $0x60] sm:$0xff]
  %v31 = vld [vmem:[%s1 + $0x68] sm:$0xff]
  %v32 = vld [vmem:[%s1 + $0x70] sm:$0xff]
  %v33 = vld [vmem:[%s1 + $0x78] sm:$0xff]
  %v34 = vld [vmem:[%s2] sm:$0x3]
  %v36 = vperm.slane %v34, 0
  %v37 = vperm.slane %v34, 1
  %v44 = vunpack.c.l.b16 %v14
  %v45 = vunpack.c.l.b16 %v15
  %v46 = vunpack.c.l.b16 %v16
  %v47 = vunpack.c.l.b16 %v17
  %v48 = vpack.c.b16 %v45, %v44
  %v49 = vpack.c.b16 %v47, %v46
  %v68 = vunpack.c.l.b16 %v18
  %v69 = vunpack.c.h.b16 %v18
  %v70 = vunpack.c.l.b16 %v19
  %v71 = vunpack.c.h.b16 %v19
  %v72 = vunpack.c.l.b16 %v20
  %v73 = vunpack.c.h.b16 %v20
  %v74 = vunpack.c.l.b16 %v21
  %v75 = vunpack.c.h.b16 %v21
  %v76 = vunpack.c.l.b16 %v22
  %v77 = vunpack.c.h.b16 %v22
  %v78 = vunpack.c.l.b16 %v23
  %v79 = vunpack.c.h.b16 %v23
  %v80 = vunpack.c.l.b16 %v24
  %v81 = vunpack.c.h.b16 %v24
  %v82 = vunpack.c.l.b16 %v25
  %v83 = vunpack.c.h.b16 %v25
  %v84 = vunpack.c.l.b16 %v26
  %v85 = vunpack.c.h.b16 %v26
  %v86 = vunpack.c.l.b16 %v27
  %v87 = vunpack.c.h.b16 %v27
  %v88 = vunpack.c.l.b16 %v28
  %v89 = vunpack.c.h.b16 %v28
  %v90 = vunpack.c.l.b16 %v29
  %v91 = vunpack.c.h.b16 %v29
  %v92 = vunpack.c.l.b16 %v30
  %v93 = vunpack.c.h.b16 %v30
  %v94 = vunpack.c.l.b16 %v31
  %v95 = vunpack.c.h.b16 %v31
  %v96 = vunpack.c.l.b16 %v32
  %v97 = vunpack.c.h.b16 %v32
  %v98 = vunpack.c.l.b16 %v33
  %v99 = vunpack.c.h.b16 %v33
  %v100 = vpack.c.b16 %v70, %v68
  %v101 = vpack.c.b16 %v71, %v69
  %v102 = vpack.c.b16 %v74, %v72
  %v103 = vpack.c.b16 %v75, %v73
  %v104 = vpack.c.b16 %v78, %v76
  %v105 = vpack.c.b16 %v79, %v77
  %v106 = vpack.c.b16 %v82, %v80
  %v107 = vpack.c.b16 %v83, %v81
  %v108 = vpack.c.b16 %v86, %v84
  %v109 = vpack.c.b16 %v87, %v85
  %v110 = vpack.c.b16 %v90, %v88
  %v111 = vpack.c.b16 %v91, %v89
  %v112 = vpack.c.b16 %v94, %v92
  %v113 = vpack.c.b16 %v95, %v93
  %v114 = vpack.c.b16 %v98, %v96
  %v115 = vpack.c.b16 %v99, %v97
  %132 = vmatpush.bf16.msra.mxu0 %v114
  %133 = vmatpush.bf16.msra.mxu0 %v112
  %134 = vmatpush.bf16.msra.mxu0 %v110
  %135 = vmatpush.bf16.msra.mxu0 %v108
  %136 = vmatpush.bf16.msra.mxu0 %v106
  %137 = vmatpush.bf16.msra.mxu0 %v104
  %138 = vmatpush.bf16.msra.mxu0 %v102
  %139 = vmatpush.bf16.msra.mxu0 %v100
  %140 = vmatmul.bf16.gmra.mxu0 %v48
  %v141 = vpop.f32.mrf.mxu0
  %v142 = vadd.f32 %v36, %v141
  %v143 = vpop.f32.mrf.mxu0
  %v144 = vadd.f32 %v36, %v143
  %145 = vmatmul.bf16.gmra.mxu0 %v49
  %v146 = vpop.f32.mrf.mxu0
  %v147 = vadd.f32 %v36, %v146
  %v148 = vpop.f32.mrf.mxu0
  %v149 = vadd.f32 %v36, %v148
  %150 = vdwg.mxu0
  %151 = vmatpush.bf16.msra.mxu0 %v115
  %152 = vmatpush.bf16.msra.mxu0 %v113
  %153 = vmatpush.bf16.msra.mxu0 %v111
  %154 = vmatpush.bf16.msra.mxu0 %v109
  %155 = vmatpush.bf16.msra.mxu0 %v107
  %156 = vmatpush.bf16.msra.mxu0 %v105
  %157 = vmatpush.bf16.msra.mxu0 %v103
  %158 = vmatpush.bf16.msra.mxu0 %v101
  %159 = vmatmul.bf16.gmra.mxu0 %v48
  %v160 = vpop.f32.mrf.mxu0
  %v161 = vadd.f32 %v37, %v160
  %v162 = vpop.f32.mrf.mxu0
  %v163 = vadd.f32 %v37, %v162
  %164 = vmatmul.bf16.gmra.mxu0 %v49
  %v165 = vpop.f32.mrf.mxu0
  %v166 = vadd.f32 %v37, %v165
  %v167 = vpop.f32.mrf.mxu0
  %v168 = vadd.f32 %v37, %v167
  %169 = vdwg.mxu0
  %v170 = vmax.f32 %v142, 0.0
  %v171 = vmax.f32 %v161, 0.0
  %v172 = vmax.f32 %v144, 0.0
  %v173 = vmax.f32 %v163, 0.0
  %v174 = vmax.f32 %v147, 0.0
  %v175 = vmax.f32 %v166, 0.0
  %v176 = vmax.f32 %v149, 0.0
  %v177 = vmax.f32 %v168, 0.0
  %v178 = vpack.c.bf16 %v171, %v170
  %v179 = vpack.c.bf16 %v173, %v172
  %v180 = vpack.c.bf16 %v175, %v174
  %v181 = vpack.c.bf16 %v177, %v176
  %182 = vst [vmem:[%s3] sm:$0xff] %v178
  %183 = vst [vmem:[%s3 + $0x8] sm:$0xff] %v179
  %184 = vst [vmem:[%s3 + $0x10] sm:$0xff] %v180
  %185 = vst [vmem:[%s3 + $0x18] sm:$0xff] %v181
  // Predicated region
  $region14: #{ae_forward.17} parent=0 // pred_check
    _
  $region15: #{ae_forward.17} parent=0 // pred_check_branch
    %187 = sbr.rel (0) target = $region17
  $region16: #{ae_forward.17} parent=0 // pred_region
    _
  $region17: #{ae_forward.17} parent=0 // pred_fallthru
    _
  // Predicated region
  $region18: #{ae_forward.17} parent=0 // pred_check
    _
  $region19: #{ae_forward.17} parent=0 // pred_check_branch
    %189 = sbr.rel (0) target = $region21
  $region20: #{ae_forward.17} parent=0 // pred_region
    _
  $region21: #{ae_forward.17} parent=0 // pred_fallthru
    _

// kernel: ae_forward.18
$region0: #{ae_forward.18}
  #allocation0 [shape = 'u32[]', space=smem, size = 0x4, offset = 0x4, fixed_abs, tag = 'smem constant byte address 0x4 - core index']
  #allocation1 [shape = 'u32[72,128]{1,0:T(1,128)}', space=vmem, size = 0x9000, scoped, tag = 'internal scratch']
  %s0 = inlined_call_operand.vmem [shape: bf16[128,256], index: 0, kind: input, shape index: {}]
  %s1 = inlined_call_operand.vmem [shape: bf16[256,512], index: 1, kind: input, shape index: {}]
  %s2 = inlined_call_operand.vmem [shape: f32[1,512], index: 2, kind: input, shape index: {}]
  %s3 = inlined_call_operand.vmem [shape: bf16[128,512], index: 3, kind: output, shape index: {}]
  %s4 = sld [smem:[#allocation0]]
  $region22: #{ae_forward.18} parent=0
    _
  %s6 = ssub.s32 1, %s4
  %s7 = scalar_select 0, %s6, %s4
  // Predicated region
  $region2: #{ae_forward.18} parent=0 // pred_check
    _
  $region3: #{ae_forward.18} parent=0 // pred_check_branch
    %9 = sbr.rel (0) target = $region5
  $region4: #{ae_forward.18} parent=0 // pred_region
    _
  $region5: #{ae_forward.18} parent=0 // pred_fallthru
    _
  // Predicated region
  $region6: #{ae_forward.18} parent=0 // pred_check
    _
  $region7: #{ae_forward.18} parent=0 // pred_check_branch
    %11 = sbr.rel (0) target = $region9
  $region8: #{ae_forward.18} parent=0 // pred_region
    _
  $region9: #{ae_forward.18} parent=0 // pred_fallthru
    _
  // Predicated region
  $region10: #{ae_forward.18} parent=0 // pred_check
    _
  $region11: #{ae_forward.18} parent=0 // pred_check_branch
    %13 = sbr.rel (0) target = $region13
  $region12: #{ae_forward.18} parent=0 // pred_region
    _
  $region13: #{ae_forward.18} parent=0 // pred_fallthru
    _
  %v14 = vld [vmem:[%s0] sm:$0xff]
  %v15 = vld [vmem:[%s0 + $0x8] sm:$0xff]
  %v16 = vld [vmem:[%s0 + $0x10] sm:$0xff]
  %v17 = vld [vmem:[%s0 + $0x18] sm:$0xff]
  %v18 = vld [vmem:[%s0 + $0x20] sm:$0xff]
  %v19 = vld [vmem:[%s0 + $0x28] sm:$0xff]
  %v20 = vld [vmem:[%s0 + $0x30] sm:$0xff]
  %v21 = vld [vmem:[%s0 + $0x38] sm:$0xff]
  %v22 = vld [vmem:[%s0 + $0x40] sm:$0xff]
  %v23 = vld [vmem:[%s0 + $0x48] sm:$0xff]
  %v24 = vld [vmem:[%s0 + $0x50] sm:$0xff]
  %v25 = vld [vmem:[%s0 + $0x58] sm:$0xff]
  %v26 = vld [vmem:[%s0 + $0x60] sm:$0xff]
  %v27 = vld [vmem:[%s0 + $0x68] sm:$0xff]
  %v28 = vld [vmem:[%s0 + $0x70] sm:$0xff]
  %v29 = vld [vmem:[%s0 + $0x78] sm:$0xff]
  %v30 = vld [vmem:[%s1] sm:$0xff]
  %v31 = vld [vmem:[%s1 + $0x8] sm:$0xff]
  %v32 = vld [vmem:[%s1 + $0x10] sm:$0xff]
  %v33 = vld [vmem:[%s1 + $0x18] sm:$0xff]
  %v34 = vld [vmem:[%s1 + $0x20] sm:$0xff]
  %v35 = vld [vmem:[%s1 + $0x28] sm:$0xff]
  %v36 = vld [vmem:[%s1 + $0x30] sm:$0xff]
  %v37 = vld [vmem:[%s1 + $0x38] sm:$0xff]
  %v38 = vld [vmem:[%s1 + $0x40] sm:$0xff]
  %v39 = vld [vmem:[%s1 + $0x48] sm:$0xff]
  %v40 = vld [vmem:[%s1 + $0x50] sm:$0xff]
  %v41 = vld [vmem:[%s1 + $0x58] sm:$0xff]
  %v42 = vld [vmem:[%s1 + $0x60] sm:$0xff]
  %v43 = vld [vmem:[%s1 + $0x68] sm:$0xff]
  %v44 = vld [vmem:[%s1 + $0x70] sm:$0xff]
  %v45 = vld [vmem:[%s1 + $0x78] sm:$0xff]
  %v46 = vld [vmem:[%s1 + $0x80] sm:$0xff]
  %v47 = vld [vmem:[%s1 + $0x88] sm:$0xff]
  %v48 = vld [vmem:[%s1 + $0x90] sm:$0xff]
  %v49 = vld [vmem:[%s1 + $0x98] sm:$0xff]
  %v50 = vld [vmem:[%s1 + $0xa0] sm:$0xff]
  %v51 = vld [vmem:[%s1 + $0xa8] sm:$0xff]
  %v52 = vld [vmem:[%s1 + $0xb0] sm:$0xff]
  %v53 = vld [vmem:[%s1 + $0xb8] sm:$0xff]
  %v54 = vld [vmem:[%s1 + $0xc0] sm:$0xff]
  %v55 = vld [vmem:[%s1 + $0xc8] sm:$0xff]
  %v56 = vld [vmem:[%s1 + $0xd0] sm:$0xff]
  %v57 = vld [vmem:[%s1 + $0xd8] sm:$0xff]
  %v58 = vld [vmem:[%s1 + $0xe0] sm:$0xff]
  %v59 = vld [vmem:[%s1 + $0xe8] sm:$0xff]
  %v60 = vld [vmem:[%s1 + $0xf0] sm:$0xff]
  %v61 = vld [vmem:[%s1 + $0xf8] sm:$0xff]
  %v62 = vld [vmem:[%s1 + $0x100] sm:$0xff]
  %v63 = vld [vmem:[%s1 + $0x108] sm:$0xff]
  %v64 = vld [vmem:[%s1 + $0x110] sm:$0xff]
  %v65 = vld [vmem:[%s1 + $0x118] sm:$0xff]
  %v66 = vld [vmem:[%s1 + $0x120] sm:$0xff]
  %v67 = vld [vmem:[%s1 + $0x128] sm:$0xff]
  %v68 = vld [vmem:[%s1 + $0x130] sm:$0xff]
  %v69 = vld [vmem:[%s1 + $0x138] sm:$0xff]
  %v70 = vld [vmem:[%s1 + $0x140] sm:$0xff]
  %v71 = vld [vmem:[%s1 + $0x148] sm:$0xff]
  %v72 = vld [vmem:[%s1 + $0x150] sm:$0xff]
  %v73 = vld [vmem:[%s1 + $0x158] sm:$0xff]
  %v74 = vld [vmem:[%s1 + $0x160] sm:$0xff]
  %v75 = vld [vmem:[%s1 + $0x168] sm:$0xff]
  %v76 = vld [vmem:[%s1 + $0x170] sm:$0xff]
  %v77 = vld [vmem:[%s1 + $0x178] sm:$0xff]
  %v78 = vld [vmem:[%s1 + $0x180] sm:$0xff]
  %v79 = vld [vmem:[%s1 + $0x188] sm:$0xff]
  %v80 = vld [vmem:[%s1 + $0x190] sm:$0xff]
  %v81 = vld [vmem:[%s1 + $0x198] sm:$0xff]
  %v82 = vld [vmem:[%s1 + $0x1a0] sm:$0xff]
  %v83 = vld [vmem:[%s1 + $0x1a8] sm:$0xff]
  %v84 = vld [vmem:[%s1 + $0x1b0] sm:$0xff]
  %v85 = vld [vmem:[%s1 + $0x1b8] sm:$0xff]
  %v86 = vld [vmem:[%s1 + $0x1c0] sm:$0xff]
  %v87 = vld [vmem:[%s1 + $0x1c8] sm:$0xff]
  %v88 = vld [vmem:[%s1 + $0x1d0] sm:$0xff]
  %v89 = vld [vmem:[%s1 + $0x1d8] sm:$0xff]
  %v90 = vld [vmem:[%s1 + $0x1e0] sm:$0xff]
  %v91 = vld [vmem:[%s1 + $0x1e8] sm:$0xff]
  %v92 = vld [vmem:[%s1 + $0x1f0] sm:$0xff]
  %v93 = vld [vmem:[%s1 + $0x1f8] sm:$0xff]
  %v94 = vld [vmem:[%s2] sm:$0xf]
  %v96 = vperm.slane %v94, 0
  %v97 = vperm.slane %v94, 1
  %v98 = vperm.slane %v94, 2
  %v99 = vperm.slane %v94, 3
  %v120 = vunpack.c.l.b16 %v14
  %v121 = vunpack.c.h.b16 %v14
  %v122 = vunpack.c.l.b16 %v15
  %v123 = vunpack.c.h.b16 %v15
  %v124 = vunpack.c.l.b16 %v16
  %v125 = vunpack.c.h.b16 %v16
  %v126 = vunpack.c.l.b16 %v17
  %v127 = vunpack.c.h.b16 %v17
  %v128 = vunpack.c.l.b16 %v18
  %v129 = vunpack.c.h.b16 %v18
  %v130 = vunpack.c.l.b16 %v19
  %v131 = vunpack.c.h.b16 %v19
  %v132 = vunpack.c.l.b16 %v20
  %v133 = vunpack.c.h.b16 %v20
  %v134 = vunpack.c.l.b16 %v21
  %v135 = vunpack.c.h.b16 %v21
  %v136 = vunpack.c.l.b16 %v22
  %v137 = vunpack.c.h.b16 %v22
  %v138 = vunpack.c.l.b16 %v23
  %v139 = vunpack.c.h.b16 %v23
  %v140 = vunpack.c.l.b16 %v24
  %v141 = vunpack.c.h.b16 %v24
  %v142 = vunpack.c.l.b16 %v25
  %v143 = vunpack.c.h.b16 %v25
  %v144 = vunpack.c.l.b16 %v26
  %v145 = vunpack.c.h.b16 %v26
  %v146 = vunpack.c.l.b16 %v27
  %v147 = vunpack.c.h.b16 %v27
  %v148 = vunpack.c.l.b16 %v28
  %v149 = vunpack.c.h.b16 %v28
  %v150 = vunpack.c.l.b16 %v29
  %v151 = vunpack.c.h.b16 %v29
  %v152 = vpack.c.b16 %v122, %v120
  %v153 = vpack.c.b16 %v123, %v121
  %v154 = vpack.c.b16 %v126, %v124
  %v155 = vpack.c.b16 %v127, %v125
  %v156 = vpack.c.b16 %v130, %v128
  %v157 = vpack.c.b16 %v131, %v129
  %v158 = vpack.c.b16 %v134, %v132
  %v159 = vpack.c.b16 %v135, %v133
  %v160 = vpack.c.b16 %v138, %v136
  %v161 = vpack.c.b16 %v139, %v137
  %v162 = vpack.c.b16 %v142, %v140
  %v163 = vpack.c.b16 %v143, %v141
  %v164 = vpack.c.b16 %v146, %v144
  %v165 = vpack.c.b16 %v147, %v145
  %v166 = vpack.c.b16 %v150, %v148
  %v167 = vpack.c.b16 %v151, %v149
  %v248 = vunpack.c.l.b16 %v30
  %v249 = vunpack.c.h.b16 %v30
  %v250 = vunpack.c.l.b16 %v31
  %v251 = vunpack.c.h.b16 %v31
  %v252 = vunpack.c.l.b16 %v32
  %v253 = vunpack.c.h.b16 %v32
  %v254 = vunpack.c.l.b16 %v33
  %v255 = vunpack.c.h.b16 %v33
  %v256 = vunpack.c.l.b16 %v34
  %v257 = vunpack.c.h.b16 %v34
  %v258 = vunpack.c.l.b16 %v35
  %v259 = vunpack.c.h.b16 %v35
  %v260 = vunpack.c.l.b16 %v36
  %v261 = vunpack.c.h.b16 %v36
  %v262 = vunpack.c.l.b16 %v37
  %v263 = vunpack.c.h.b16 %v37
  %v264 = vunpack.c.l.b16 %v38
  %v265 = vunpack.c.h.b16 %v38
  %v266 = vunpack.c.l.b16 %v39
  %v267 = vunpack.c.h.b16 %v39
  %v268 = vunpack.c.l.b16 %v40
  %v269 = vunpack.c.h.b16 %v40
  %v270 = vunpack.c.l.b16 %v41
  %v271 = vunpack.c.h.b16 %v41
  %v272 = vunpack.c.l.b16 %v42
  %v273 = vunpack.c.h.b16 %v42
  %v274 = vunpack.c.l.b16 %v43
  %v275 = vunpack.c.h.b16 %v43
  %v276 = vunpack.c.l.b16 %v44
  %v277 = vunpack.c.h.b16 %v44
  %v278 = vunpack.c.l.b16 %v45
  %v279 = vunpack.c.h.b16 %v45
  %v280 = vunpack.c.l.b16 %v46
  %v281 = vunpack.c.h.b16 %v46
  %v282 = vunpack.c.l.b16 %v47
  %v283 = vunpack.c.h.b16 %v47
  %v284 = vunpack.c.l.b16 %v48
  %v285 = vunpack.c.h.b16 %v48
  %v286 = vunpack.c.l.b16 %v49
  %v287 = vunpack.c.h.b16 %v49
  %v288 = vunpack.c.l.b16 %v50
  %v289 = vunpack.c.h.b16 %v50
  %v290 = vunpack.c.l.b16 %v51
  %v291 = vunpack.c.h.b16 %v51
  %v292 = vunpack.c.l.b16 %v52
  %v293 = vunpack.c.h.b16 %v52
  %v294 = vunpack.c.l.b16 %v53
  %v295 = vunpack.c.h.b16 %v53
  %v296 = vunpack.c.l.b16 %v54
  %v297 = vunpack.c.h.b16 %v54
  %v298 = vunpack.c.l.b16 %v55
  %v299 = vunpack.c.h.b16 %v55
  %v300 = vunpack.c.l.b16 %v56
  %v301 = vunpack.c.h.b16 %v56
  %v302 = vunpack.c.l.b16 %v57
  %v303 = vunpack.c.h.b16 %v57
  %v304 = vunpack.c.l.b16 %v58
  %v305 = vunpack.c.h.b16 %v58
  %v306 = vunpack.c.l.b16 %v59
  %v307 = vunpack.c.h.b16 %v59
  %v308 = vunpack.c.l.b16 %v60
  %v309 = vunpack.c.h.b16 %v60
  %v310 = vunpack.c.l.b16 %v61
  %v311 = vunpack.c.h.b16 %v61
  %v312 = vunpack.c.l.b16 %v62
  %v313 = vunpack.c.h.b16 %v62
  %v314 = vunpack.c.l.b16 %v63
  %v315 = vunpack.c.h.b16 %v63
  %v316 = vunpack.c.l.b16 %v64
  %v317 = vunpack.c.h.b16 %v64
  %v318 = vunpack.c.l.b16 %v65
  %v319 = vunpack.c.h.b16 %v65
  %v320 = vunpack.c.l.b16 %v66
  %v321 = vunpack.c.h.b16 %v66
  %v322 = vunpack.c.l.b16 %v67
  %v323 = vunpack.c.h.b16 %v67
  %v324 = vunpack.c.l.b16 %v68
  %v325 = vunpack.c.h.b16 %v68
  %v326 = vunpack.c.l.b16 %v69
  %v327 = vunpack.c.h.b16 %v69
  %v328 = vunpack.c.l.b16 %v70
  %v329 = vunpack.c.h.b16 %v70
  %v330 = vunpack.c.l.b16 %v71
  %v331 = vunpack.c.h.b16 %v71
  %v332 = vunpack.c.l.b16 %v72
  %v333 = vunpack.c.h.b16 %v72
  %v334 = vunpack.c.l.b16 %v73
  %v335 = vunpack.c.h.b16 %v73
  %v336 = vunpack.c.l.b16 %v74
  %v337 = vunpack.c.h.b16 %v74
  %v338 = vunpack.c.l.b16 %v75
  %v339 = vunpack.c.h.b16 %v75
  %v340 = vunpack.c.l.b16 %v76
  %v341 = vunpack.c.h.b16 %v76
  %v342 = vunpack.c.l.b16 %v77
  %v343 = vunpack.c.h.b16 %v77
  %v344 = vunpack.c.l.b16 %v78
  %v345 = vunpack.c.h.b16 %v78
  %v346 = vunpack.c.l.b16 %v79
  %v347 = vunpack.c.h.b16 %v79
  %v348 = vunpack.c.l.b16 %v80
  %v349 = vunpack.c.h.b16 %v80
  %v350 = vunpack.c.l.b16 %v81
  %v351 = vunpack.c.h.b16 %v81
  %v352 = vunpack.c.l.b16 %v82
  %v353 = vunpack.c.h.b16 %v82
  %v354 = vunpack.c.l.b16 %v83
  %v355 = vunpack.c.h.b16 %v83
  %v356 = vunpack.c.l.b16 %v84
  %v357 = vunpack.c.h.b16 %v84
  %v358 = vunpack.c.l.b16 %v85
  %v359 = vunpack.c.h.b16 %v85
  %v360 = vunpack.c.l.b16 %v86
  %v361 = vunpack.c.h.b16 %v86
  %v362 = vunpack.c.l.b16 %v87
  %v363 = vunpack.c.h.b16 %v87
  %v364 = vunpack.c.l.b16 %v88
  %v365 = vunpack.c.h.b16 %v88
  %v366 = vunpack.c.l.b16 %v89
  %v367 = vunpack.c.h.b16 %v89
  %v368 = vunpack.c.l.b16 %v90
  %v369 = vunpack.c.h.b16 %v90
  %v370 = vunpack.c.l.b16 %v91
  %v371 = vunpack.c.h.b16 %v91
  %v372 = vunpack.c.l.b16 %v92
  %v373 = vunpack.c.h.b16 %v92
  %v374 = vunpack.c.l.b16 %v93
  %v375 = vunpack.c.h.b16 %v93
  %v376 = vpack.c.b16 %v252, %v248
  %v377 = vpack.c.b16 %v253, %v249
  %v378 = vpack.c.b16 %v254, %v250
  %v379 = vpack.c.b16 %v255, %v251
  %v380 = vpack.c.b16 %v260, %v256
  %v381 = vpack.c.b16 %v261, %v257
  %v382 = vpack.c.b16 %v262, %v258
  %v383 = vpack.c.b16 %v263, %v259
  %v384 = vpack.c.b16 %v268, %v264
  %v385 = vpack.c.b16 %v269, %v265
  %v386 = vpack.c.b16 %v270, %v266
  %v387 = vpack.c.b16 %v271, %v267
  %v388 = vpack.c.b16 %v276, %v272
  %v389 = vpack.c.b16 %v277, %v273
  %v390 = vpack.c.b16 %v278, %v274
  %v391 = vpack.c.b16 %v279, %v275
  %v392 = vpack.c.b16 %v284, %v280
  %v393 = vpack.c.b16 %v285, %v281
  %v394 = vpack.c.b16 %v286, %v282
  %v395 = vpack.c.b16 %v287, %v283
  %v396 = vpack.c.b16 %v292, %v288
  %v397 = vpack.c.b16 %v293, %v289
  %v398 = vpack.c.b16 %v294, %v290
  %v399 = vpack.c.b16 %v295, %v291
  %v400 = vpack.c.b16 %v300, %v296
  %v401 = vpack.c.b16 %v301, %v297
  %v402 = vpack.c.b16 %v302, %v298
  %v403 = vpack.c.b16 %v303, %v299
  %v404 = vpack.c.b16 %v308, %v304
  %v405 = vpack.c.b16 %v309, %v305
  %v406 = vpack.c.b16 %v310, %v306
  %v407 = vpack.c.b16 %v311, %v307
  %v408 = vpack.c.b16 %v316, %v312
  %v409 = vpack.c.b16 %v317, %v313
  %v410 = vpack.c.b16 %v318, %v314
  %v411 = vpack.c.b16 %v319, %v315
  %v412 = vpack.c.b16 %v324, %v320
  %v413 = vpack.c.b16 %v325, %v321
  %v414 = vpack.c.b16 %v326, %v322
  %v415 = vpack.c.b16 %v327, %v323
  %v416 = vpack.c.b16 %v332, %v328
  %v417 = vpack.c.b16 %v333, %v329
  %v418 = vpack.c.b16 %v334, %v330
  %v419 = vpack.c.b16 %v335, %v331
  %v420 = vpack.c.b16 %v340, %v336
  %v421 = vpack.c.b16 %v341, %v337
  %v422 = vpack.c.b16 %v342, %v338
  %v423 = vpack.c.b16 %v343, %v339
  %v424 = vpack.c.b16 %v348, %v344
  %v425 = vpack.c.b16 %v349, %v345
  %v426 = vpack.c.b16 %v350, %v346
  %v427 = vpack.c.b16 %v351, %v347
  %v428 = vpack.c.b16 %v356, %v352
  %v429 = vpack.c.b16 %v357, %v353
  %v430 = vpack.c.b16 %v358, %v354
  %v431 = vpack.c.b16 %v359, %v355
  %v432 = vpack.c.b16 %v364, %v360
  %v433 = vpack.c.b16 %v365, %v361
  %v434 = vpack.c.b16 %v366, %v362
  %v435 = vpack.c.b16 %v367, %v363
  %v436 = vpack.c.b16 %v372, %v368
  %v437 = vpack.c.b16 %v373, %v369
  %v438 = vpack.c.b16 %v374, %v370
  %v439 = vpack.c.b16 %v375, %v371
  %504 = vmatpush.bf16.msra.mxu0 %v404
  %505 = vmatpush.bf16.msra.mxu0 %v400
  %506 = vmatpush.bf16.msra.mxu0 %v396
  %507 = vmatpush.bf16.msra.mxu0 %v392
  %508 = vmatpush.bf16.msra.mxu0 %v388
  %509 = vmatpush.bf16.msra.mxu0 %v384
  %510 = vmatpush.bf16.msra.mxu0 %v380
  %511 = vmatpush.bf16.msra.mxu0 %v376
  %512 = vmatmul.bf16.gmra.mxu0 %v152
  %v513 = vpop.f32.mrf.mxu0
  %v514 = vadd.f32 %v96, %v513
  %v515 = vpop.f32.mrf.mxu0
  %v516 = vadd.f32 %v96, %v515
  %517 = vmatmul.bf16.gmra.mxu0 %v154
  %v518 = vpop.f32.mrf.mxu0
  %v519 = vadd.f32 %v96, %v518
  %v520 = vpop.f32.mrf.mxu0
  %v521 = vadd.f32 %v96, %v520
  %522 = vmatmul.bf16.gmra.mxu0 %v156
  %v523 = vpop.f32.mrf.mxu0
  %v524 = vadd.f32 %v96, %v523
  %v525 = vpop.f32.mrf.mxu0
  %v526 = vadd.f32 %v96, %v525
  %527 = vmatmul.bf16.gmra.mxu0 %v158
  %v528 = vpop.f32.mrf.mxu0
  %v529 = vadd.f32 %v96, %v528
  %v530 = vpop.f32.mrf.mxu0
  %v531 = vadd.f32 %v96, %v530
  %532 = vmatmul.bf16.gmra.mxu0 %v160
  %v533 = vpop.f32.mrf.mxu0
  %v534 = vadd.f32 %v96, %v533
  %v535 = vpop.f32.mrf.mxu0
  %v536 = vadd.f32 %v96, %v535
  %537 = vmatmul.bf16.gmra.mxu0 %v162
  %v538 = vpop.f32.mrf.mxu0
  %v539 = vadd.f32 %v96, %v538
  %v540 = vpop.f32.mrf.mxu0
  %v541 = vadd.f32 %v96, %v540
  %542 = vmatmul.bf16.gmra.mxu0 %v164
  %v543 = vpop.f32.mrf.mxu0
  %v544 = vadd.f32 %v96, %v543
  %v545 = vpop.f32.mrf.mxu0
  %v546 = vadd.f32 %v96, %v545
  %547 = vmatmul.bf16.gmra.mxu0 %v166
  %v548 = vpop.f32.mrf.mxu0
  %v549 = vadd.f32 %v96, %v548
  %v550 = vpop.f32.mrf.mxu0
  %v551 = vadd.f32 %v96, %v550
  %552 = vdwg.mxu0
  %553 = vmatpush.bf16.msra.mxu0 %v436
  %554 = vmatpush.bf16.msra.mxu0 %v432
  %555 = vmatpush.bf16.msra.mxu0 %v428
  %556 = vmatpush.bf16.msra.mxu0 %v424
  %557 = vmatpush.bf16.msra.mxu0 %v420
  %558 = vmatpush.bf16.msra.mxu0 %v416
  %559 = vmatpush.bf16.msra.mxu0 %v412
  %560 = vmatpush.bf16.msra.mxu0 %v408
  %561 = vmatmul.bf16.gmra.mxu0 %v153
  %v562 = vpop.f32.mrf.mxu0
  %v563 = vadd.f32 %v514, %v562
  %v564 = vpop.f32.mrf.mxu0
  %v565 = vadd.f32 %v516, %v564
  %566 = vmatmul.bf16.gmra.mxu0 %v155
  %v567 = vpop.f32.mrf.mxu0
  %v568 = vadd.f32 %v519, %v567
  %v569 = vpop.f32.mrf.mxu0
  %v570 = vadd.f32 %v521, %v569
  %571 = vmatmul.bf16.gmra.mxu0 %v157
  %v572 = vpop.f32.mrf.mxu0
  %v573 = vadd.f32 %v524, %v572
  %v574 = vpop.f32.mrf.mxu0
  %v575 = vadd.f32 %v526, %v574
  %576 = vmatmul.bf16.gmra.mxu0 %v159
  %v577 = vpop.f32.mrf.mxu0
  %v578 = vadd.f32 %v529, %v577
  %v579 = vpop.f32.mrf.mxu0
  %v580 = vadd.f32 %v531, %v579
  %581 = vmatmul.bf16.gmra.mxu0 %v161
  %v582 = vpop.f32.mrf.mxu0
  %v583 = vadd.f32 %v534, %v582
  %v584 = vpop.f32.mrf.mxu0
  %v585 = vadd.f32 %v536, %v584
  %586 = vmatmul.bf16.gmra.mxu0 %v163
  %v587 = vpop.f32.mrf.mxu0
  %v588 = vadd.f32 %v539, %v587
  %v589 = vpop.f32.mrf.mxu0
  %v590 = vadd.f32 %v541, %v589
  %591 = vmatmul.bf16.gmra.mxu0 %v165
  %v592 = vpop.f32.mrf.mxu0
  %v593 = vadd.f32 %v544, %v592
  %v594 = vpop.f32.mrf.mxu0
  %v595 = vadd.f32 %v546, %v594
  %596 = vmatmul.bf16.gmra.mxu0 %v167
  %v597 = vpop.f32.mrf.mxu0
  %v598 = vadd.f32 %v549, %v597
  %v599 = vpop.f32.mrf.mxu0
  %v600 = vadd.f32 %v551, %v599
  %601 = vdwg.mxu0
  %602 = vmatpush.bf16.msra.mxu0 %v405
  %603 = vmatpush.bf16.msra.mxu0 %v401
  %604 = vmatpush.bf16.msra.mxu0 %v397
  %605 = vmatpush.bf16.msra.mxu0 %v393
  %606 = vmatpush.bf16.msra.mxu0 %v389
  %607 = vmatpush.bf16.msra.mxu0 %v385
  %608 = vmatpush.bf16.msra.mxu0 %v381
  %609 = vmatpush.bf16.msra.mxu0 %v377
  %610 = vmatmul.bf16.gmra.mxu0 %v152
  %v611 = vpop.f32.mrf.mxu0
  %v612 = vadd.f32 %v97, %v611
  %v613 = vpop.f32.mrf.mxu0
  %v614 = vadd.f32 %v97, %v613
  %615 = vmatmul.bf16.gmra.mxu0 %v154
  %v616 = vpop.f32.mrf.mxu0
  %v617 = vadd.f32 %v97, %v616
  %v618 = vpop.f32.mrf.mxu0
  %v619 = vadd.f32 %v97, %v618
  %620 = vmatmul.bf16.gmra.mxu0 %v156
  %v621 = vpop.f32.mrf.mxu0
  %v622 = vadd.f32 %v97, %v621
  %v623 = vpop.f32.mrf.mxu0
  %v624 = vadd.f32 %v97, %v623
  %625 = vmatmul.bf16.gmra.mxu0 %v158
  %v626 = vpop.f32.mrf.mxu0
  %v627 = vadd.f32 %v97, %v626
  %v628 = vpop.f32.mrf.mxu0
  %v629 = vadd.f32 %v97, %v628
  %630 = vmatmul.bf16.gmra.mxu0 %v160
  %v631 = vpop.f32.mrf.mxu0
  %v632 = vadd.f32 %v97, %v631
  %v633 = vpop.f32.mrf.mxu0
  %v634 = vadd.f32 %v97, %v633
  %635 = vmatmul.bf16.gmra.mxu0 %v162
  %v636 = vpop.f32.mrf.mxu0
  %v637 = vadd.f32 %v97, %v636
  %v638 = vpop.f32.mrf.mxu0
  %v639 = vadd.f32 %v97, %v638
  %640 = vmatmul.bf16.gmra.mxu0 %v164
  %v641 = vpop.f32.mrf.mxu0
  %v642 = vadd.f32 %v97, %v641
  %v643 = vpop.f32.mrf.mxu0
  %v644 = vadd.f32 %v97, %v643
  %645 = vmatmul.bf16.gmra.mxu0 %v166
  %v646 = vpop.f32.mrf.mxu0
  %v647 = vadd.f32 %v97, %v646
  %v648 = vpop.f32.mrf.mxu0
  %v649 = vadd.f32 %v97, %v648
  %650 = vdwg.mxu0
  %651 = vmatpush.bf16.msra.mxu0 %v437
  %652 = vmatpush.bf16.msra.mxu0 %v433
  %653 = vmatpush.bf16.msra.mxu0 %v429
  %654 = vmatpush.bf16.msra.mxu0 %v425
  %655 = vmatpush.bf16.msra.mxu0 %v421
  %656 = vmatpush.bf16.msra.mxu0 %v417
  %657 = vmatpush.bf16.msra.mxu0 %v413
  %658 = vmatpush.bf16.msra.mxu0 %v409
  %659 = vmatmul.bf16.gmra.mxu0 %v153
  %v660 = vpop.f32.mrf.mxu0
  %v661 = vadd.f32 %v612, %v660
  %v662 = vpop.f32.mrf.mxu0
  %v663 = vadd.f32 %v614, %v662
  %664 = vmatmul.bf16.gmra.mxu0 %v155
  %v665 = vpop.f32.mrf.mxu0
  %v666 = vadd.f32 %v617, %v665
  %v667 = vpop.f32.mrf.mxu0
  %v668 = vadd.f32 %v619, %v667
  %669 = vmatmul.bf16.gmra.mxu0 %v157
  %v670 = vpop.f32.mrf.mxu0
  %v671 = vadd.f32 %v622, %v670
  %v672 = vpop.f32.mrf.mxu0
  %v673 = vadd.f32 %v624, %v672
  %674 = vmatmul.bf16.gmra.mxu0 %v159
  %v675 = vpop.f32.mrf.mxu0
  %v676 = vadd.f32 %v627, %v675
  %v677 = vpop.f32.mrf.mxu0
  %v678 = vadd.f32 %v629, %v677
  %679 = vmatmul.bf16.gmra.mxu0 %v161
  %v680 = vpop.f32.mrf.mxu0
  %v681 = vadd.f32 %v632, %v680
  %v682 = vpop.f32.mrf.mxu0
  %v683 = vadd.f32 %v634, %v682
  %684 = vmatmul.bf16.gmra.mxu0 %v163
  %v685 = vpop.f32.mrf.mxu0
  %v686 = vadd.f32 %v637, %v685
  %v687 = vpop.f32.mrf.mxu0
  %v688 = vadd.f32 %v639, %v687
  %689 = vmatmul.bf16.gmra.mxu0 %v165
  %v690 = vpop.f32.mrf.mxu0
  %v691 = vadd.f32 %v642, %v690
  %v692 = vpop.f32.mrf.mxu0
  %v693 = vadd.f32 %v644, %v692
  %694 = vmatmul.bf16.gmra.mxu0 %v167
  %v695 = vpop.f32.mrf.mxu0
  %v696 = vadd.f32 %v647, %v695
  %v697 = vpop.f32.mrf.mxu0
  %v698 = vadd.f32 %v649, %v697
  %699 = vdwg.mxu0
  %700 = vmatpush.bf16.msra.mxu0 %v406
  %701 = vmatpush.bf16.msra.mxu0 %v402
  %702 = vmatpush.bf16.msra.mxu0 %v398
  %703 = vmatpush.bf16.msra.mxu0 %v394
  %704 = vmatpush.bf16.msra.mxu0 %v390
  %705 = vmatpush.bf16.msra.mxu0 %v386
  %706 = vmatpush.bf16.msra.mxu0 %v382
  %707 = vmatpush.bf16.msra.mxu0 %v378
  %708 = vmatmul.bf16.gmra.mxu0 %v152
  %v709 = vpop.f32.mrf.mxu0
  %v710 = vadd.f32 %v98, %v709
  %v711 = vpop.f32.mrf.mxu0
  %v712 = vadd.f32 %v98, %v711
  %713 = vmatmul.bf16.gmra.mxu0 %v154
  %v714 = vpop.f32.mrf.mxu0
  %v715 = vadd.f32 %v98, %v714
  %v716 = vpop.f32.mrf.mxu0
  %v717 = vadd.f32 %v98, %v716
  %718 = vmatmul.bf16.gmra.mxu0 %v156
  %v719 = vpop.f32.mrf.mxu0
  %v720 = vadd.f32 %v98, %v719
  %v721 = vpop.f32.mrf.mxu0
  %v722 = vadd.f32 %v98, %v721
  %723 = vmatmul.bf16.gmra.mxu0 %v158
  %v724 = vpop.f32.mrf.mxu0
  %v725 = vadd.f32 %v98, %v724
  %v726 = vpop.f32.mrf.mxu0
  %v727 = vadd.f32 %v98, %v726
  %728 = vmatmul.bf16.gmra.mxu0 %v160
  %v729 = vpop.f32.mrf.mxu0
  %v730 = vadd.f32 %v98, %v729
  %v731 = vpop.f32.mrf.mxu0
  %v732 = vadd.f32 %v98, %v731
  %733 = vmatmul.bf16.gmra.mxu0 %v162
  %v734 = vpop.f32.mrf.mxu0
  %v735 = vadd.f32 %v98, %v734
  %v736 = vpop.f32.mrf.mxu0
  %v737 = vadd.f32 %v98, %v736
  %738 = vmatmul.bf16.gmra.mxu0 %v164
  %v739 = vpop.f32.mrf.mxu0
  %v740 = vadd.f32 %v98, %v739
  %v741 = vpop.f32.mrf.mxu0
  %v742 = vadd.f32 %v98, %v741
  %743 = vmatmul.bf16.gmra.mxu0 %v166
  %v744 = vpop.f32.mrf.mxu0
  %v745 = vadd.f32 %v98, %v744
  %v746 = vpop.f32.mrf.mxu0
  %v747 = vadd.f32 %v98, %v746
  %748 = vdwg.mxu0
  %749 = vmatpush.bf16.msra.mxu0 %v438
  %750 = vmatpush.bf16.msra.mxu0 %v434
  %751 = vmatpush.bf16.msra.mxu0 %v430
  %752 = vmatpush.bf16.msra.mxu0 %v426
  %753 = vmatpush.bf16.msra.mxu0 %v422
  %754 = vmatpush.bf16.msra.mxu0 %v418
  %755 = vmatpush.bf16.msra.mxu0 %v414
  %756 = vmatpush.bf16.msra.mxu0 %v410
  %757 = vmatmul.bf16.gmra.mxu0 %v153
  %v758 = vpop.f32.mrf.mxu0
  %v759 = vadd.f32 %v710, %v758
  %v760 = vpop.f32.mrf.mxu0
  %v761 = vadd.f32 %v712, %v760
  %762 = vmatmul.bf16.gmra.mxu0 %v155
  %v763 = vpop.f32.mrf.mxu0
  %v764 = vadd.f32 %v715, %v763
  %v765 = vpop.f32.mrf.mxu0
  %v766 = vadd.f32 %v717, %v765
  %767 = vmatmul.bf16.gmra.mxu0 %v157
  %v768 = vpop.f32.mrf.mxu0
  %v769 = vadd.f32 %v720, %v768
  %v770 = vpop.f32.mrf.mxu0
  %v771 = vadd.f32 %v722, %v770
  %772 = vmatmul.bf16.gmra.mxu0 %v159
  %v773 = vpop.f32.mrf.mxu0
  %v774 = vadd.f32 %v725, %v773
  %v775 = vpop.f32.mrf.mxu0
  %v776 = vadd.f32 %v727, %v775
  %777 = vmatmul.bf16.gmra.mxu0 %v161
  %v778 = vpop.f32.mrf.mxu0
  %v779 = vadd.f32 %v730, %v778
  %v780 = vpop.f32.mrf.mxu0
  %v781 = vadd.f32 %v732, %v780
  %782 = vmatmul.bf16.gmra.mxu0 %v163
  %v783 = vpop.f32.mrf.mxu0
  %v784 = vadd.f32 %v735, %v783
  %v785 = vpop.f32.mrf.mxu0
  %v786 = vadd.f32 %v737, %v785
  %787 = vmatmul.bf16.gmra.mxu0 %v165
  %v788 = vpop.f32.mrf.mxu0
  %v789 = vadd.f32 %v740, %v788
  %v790 = vpop.f32.mrf.mxu0
  %v791 = vadd.f32 %v742, %v790
  %792 = vmatmul.bf16.gmra.mxu0 %v167
  %v793 = vpop.f32.mrf.mxu0
  %v794 = vadd.f32 %v745, %v793
  %v795 = vpop.f32.mrf.mxu0
  %v796 = vadd.f32 %v747, %v795
  %797 = vdwg.mxu0
  %798 = vmatpush.bf16.msra.mxu0 %v407
  %799 = vmatpush.bf16.msra.mxu0 %v403
  %800 = vmatpush.bf16.msra.mxu0 %v399
  %801 = vmatpush.bf16.msra.mxu0 %v395
  %802 = vmatpush.bf16.msra.mxu0 %v391
  %803 = vmatpush.bf16.msra.mxu0 %v387
  %804 = vmatpush.bf16.msra.mxu0 %v383
  %805 = vmatpush.bf16.msra.mxu0 %v379
  %806 = vmatmul.bf16.gmra.mxu0 %v152
  %v807 = vpop.f32.mrf.mxu0
  %v808 = vadd.f32 %v99, %v807
  %v809 = vpop.f32.mrf.mxu0
  %v810 = vadd.f32 %v99, %v809
  %811 = vmatmul.bf16.gmra.mxu0 %v154
  %v812 = vpop.f32.mrf.mxu0
  %v813 = vadd.f32 %v99, %v812
  %v814 = vpop.f32.mrf.mxu0
  %v815 = vadd.f32 %v99, %v814
  %816 = vmatmul.bf16.gmra.mxu0 %v156
  %v817 = vpop.f32.mrf.mxu0
  %v818 = vadd.f32 %v99, %v817
  %v819 = vpop.f32.mrf.mxu0
  %v820 = vadd.f32 %v99, %v819
  %821 = vmatmul.bf16.gmra.mxu0 %v158
  %v822 = vpop.f32.mrf.mxu0
  %v823 = vadd.f32 %v99, %v822
  %v824 = vpop.f32.mrf.mxu0
  %v825 = vadd.f32 %v99, %v824
  %826 = vmatmul.bf16.gmra.mxu0 %v160
  %v827 = vpop.f32.mrf.mxu0
  %v828 = vadd.f32 %v99, %v827
  %v829 = vpop.f32.mrf.mxu0
  %v830 = vadd.f32 %v99, %v829
  %831 = vmatmul.bf16.gmra.mxu0 %v162
  %v832 = vpop.f32.mrf.mxu0
  %v833 = vadd.f32 %v99, %v832
  %v834 = vpop.f32.mrf.mxu0
  %v835 = vadd.f32 %v99, %v834
  %836 = vmatmul.bf16.gmra.mxu0 %v164
  %v837 = vpop.f32.mrf.mxu0
  %v838 = vadd.f32 %v99, %v837
  %v839 = vpop.f32.mrf.mxu0
  %v840 = vadd.f32 %v99, %v839
  %841 = vmatmul.bf16.gmra.mxu0 %v166
  %v842 = vpop.f32.mrf.mxu0
  %v843 = vadd.f32 %v99, %v842
  %v844 = vpop.f32.mrf.mxu0
  %v845 = vadd.f32 %v99, %v844
  %846 = vdwg.mxu0
  %847 = vmatpush.bf16.msra.mxu0 %v439
  %848 = vmatpush.bf16.msra.mxu0 %v435
  %849 = vmatpush.bf16.msra.mxu0 %v431
  %850 = vmatpush.bf16.msra.mxu0 %v427
  %851 = vmatpush.bf16.msra.mxu0 %v423
  %852 = vmatpush.bf16.msra.mxu0 %v419
  %853 = vmatpush.bf16.msra.mxu0 %v415
  %854 = vmatpush.bf16.msra.mxu0 %v411
  %855 = vmatmul.bf16.gmra.mxu0 %v153
  %v856 = vpop.f32.mrf.mxu0
  %v857 = vadd.f32 %v808, %v856
  %v858 = vpop.f32.mrf.mxu0
  %v859 = vadd.f32 %v810, %v858
  %860 = vmatmul.bf16.gmra.mxu0 %v155
  %v861 = vpop.f32.mrf.mxu0
  %v862 = vadd.f32 %v813, %v861
  %v863 = vpop.f32.mrf.mxu0
  %v864 = vadd.f32 %v815, %v863
  %865 = vmatmul.bf16.gmra.mxu0 %v157
  %v866 = vpop.f32.mrf.mxu0
  %v867 = vadd.f32 %v818, %v866
  %v868 = vpop.f32.mrf.mxu0
  %v869 = vadd.f32 %v820, %v868
  %870 = vmatmul.bf16.gmra.mxu0 %v159
  %v871 = vpop.f32.mrf.mxu0
  %v872 = vadd.f32 %v823, %v871
  %v873 = vpop.f32.mrf.mxu0
  %v874 = vadd.f32 %v825, %v873
  %875 = vmatmul.bf16.gmra.mxu0 %v161
  %v876 = vpop.f32.mrf.mxu0
  %v877 = vadd.f32 %v828, %v876
  %v878 = vpop.f32.mrf.mxu0
  %v879 = vadd.f32 %v830, %v878
  %880 = vmatmul.bf16.gmra.mxu0 %v163
  %v881 = vpop.f32.mrf.mxu0
  %v882 = vadd.f32 %v833, %v881
  %v883 = vpop.f32.mrf.mxu0
  %v884 = vadd.f32 %v835, %v883
  %885 = vmatmul.bf16.gmra.mxu0 %v165
  %v886 = vpop.f32.mrf.mxu0
  %v887 = vadd.f32 %v838, %v886
  %v888 = vpop.f32.mrf.mxu0
  %v889 = vadd.f32 %v840, %v888
  %890 = vmatmul.bf16.gmra.mxu0 %v167
  %v891 = vpop.f32.mrf.mxu0
  %v892 = vadd.f32 %v843, %v891
  %v893 = vpop.f32.mrf.mxu0
  %v894 = vadd.f32 %v845, %v893
  %895 = vdwg.mxu0
  %v896 = vmax.f32 %v563, 0.0
  %v897 = vmax.f32 %v661, 0.0
  %v898 = vmax.f32 %v759, 0.0
  %v899 = vmax.f32 %v857, 0.0
  %v900 = vmax.f32 %v565, 0.0
  %v901 = vmax.f32 %v663, 0.0
  %v902 = vmax.f32 %v761, 0.0
  %v903 = vmax.f32 %v859, 0.0
  %v904 = vmax.f32 %v568, 0.0
  %v905 = vmax.f32 %v666, 0.0
  %v906 = vmax.f32 %v764, 0.0
  %v907 = vmax.f32 %v862, 0.0
  %v908 = vmax.f32 %v570, 0.0
  %v909 = vmax.f32 %v668, 0.0
  %v910 = vmax.f32 %v766, 0.0
  %v911 = vmax.f32 %v864, 0.0
  %v912 = vmax.f32 %v573, 0.0
  %v913 = vmax.f32 %v671, 0.0
  %v914 = vmax.f32 %v769, 0.0
  %v915 = vmax.f32 %v867, 0.0
  %v916 = vmax.f32 %v575, 0.0
  %v917 = vmax.f32 %v673, 0.0
  %v918 = vmax.f32 %v771, 0.0
  %v919 = vmax.f32 %v869, 0.0
  %v920 = vmax.f32 %v578, 0.0
  %v921 = vmax.f32 %v676, 0.0
  %v922 = vmax.f32 %v774, 0.0
  %v923 = vmax.f32 %v872, 0.0
  %v924 = vmax.f32 %v580, 0.0
  %v925 = vmax.f32 %v678, 0.0
  %v926 = vmax.f32 %v776, 0.0
  %v927 = vmax.f32 %v874, 0.0
  %v928 = vmax.f32 %v583, 0.0
  %v929 = vmax.f32 %v681, 0.0
  %v930 = vmax.f32 %v779, 0.0
  %v931 = vmax.f32 %v877, 0.0
  %v932 = vmax.f32 %v585, 0.0
  %v933 = vmax.f32 %v683, 0.0
  %v934 = vmax.f32 %v781, 0.0
  %v935 = vmax.f32 %v879, 0.0
  %v936 = vmax.f32 %v588, 0.0
  %v937 = vmax.f32 %v686, 0.0
  %v938 = vmax.f32 %v784, 0.0
  %v939 = vmax.f32 %v882, 0.0
  %v940 = vmax.f32 %v590, 0.0
  %v941 = vmax.f32 %v688, 0.0
  %v942 = vmax.f32 %v786, 0.0
  %v943 = vmax.f32 %v884, 0.0
  %v944 = vmax.f32 %v593, 0.0
  %v945 = vmax.f32 %v691, 0.0
  %v946 = vmax.f32 %v789, 0.0
  %v947 = vmax.f32 %v887, 0.0
  %v948 = vmax.f32 %v595, 0.0
  %v949 = vmax.f32 %v693, 0.0
  %v950 = vmax.f32 %v791, 0.0
  %v951 = vmax.f32 %v889, 0.0
  %v952 = vmax.f32 %v598, 0.0
  %v953 = vmax.f32 %v696, 0.0
  %v954 = vmax.f32 %v794, 0.0
  %v955 = vmax.f32 %v892, 0.0
  %v956 = vmax.f32 %v600, 0.0
  %v957 = vmax.f32 %v698, 0.0
  %v958 = vmax.f32 %v796, 0.0
  %v959 = vmax.f32 %v894, 0.0
  %v960 = vpack.c.bf16 %v897, %v896
  %v961 = vpack.c.bf16 %v899, %v898
  %v962 = vpack.c.bf16 %v901, %v900
  %v963 = vpack.c.bf16 %v903, %v902
  %v964 = vpack.c.bf16 %v905, %v904
  %v965 = vpack.c.bf16 %v907, %v906
  %v966 = vpack.c.bf16 %v909, %v908
  %v967 = vpack.c.bf16 %v911, %v910
  %v968 = vpack.c.bf16 %v913, %v912
  %v969 = vpack.c.bf16 %v915, %v914
  %v970 = vpack.c.bf16 %v917, %v916
  %v971 = vpack.c.bf16 %v919, %v918
  %v972 = vpack.c.bf16 %v921, %v920
  %v973 = vpack.c.bf16 %v923, %v922
  %v974 = vpack.c.bf16 %v925, %v924
  %v975 = vpack.c.bf16 %v927, %v926
  %v976 = vpack.c.bf16 %v929, %v928
  %v977 = vpack.c.bf16 %v931, %v930
  %v978 = vpack.c.bf16 %v933, %v932
  %v979 = vpack.c.bf16 %v935, %v934
  %v980 = vpack.c.bf16 %v937, %v936
  %v981 = vpack.c.bf16 %v939, %v938
  %v982 = vpack.c.bf16 %v941, %v940
  %v983 = vpack.c.bf16 %v943, %v942
  %v984 = vpack.c.bf16 %v945, %v944
  %v985 = vpack.c.bf16 %v947, %v946
  %v986 = vpack.c.bf16 %v949, %v948
  %v987 = vpack.c.bf16 %v951, %v950
  %v988 = vpack.c.bf16 %v953, %v952
  %v989 = vpack.c.bf16 %v955, %v954
  %v990 = vpack.c.bf16 %v957, %v956
  %v991 = vpack.c.bf16 %v959, %v958
  %992 = vst [vmem:[%s3] sm:$0xff] %v960
  %993 = vst [vmem:[%s3 + $0x8] sm:$0xff] %v961
  %994 = vst [vmem:[%s3 + $0x10] sm:$0xff] %v962
  %995 = vst [vmem:[%s3 + $0x18] sm:$0xff] %v963
  %996 = vst [vmem:[%s3 + $0x20] sm:$0xff] %v964
  %997 = vst [vmem:[%s3 + $0x28] sm:$0xff] %v965
  %998 = vst [vmem:[%s3 + $0x30] sm:$0xff] %v966
  %999 = vst [vmem:[%s3 + $0x38] sm:$0xff] %v967
  %1000 = vst [vmem:[%s3 + $0x40] sm:$0xff] %v968
  %1001 = vst [vmem:[%s3 + $0x48] sm:$0xff] %v969
  %1002 = vst [vmem:[%s3 + $0x50] sm:$0xff] %v970
  %1003 = vst [vmem:[%s3 + $0x58] sm:$0xff] %v971
  %1004 = vst [vmem:[%s3 + $0x60] sm:$0xff] %v972
  %1005 = vst [vmem:[%s3 + $0x68] sm:$0xff] %v973
  %1006 = vst [vmem:[%s3 + $0x70] sm:$0xff] %v974
  %1007 = vst [vmem:[%s3 + $0x78] sm:$0xff] %v975
  %1008 = vst [vmem:[%s3 + $0x80] sm:$0xff] %v976
  %1009 = vst [vmem:[%s3 + $0x88] sm:$0xff] %v977
  %1010 = vst [vmem:[%s3 + $0x90] sm:$0xff] %v978
  %1011 = vst [vmem:[%s3 + $0x98] sm:$0xff] %v979
  %1012 = vst [vmem:[%s3 + $0xa0] sm:$0xff] %v980
  %1013 = vst [vmem:[%s3 + $0xa8] sm:$0xff] %v981
  %1014 = vst [vmem:[%s3 + $0xb0] sm:$0xff] %v982
  %1015 = vst [vmem:[%s3 + $0xb8] sm:$0xff] %v983
  %1016 = vst [vmem:[%s3 + $0xc0] sm:$0xff] %v984
  %1017 = vst [vmem:[%s3 + $0xc8] sm:$0xff] %v985
  %1018 = vst [vmem:[%s3 + $0xd0] sm:$0xff] %v986
  %1019 = vst [vmem:[%s3 + $0xd8] sm:$0xff] %v987
  %1020 = vst [vmem:[%s3 + $0xe0] sm:$0xff] %v988
  %1021 = vst [vmem:[%s3 + $0xe8] sm:$0xff] %v989
  %1022 = vst [vmem:[%s3 + $0xf0] sm:$0xff] %v990
  %1023 = vst [vmem:[%s3 + $0xf8] sm:$0xff] %v991
  // Predicated region
  $region14: #{ae_forward.18} parent=0 // pred_check
    _
  $region15: #{ae_forward.18} parent=0 // pred_check_branch
    %1025 = sbr.rel (0) target = $region17
  $region16: #{ae_forward.18} parent=0 // pred_region
    _
  $region17: #{ae_forward.18} parent=0 // pred_fallthru
    _
  // Predicated region
  $region18: #{ae_forward.18} parent=0 // pred_check
    _
  $region19: #{ae_forward.18} parent=0 // pred_check_branch
    %1027 = sbr.rel (0) target = $region21
  $region20: #{ae_forward.18} parent=0 // pred_region
    _
  $region21: #{ae_forward.18} parent=0 // pred_fallthru
    _

// kernel: ae_forward.19
$region0: #{ae_forward.19}
  #allocation0 [shape = 'u32[]', space=smem, size = 0x4, offset = 0x4, fixed_abs, tag = 'smem constant byte address 0x4 - core index']
  #allocation1 [shape = 'u32[72,128]{1,0:T(1,128)}', space=vmem, size = 0x9000, scoped, tag = 'internal scratch']
  %s0 = inlined_call_operand.vmem [shape: bf16[512,512], index: 0, kind: input, shape index: {}]
  %s1 = inlined_call_operand.vmem [shape: bf16[512,128], index: 1, kind: input, shape index: {}]
  %s2 = inlined_call_operand.vmem [shape: f32[1,128], index: 2, kind: input, shape index: {}]
  %s3 = inlined_call_operand.vmem [shape: f32[512,128], index: 3, kind: output, shape index: {}]
  %s4 = sld [smem:[#allocation0]]
  $region45: #{ae_forward.19} parent=0
    _
  %s6 = ssub.s32 1, %s4
  %s7 = scalar_select 0, %s6, %s4
  loop: start=0, step=1, limit=4
  $region2: #{ae_forward.19} parent=0 // loop_pre_header
    _
  $region3: #{ae_forward.19} parent=0 // loop_header
    %s9 = sphi 0, %s13
    %p10 = scmp.ge.s32.totalorder %s9, 4
    %s19 = sphi 0, %s21
    %s22 = sphi 0, %s19
    %s23 = sphi 0, %s22
    %s39 = sphi 0, %s23
    %s43 = sphi 0, %s43
    %s45 = sphi 0, %s43
    %s46 = sphi 0, %s45
    %s60 = sphi 0, %s46
    %s64 = sphi 0, %s64
    %s66 = sphi 0, %s64
    %s67 = sphi 0, %s66
    %s81 = sphi 0, %s67
    %s87 = sphi 0, %s89
    %s90 = sphi 0, %s87
    %s91 = sphi 0, %s90
    %s107 = sphi 0, %s91
  $region4: #{ae_forward.19} parent=0 // loop_header_branch
    %12 = sbr.rel (%p10) target = $region8
  $region5: #{ae_forward.19} parent=0 // loop_body
    %s14 = ssub.s32 %s9, 1
    %s15 = ssub.s32 %s9, 2
    %s16 = sadd.s32 %s9, 1
    %s17 = ssub.s32 %s9, %s16
    %p18 = scmp.eq.s32.totalorder %s17, 0
    %s20 = sadd.s32 %s19, 1
    %s21 = scalar_select %p18, %s19, %s20
    %p24 = pneg %p18
    %p25 = scmp.eq.s32.totalorder %s9, 1
    %p26 = por %p24, %p25
    %p27 = scmp.ne.s32.totalorder %s19, %s22
    %p28 = scmp.eq.s32.totalorder %s9, 0
    %p29 = por %p27, %p28
    %p30 = scmp.ne.s32.totalorder %s19, %s22
    %p31 = scmp.eq.s32.totalorder %s14, 1
    %p32 = por %p30, %p31
    %p33 = scmp.ne.s32.totalorder %s22, %s23
    %p34 = scmp.eq.s32.totalorder %s14, 0
    %p35 = por %p33, %p34
    %p36 = scmp.ne.s32.totalorder %s22, %s23
    %p37 = scmp.eq.s32.totalorder %s15, 1
    %p38 = por %p36, %p37
    %p40 = scmp.ne.s32.totalorder %s23, %s39
    %p41 = scmp.eq.s32.totalorder %s15, 0
    %p42 = por %p40, %p41
    %s44 = sadd.s32 %s43, 1
    %p47 = scmp.eq.s32.totalorder %s9, 1
    %p48 = scmp.ne.s32.totalorder %s43, %s45
    %p49 = scmp.eq.s32.totalorder %s9, 0
    %p50 = por %p48, %p49
    %p51 = scmp.ne.s32.totalorder %s43, %s45
    %p52 = scmp.eq.s32.totalorder %s14, 1
    %p53 = por %p51, %p52
    %p54 = scmp.ne.s32.totalorder %s45, %s46
    %p55 = scmp.eq.s32.totalorder %s14, 0
    %p56 = por %p54, %p55
    %p57 = scmp.ne.s32.totalorder %s45, %s46
    %p58 = scmp.eq.s32.totalorder %s15, 1
    %p59 = por %p57, %p58
    %p61 = scmp.ne.s32.totalorder %s46, %s60
    %p62 = scmp.eq.s32.totalorder %s15, 0
    %p63 = por %p61, %p62
    %s65 = sadd.s32 %s64, 1
    %p68 = scmp.eq.s32.totalorder %s9, 1
    %p69 = scmp.ne.s32.totalorder %s64, %s66
    %p70 = scmp.eq.s32.totalorder %s9, 0
    %p71 = por %p69, %p70
    %p72 = scmp.ne.s32.totalorder %s64, %s66
    %p73 = scmp.eq.s32.totalorder %s14, 1
    %p74 = por %p72, %p73
    %p75 = scmp.ne.s32.totalorder %s66, %s67
    %p76 = scmp.eq.s32.totalorder %s14, 0
    %p77 = por %p75, %p76
    %p78 = scmp.ne.s32.totalorder %s66, %s67
    %p79 = scmp.eq.s32.totalorder %s15, 1
    %p80 = por %p78, %p79
    %p82 = scmp.ne.s32.totalorder %s67, %s81
    %p83 = scmp.eq.s32.totalorder %s15, 0
    %p84 = por %p82, %p83
    %s85 = ssub.s32 %s9, %s16
    %p86 = scmp.eq.s32.totalorder %s85, 0
    %s88 = sadd.s32 %s87, 1
    %s89 = scalar_select %p86, %s87, %s88
    %p92 = pneg %p86
    %p93 = scmp.eq.s32.totalorder %s9, 1
    %p94 = por %p92, %p93
    %p95 = scmp.ne.s32.totalorder %s87, %s90
    %p96 = scmp.eq.s32.totalorder %s9, 0
    %p97 = por %p95, %p96
    %p98 = scmp.ne.s32.totalorder %s87, %s90
    %p99 = scmp.eq.s32.totalorder %s14, 1
    %p100 = por %p98, %p99
    %p101 = scmp.ne.s32.totalorder %s90, %s91
    %p102 = scmp.eq.s32.totalorder %s14, 0
    %p103 = por %p101, %p102
    %p104 = scmp.ne.s32.totalorder %s90, %s91
    %p105 = scmp.eq.s32.totalorder %s15, 1
    %p106 = por %p104, %p105
    %p108 = scmp.ne.s32.totalorder %s91, %s107
    %p109 = scmp.eq.s32.totalorder %s15, 0
    %p110 = por %p108, %p109
    %p111 = scmp.le.s32.totalorder 1, %s9
    %p112 = scmp.lt.s32.totalorder %s9, 3
    %p113 = pnand %p111, %p112
    %p114 = pneg %p113
    // Predicated region
    $region9: #{ae_forward.19} parent=5 // pred_check
      _
    $region10: #{ae_forward.19} parent=5 // pred_check_branch
      %116 = sbr.rel (%p113) target = $region12
    $region11: #{ae_forward.19} parent=5 // pred_region
      %s117 = ssub.s32 %s9, 1
      // Predicated region
      $region13: #{ae_forward.19} parent=11 // pred_check
        %p118 = pneg %p56
      $region14: #{ae_forward.19} parent=11 // pred_check_branch
        %120 = sbr.rel (%p118) target = $region16
      $region15: #{ae_forward.19} parent=11 // pred_region
        _
      $region16: #{ae_forward.19} parent=11 // pred_fallthru
        _
      // Predicated region
      $region17: #{ae_forward.19} parent=11 // pred_check
        %p121 = pneg %p77
      $region18: #{ae_forward.19} parent=11 // pred_check_branch
        %123 = sbr.rel (%p121) target = $region20
      $region19: #{ae_forward.19} parent=11 // pred_region
        _
      $region20: #{ae_forward.19} parent=11 // pred_fallthru
        _
    $region12: #{ae_forward.19} parent=5 // pred_fallthru
      _
    %p124 = scmp.lt.s32.totalorder %s9, 2
    // Predicated region
    $region21: #{ae_forward.19} parent=5 // pred_check
      %p125 = pneg %p124
    $region22: #{ae_forward.19} parent=5 // pred_check_branch
      %127 = sbr.rel (%p125) target = $region24
    $region23: #{ae_forward.19} parent=5 // pred_region
      // Predicated region
      $region25: #{ae_forward.19} parent=23 // pred_check
        %p128 = pneg %p29
      $region26: #{ae_forward.19} parent=23 // pred_check_branch
        %130 = sbr.rel (%p128) target = $region28
      $region27: #{ae_forward.19} parent=23 // pred_region
        %s131 = smul.u32 32, %s9
        %p132 = scmp.lt.s32.totalorder %s131, 63
        %s133 = scalar_select %p132, %s131, 63
        %s134 = smul.addr %s133, 4
        %s135 = smul.addr %s134, 4
        %s136 = scalar_lea.vmem %s0, %s135
        %s137 = smul.u32 32, %s9
      $region28: #{ae_forward.19} parent=23 // pred_fallthru
        _
    $region24: #{ae_forward.19} parent=5 // pred_fallthru
      _
    %p138 = scmp.le.s32.totalorder 1, %s9
    %p139 = scmp.lt.s32.totalorder %s9, 3
    %p140 = pnand %p138, %p139
    %p141 = pneg %p140
    // Predicated region
    $region29: #{ae_forward.19} parent=5 // pred_check
      _
    $region30: #{ae_forward.19} parent=5 // pred_check_branch
      %143 = sbr.rel (%p140) target = $region32
    $region31: #{ae_forward.19} parent=5 // pred_region
      %s144 = ssub.s32 %s9, 1
      %s145 = smul.u32 32, %s14
      %p146 = scmp.lt.s32.totalorder %s145, 63
      %s147 = scalar_select %p146, %s145, 63
      %s148 = smul.addr %s147, 4
      %s149 = smul.addr %s148, 4
      %s150 = scalar_lea.vmem %s0, %s149
      %p151 = pneg %p35
      %p152 = pneg %p32
      %p153 = pneg %p56
      %p154 = pneg %p53
      %p155 = pneg %p77
      %p156 = pneg %p74
      %p157 = pneg %p103
      %p158 = pneg %p100
      %s159 = smul.u32 32, %s14
      %p160 = scmp.lt.s32.totalorder %s159, 63
      %s161 = scalar_select %p160, %s159, 63
      %s162 = smul.addr %s161, 8
      %s163 = scalar_lea.vmem %s3, %s162
      %s164 = smul.u32 32, %s14
      %p165 = scmp.lt.s32.totalorder %s164, 63
      %s166 = scalar_select %p165, %s164, 63
      %s167 = smul.addr %s166, 4
      %s168 = smul.addr %s167, 4
      %s169 = scalar_lea.vmem %s0, %s168
      %s170 = smul.u32 32, %s14
      %s171 = smul.u32 32, %s14
      %p172 = scmp.lt.s32.totalorder %s171, 63
      %s173 = scalar_select %p172, %s171, 63
      %s174 = smul.addr %s173, 8
      %s175 = scalar_lea.vmem %s3, %s174
      %s176 = smul.u32 32, %s14
      %v177 = vld [vmem:[%s169] sm:$0xff]
      %v178 = vld [vmem:[%s169 + $0x8] sm:$0xff]
      %v179 = vld [vmem:[%s169 + $0x10] sm:$0xff]
      %v180 = vld [vmem:[%s169 + $0x18] sm:$0xff]
      %v181 = vld [vmem:[%s169 + $0x20] sm:$0xff]
      %v182 = vld [vmem:[%s169 + $0x28] sm:$0xff]
      %v183 = vld [vmem:[%s169 + $0x30] sm:$0xff]
      %v184 = vld [vmem:[%s169 + $0x38] sm:$0xff]
      %v185 = vld [vmem:[%s169 + $0x40] sm:$0xff]
      %v186 = vld [vmem:[%s169 + $0x48] sm:$0xff]
      %v187 = vld [vmem:[%s169 + $0x50] sm:$0xff]
      %v188 = vld [vmem:[%s169 + $0x58] sm:$0xff]
      %v189 = vld [vmem:[%s169 + $0x60] sm:$0xff]
      %v190 = vld [vmem:[%s169 + $0x68] sm:$0xff]
      %v191 = vld [vmem:[%s169 + $0x70] sm:$0xff]
      %v192 = vld [vmem:[%s169 + $0x78] sm:$0xff]
      %v193 = vld [vmem:[%s169 + $0x80] sm:$0xff]
      %v194 = vld [vmem:[%s169 + $0x88] sm:$0xff]
      %v195 = vld [vmem:[%s169 + $0x90] sm:$0xff]
      %v196 = vld [vmem:[%s169 + $0x98] sm:$0xff]
      %v197 = vld [vmem:[%s169 + $0xa0] sm:$0xff]
      %v198 = vld [vmem:[%s169 + $0xa8] sm:$0xff]
      %v199 = vld [vmem:[%s169 + $0xb0] sm:$0xff]
      %v200 = vld [vmem:[%s169 + $0xb8] sm:$0xff]
      %v201 = vld [vmem:[%s169 + $0xc0] sm:$0xff]
      %v202 = vld [vmem:[%s169 + $0xc8] sm:$0xff]
      %v203 = vld [vmem:[%s169 + $0xd0] sm:$0xff]
      %v204 = vld [vmem:[%s169 + $0xd8] sm:$0xff]
      %v205 = vld [vmem:[%s169 + $0xe0] sm:$0xff]
      %v206 = vld [vmem:[%s169 + $0xe8] sm:$0xff]
      %v207 = vld [vmem:[%s169 + $0xf0] sm:$0xff]
      %v208 = vld [vmem:[%s169 + $0xf8] sm:$0xff]
      %v209 = vld [vmem:[%s169 + $0x100] sm:$0xff]
      %v210 = vld [vmem:[%s169 + $0x108] sm:$0xff]
      %v211 = vld [vmem:[%s169 + $0x110] sm:$0xff]
      %v212 = vld [vmem:[%s169 + $0x118] sm:$0xff]
      %v213 = vld [vmem:[%s169 + $0x120] sm:$0xff]
      %v214 = vld [vmem:[%s169 + $0x128] sm:$0xff]
      %v215 = vld [vmem:[%s169 + $0x130] sm:$0xff]
      %v216 = vld [vmem:[%s169 + $0x138] sm:$0xff]
      %v217 = vld [vmem:[%s169 + $0x140] sm:$0xff]
      %v218 = vld [vmem:[%s169 + $0x148] sm:$0xff]
      %v219 = vld [vmem:[%s169 + $0x150] sm:$0xff]
      %v220 = vld [vmem:[%s169 + $0x158] sm:$0xff]
      %v221 = vld [vmem:[%s169 + $0x160] sm:$0xff]
      %v222 = vld [vmem:[%s169 + $0x168] sm:$0xff]
      %v223 = vld [vmem:[%s169 + $0x170] sm:$0xff]
      %v224 = vld [vmem:[%s169 + $0x178] sm:$0xff]
      %v225 = vld [vmem:[%s169 + $0x180] sm:$0xff]
      %v226 = vld [vmem:[%s169 + $0x188] sm:$0xff]
      %v227 = vld [vmem:[%s169 + $0x190] sm:$0xff]
      %v228 = vld [vmem:[%s169 + $0x198] sm:$0xff]
      %v229 = vld [vmem:[%s169 + $0x1a0] sm:$0xff]
      %v230 = vld [vmem:[%s169 + $0x1a8] sm:$0xff]
      %v231 = vld [vmem:[%s169 + $0x1b0] sm:$0xff]
      %v232 = vld [vmem:[%s169 + $0x1b8] sm:$0xff]
      %v233 = vld [vmem:[%s169 + $0x1c0] sm:$0xff]
      %v234 = vld [vmem:[%s169 + $0x1c8] sm:$0xff]
      %v235 = vld [vmem:[%s169 + $0x1d0] sm:$0xff]
      %v236 = vld [vmem:[%s169 + $0x1d8] sm:$0xff]
      %v237 = vld [vmem:[%s169 + $0x1e0] sm:$0xff]
      %v238 = vld [vmem:[%s169 + $0x1e8] sm:$0xff]
      %v239 = vld [vmem:[%s169 + $0x1f0] sm:$0xff]
      %v240 = vld [vmem:[%s169 + $0x1f8] sm:$0xff]
      %v241 = vld [vmem:[%s1] sm:$0xf]
      %v242 = vld [vmem:[%s1 + $0x4] sm:$0xf]
      %v243 = vld [vmem:[%s1 + $0x8] sm:$0xf]
      %v244 = vld [vmem:[%s1 + $0xc] sm:$0xf]
      %v245 = vld [vmem:[%s1 + $0x10] sm:$0xf]
      %v246 = vld [vmem:[%s1 + $0x14] sm:$0xf]
      %v247 = vld [vmem:[%s1 + $0x18] sm:$0xf]
      %v248 = vld [vmem:[%s1 + $0x1c] sm:$0xf]
      %v249 = vld [vmem:[%s1 + $0x20] sm:$0xf]
      %v250 = vld [vmem:[%s1 + $0x24] sm:$0xf]
      %v251 = vld [vmem:[%s1 + $0x28] sm:$0xf]
      %v252 = vld [vmem:[%s1 + $0x2c] sm:$0xf]
      %v253 = vld [vmem:[%s1 + $0x30] sm:$0xf]
      %v254 = vld [vmem:[%s1 + $0x34] sm:$0xf]
      %v255 = vld [vmem:[%s1 + $0x38] sm:$0xf]
      %v256 = vld [vmem:[%s1 + $0x3c] sm:$0xf]
      %v257 = vld [vmem:[%s1 + $0x40] sm:$0xf]
      %v258 = vld [vmem:[%s1 + $0x44] sm:$0xf]
      %v259 = vld [vmem:[%s1 + $0x48] sm:$0xf]
      %v260 = vld [vmem:[%s1 + $0x4c] sm:$0xf]
      %v261 = vld [vmem:[%s1 + $0x50] sm:$0xf]
      %v262 = vld [vmem:[%s1 + $0x54] sm:$0xf]
      %v263 = vld [vmem:[%s1 + $0x58] sm:$0xf]
      %v264 = vld [vmem:[%s1 + $0x5c] sm:$0xf]
      %v265 = vld [vmem:[%s1 + $0x60] sm:$0xf]
      %v266 = vld [vmem:[%s1 + $0x64] sm:$0xf]
      %v267 = vld [vmem:[%s1 + $0x68] sm:$0xf]
      %v268 = vld [vmem:[%s1 + $0x6c] sm:$0xf]
      %v269 = vld [vmem:[%s1 + $0x70] sm:$0xf]
      %v270 = vld [vmem:[%s1 + $0x74] sm:$0xf]
      %v271 = vld [vmem:[%s1 + $0x78] sm:$0xf]
      %v272 = vld [vmem:[%s1 + $0x7c] sm:$0xf]
      %v273 = vld [vmem:[%s1 + $0x80] sm:$0xf]
      %v274 = vld [vmem:[%s1 + $0x84] sm:$0xf]
      %v275 = vld [vmem:[%s1 + $0x88] sm:$0xf]
      %v276 = vld [vmem:[%s1 + $0x8c] sm:$0xf]
      %v277 = vld [vmem:[%s1 + $0x90] sm:$0xf]
      %v278 = vld [vmem:[%s1 + $0x94] sm:$0xf]
      %v279 = vld [vmem:[%s1 + $0x98] sm:$0xf]
      %v280 = vld [vmem:[%s1 + $0x9c] sm:$0xf]
      %v281 = vld [vmem:[%s1 + $0xa0] sm:$0xf]
      %v282 = vld [vmem:[%s1 + $0xa4] sm:$0xf]
      %v283 = vld [vmem:[%s1 + $0xa8] sm:$0xf]
      %v284 = vld [vmem:[%s1 + $0xac] sm:$0xf]
      %v285 = vld [vmem:[%s1 + $0xb0] sm:$0xf]
      %v286 = vld [vmem:[%s1 + $0xb4] sm:$0xf]
      %v287 = vld [vmem:[%s1 + $0xb8] sm:$0xf]
      %v288 = vld [vmem:[%s1 + $0xbc] sm:$0xf]
      %v289 = vld [vmem:[%s1 + $0xc0] sm:$0xf]
      %v290 = vld [vmem:[%s1 + $0xc4] sm:$0xf]
      %v291 = vld [vmem:[%s1 + $0xc8] sm:$0xf]
      %v292 = vld [vmem:[%s1 + $0xcc] sm:$0xf]
      %v293 = vld [vmem:[%s1 + $0xd0] sm:$0xf]
      %v294 = vld [vmem:[%s1 + $0xd4] sm:$0xf]
      %v295 = vld [vmem:[%s1 + $0xd8] sm:$0xf]
      %v296 = vld [vmem:[%s1 + $0xdc] sm:$0xf]
      %v297 = vld [vmem:[%s1 + $0xe0] sm:$0xf]
      %v298 = vld [vmem:[%s1 + $0xe4] sm:$0xf]
      %v299 = vld [vmem:[%s1 + $0xe8] sm:$0xf]
      %v300 = vld [vmem:[%s1 + $0xec] sm:$0xf]
      %v301 = vld [vmem:[%s1 + $0xf0] sm:$0xf]
      %v302 = vld [vmem:[%s1 + $0xf4] sm:$0xf]
      %v303 = vld [vmem:[%s1 + $0xf8] sm:$0xf]
      %v304 = vld [vmem:[%s1 + $0xfc] sm:$0xf]
      %v305 = vld [vmem:[%s2] sm:$0x1]
      %v307 = vperm.slane %v305, 0
      %v373 = vunpack.c.l.b16 %v177
      %v374 = vunpack.c.h.b16 %v177
      %v375 = vunpack.c.l.b16 %v178
      %v376 = vunpack.c.h.b16 %v178
      %v377 = vunpack.c.l.b16 %v179
      %v378 = vunpack.c.h.b16 %v179
      %v379 = vunpack.c.l.b16 %v180
      %v380 = vunpack.c.h.b16 %v180
      %v381 = vunpack.c.l.b16 %v181
      %v382 = vunpack.c.h.b16 %v181
      %v383 = vunpack.c.l.b16 %v182
      %v384 = vunpack.c.h.b16 %v182
      %v385 = vunpack.c.l.b16 %v183
      %v386 = vunpack.c.h.b16 %v183
      %v387 = vunpack.c.l.b16 %v184
      %v388 = vunpack.c.h.b16 %v184
      %v389 = vunpack.c.l.b16 %v185
      %v390 = vunpack.c.h.b16 %v185
      %v391 = vunpack.c.l.b16 %v186
      %v392 = vunpack.c.h.b16 %v186
      %v393 = vunpack.c.l.b16 %v187
      %v394 = vunpack.c.h.b16 %v187
      %v395 = vunpack.c.l.b16 %v188
      %v396 = vunpack.c.h.b16 %v188
      %v397 = vunpack.c.l.b16 %v189
      %v398 = vunpack.c.h.b16 %v189
      %v399 = vunpack.c.l.b16 %v190
      %v400 = vunpack.c.h.b16 %v190
      %v401 = vunpack.c.l.b16 %v191
      %v402 = vunpack.c.h.b16 %v191
      %v403 = vunpack.c.l.b16 %v192
      %v404 = vunpack.c.h.b16 %v192
      %v405 = vunpack.c.l.b16 %v193
      %v406 = vunpack.c.h.b16 %v193
      %v407 = vunpack.c.l.b16 %v194
      %v408 = vunpack.c.h.b16 %v194
      %v409 = vunpack.c.l.b16 %v195
      %v410 = vunpack.c.h.b16 %v195
      %v411 = vunpack.c.l.b16 %v196
      %v412 = vunpack.c.h.b16 %v196
      %v413 = vunpack.c.l.b16 %v197
      %v414 = vunpack.c.h.b16 %v197
      %v415 = vunpack.c.l.b16 %v198
      %v416 = vunpack.c.h.b16 %v198
      %v417 = vunpack.c.l.b16 %v199
      %v418 = vunpack.c.h.b16 %v199
      %v419 = vunpack.c.l.b16 %v200
      %v420 = vunpack.c.h.b16 %v200
      %v421 = vunpack.c.l.b16 %v201
      %v422 = vunpack.c.h.b16 %v201
      %v423 = vunpack.c.l.b16 %v202
      %v424 = vunpack.c.h.b16 %v202
      %v425 = vunpack.c.l.b16 %v203
      %v426 = vunpack.c.h.b16 %v203
      %v427 = vunpack.c.l.b16 %v204
      %v428 = vunpack.c.h.b16 %v204
      %v429 = vunpack.c.l.b16 %v205
      %v430 = vunpack.c.h.b16 %v205
      %v431 = vunpack.c.l.b16 %v206
      %v432 = vunpack.c.h.b16 %v206
      %v433 = vunpack.c.l.b16 %v207
      %v434 = vunpack.c.h.b16 %v207
      %v435 = vunpack.c.l.b16 %v208
      %v436 = vunpack.c.h.b16 %v208
      %v437 = vunpack.c.l.b16 %v209
      %v438 = vunpack.c.h.b16 %v209
      %v439 = vunpack.c.l.b16 %v210
      %v440 = vunpack.c.h.b16 %v210
      %v441 = vunpack.c.l.b16 %v211
      %v442 = vunpack.c.h.b16 %v211
      %v443 = vunpack.c.l.b16 %v212
      %v444 = vunpack.c.h.b16 %v212
      %v445 = vunpack.c.l.b16 %v213
      %v446 = vunpack.c.h.b16 %v213
      %v447 = vunpack.c.l.b16 %v214
      %v448 = vunpack.c.h.b16 %v214
      %v449 = vunpack.c.l.b16 %v215
      %v450 = vunpack.c.h.b16 %v215
      %v451 = vunpack.c.l.b16 %v216
      %v452 = vunpack.c.h.b16 %v216
      %v453 = vunpack.c.l.b16 %v217
      %v454 = vunpack.c.h.b16 %v217
      %v455 = vunpack.c.l.b16 %v218
      %v456 = vunpack.c.h.b16 %v218
      %v457 = vunpack.c.l.b16 %v219
      %v458 = vunpack.c.h.b16 %v219
      %v459 = vunpack.c.l.b16 %v220
      %v460 = vunpack.c.h.b16 %v220
      %v461 = vunpack.c.l.b16 %v221
      %v462 = vunpack.c.h.b16 %v221
      %v463 = vunpack.c.l.b16 %v222
      %v464 = vunpack.c.h.b16 %v222
      %v465 = vunpack.c.l.b16 %v223
      %v466 = vunpack.c.h.b16 %v223
      %v467 = vunpack.c.l.b16 %v224
      %v468 = vunpack.c.h.b16 %v224
      %v469 = vunpack.c.l.b16 %v225
      %v470 = vunpack.c.h.b16 %v225
      %v471 = vunpack.c.l.b16 %v226
      %v472 = vunpack.c.h.b16 %v226
      %v473 = vunpack.c.l.b16 %v227
      %v474 = vunpack.c.h.b16 %v227
      %v475 = vunpack.c.l.b16 %v228
      %v476 = vunpack.c.h.b16 %v228
      %v477 = vunpack.c.l.b16 %v229
      %v478 = vunpack.c.h.b16 %v229
      %v479 = vunpack.c.l.b16 %v230
      %v480 = vunpack.c.h.b16 %v230
      %v481 = vunpack.c.l.b16 %v231
      %v482 = vunpack.c.h.b16 %v231
      %v483 = vunpack.c.l.b16 %v232
      %v484 = vunpack.c.h.b16 %v232
      %v485 = vunpack.c.l.b16 %v233
      %v486 = vunpack.c.h.b16 %v233
      %v487 = vunpack.c.l.b16 %v234
      %v488 = vunpack.c.h.b16 %v234
      %v489 = vunpack.c.l.b16 %v235
      %v490 = vunpack.c.h.b16 %v235
      %v491 = vunpack.c.l.b16 %v236
      %v492 = vunpack.c.h.b16 %v236
      %v493 = vunpack.c.l.b16 %v237
      %v494 = vunpack.c.h.b16 %v237
      %v495 = vunpack.c.l.b16 %v238
      %v496 = vunpack.c.h.b16 %v238
      %v497 = vunpack.c.l.b16 %v239
      %v498 = vunpack.c.h.b16 %v239
      %v499 = vunpack.c.l.b16 %v240
      %v500 = vunpack.c.h.b16 %v240
      %v501 = vpack.c.b16 %v377, %v373
      %v502 = vpack.c.b16 %v378, %v374
      %v503 = vpack.c.b16 %v379, %v375
      %v504 = vpack.c.b16 %v380, %v376
      %v505 = vpack.c.b16 %v385, %v381
      %v506 = vpack.c.b16 %v386, %v382
      %v507 = vpack.c.b16 %v387, %v383
      %v508 = vpack.c.b16 %v388, %v384
      %v509 = vpack.c.b16 %v393, %v389
      %v510 = vpack.c.b16 %v394, %v390
      %v511 = vpack.c.b16 %v395, %v391
      %v512 = vpack.c.b16 %v396, %v392
      %v513 = vpack.c.b16 %v401, %v397
      %v514 = vpack.c.b16 %v402, %v398
      %v515 = vpack.c.b16 %v403, %v399
      %v516 = vpack.c.b16 %v404, %v400
      %v517 = vpack.c.b16 %v409, %v405
      %v518 = vpack.c.b16 %v410, %v406
      %v519 = vpack.c.b16 %v411, %v407
      %v520 = vpack.c.b16 %v412, %v408
      %v521 = vpack.c.b16 %v417, %v413
      %v522 = vpack.c.b16 %v418, %v414
      %v523 = vpack.c.b16 %v419, %v415
      %v524 = vpack.c.b16 %v420, %v416
      %v525 = vpack.c.b16 %v425, %v421
      %v526 = vpack.c.b16 %v426, %v422
      %v527 = vpack.c.b16 %v427, %v423
      %v528 = vpack.c.b16 %v428, %v424
      %v529 = vpack.c.b16 %v433, %v429
      %v530 = vpack.c.b16 %v434, %v430
      %v531 = vpack.c.b16 %v435, %v431
      %v532 = vpack.c.b16 %v436, %v432
      %v533 = vpack.c.b16 %v441, %v437
      %v534 = vpack.c.b16 %v442, %v438
      %v535 = vpack.c.b16 %v443, %v439
      %v536 = vpack.c.b16 %v444, %v440
      %v537 = vpack.c.b16 %v449, %v445
      %v538 = vpack.c.b16 %v450, %v446
      %v539 = vpack.c.b16 %v451, %v447
      %v540 = vpack.c.b16 %v452, %v448
      %v541 = vpack.c.b16 %v457, %v453
      %v542 = vpack.c.b16 %v458, %v454
      %v543 = vpack.c.b16 %v459, %v455
      %v544 = vpack.c.b16 %v460, %v456
      %v545 = vpack.c.b16 %v465, %v461
      %v546 = vpack.c.b16 %v466, %v462
      %v547 = vpack.c.b16 %v467, %v463
      %v548 = vpack.c.b16 %v468, %v464
      %v549 = vpack.c.b16 %v473, %v469
      %v550 = vpack.c.b16 %v474, %v470
      %v551 = vpack.c.b16 %v475, %v471
      %v552 = vpack.c.b16 %v476, %v472
      %v553 = vpack.c.b16 %v481, %v477
      %v554 = vpack.c.b16 %v482, %v478
      %v555 = vpack.c.b16 %v483, %v479
      %v556 = vpack.c.b16 %v484, %v480
      %v557 = vpack.c.b16 %v489, %v485
      %v558 = vpack.c.b16 %v490, %v486
      %v559 = vpack.c.b16 %v491, %v487
      %v560 = vpack.c.b16 %v492, %v488
      %v561 = vpack.c.b16 %v497, %v493
      %v562 = vpack.c.b16 %v498, %v494
      %v563 = vpack.c.b16 %v499, %v495
      %v564 = vpack.c.b16 %v500, %v496
      %v693 = vunpack.c.l.b16 %v241
      %v694 = vunpack.c.l.b16 %v242
      %v695 = vunpack.c.l.b16 %v243
      %v696 = vunpack.c.l.b16 %v244
      %v697 = vunpack.c.l.b16 %v245
      %v698 = vunpack.c.l.b16 %v246
      %v699 = vunpack.c.l.b16 %v247
      %v700 = vunpack.c.l.b16 %v248
      %v701 = vunpack.c.l.b16 %v249
      %v702 = vunpack.c.l.b16 %v250
      %v703 = vunpack.c.l.b16 %v251
      %v704 = vunpack.c.l.b16 %v252
      %v705 = vunpack.c.l.b16 %v253
      %v706 = vunpack.c.l.b16 %v254
      %v707 = vunpack.c.l.b16 %v255
      %v708 = vunpack.c.l.b16 %v256
      %v709 = vunpack.c.l.b16 %v257
      %v710 = vunpack.c.l.b16 %v258
      %v711 = vunpack.c.l.b16 %v259
      %v712 = vunpack.c.l.b16 %v260
      %v713 = vunpack.c.l.b16 %v261
      %v714 = vunpack.c.l.b16 %v262
      %v715 = vunpack.c.l.b16 %v263
      %v716 = vunpack.c.l.b16 %v264
      %v717 = vunpack.c.l.b16 %v265
      %v718 = vunpack.c.l.b16 %v266
      %v719 = vunpack.c.l.b16 %v267
      %v720 = vunpack.c.l.b16 %v268
      %v721 = vunpack.c.l.b16 %v269
      %v722 = vunpack.c.l.b16 %v270
      %v723 = vunpack.c.l.b16 %v271
      %v724 = vunpack.c.l.b16 %v272
      %v725 = vunpack.c.l.b16 %v273
      %v726 = vunpack.c.l.b16 %v274
      %v727 = vunpack.c.l.b16 %v275
      %v728 = vunpack.c.l.b16 %v276
      %v729 = vunpack.c.l.b16 %v277
      %v730 = vunpack.c.l.b16 %v278
      %v731 = vunpack.c.l.b16 %v279
      %v732 = vunpack.c.l.b16 %v280
      %v733 = vunpack.c.l.b16 %v281
      %v734 = vunpack.c.l.b16 %v282
      %v735 = vunpack.c.l.b16 %v283
      %v736 = vunpack.c.l.b16 %v284
      %v737 = vunpack.c.l.b16 %v285
      %v738 = vunpack.c.l.b16 %v286
      %v739 = vunpack.c.l.b16 %v287
      %v740 = vunpack.c.l.b16 %v288
      %v741 = vunpack.c.l.b16 %v289
      %v742 = vunpack.c.l.b16 %v290
      %v743 = vunpack.c.l.b16 %v291
      %v744 = vunpack.c.l.b16 %v292
      %v745 = vunpack.c.l.b16 %v293
      %v746 = vunpack.c.l.b16 %v294
      %v747 = vunpack.c.l.b16 %v295
      %v748 = vunpack.c.l.b16 %v296
      %v749 = vunpack.c.l.b16 %v297
      %v750 = vunpack.c.l.b16 %v298
      %v751 = vunpack.c.l.b16 %v299
      %v752 = vunpack.c.l.b16 %v300
      %v753 = vunpack.c.l.b16 %v301
      %v754 = vunpack.c.l.b16 %v302
      %v755 = vunpack.c.l.b16 %v303
      %v756 = vunpack.c.l.b16 %v304
      %v757 = vpack.c.b16 %v694, %v693
      %v758 = vpack.c.b16 %v696, %v695
      %v759 = vpack.c.b16 %v698, %v697
      %v760 = vpack.c.b16 %v700, %v699
      %v761 = vpack.c.b16 %v702, %v701
      %v762 = vpack.c.b16 %v704, %v703
      %v763 = vpack.c.b16 %v706, %v705
      %v764 = vpack.c.b16 %v708, %v707
      %v765 = vpack.c.b16 %v710, %v709
      %v766 = vpack.c.b16 %v712, %v711
      %v767 = vpack.c.b16 %v714, %v713
      %v768 = vpack.c.b16 %v716, %v715
      %v769 = vpack.c.b16 %v718, %v717
      %v770 = vpack.c.b16 %v720, %v719
      %v771 = vpack.c.b16 %v722, %v721
      %v772 = vpack.c.b16 %v724, %v723
      %v773 = vpack.c.b16 %v726, %v725
      %v774 = vpack.c.b16 %v728, %v727
      %v775 = vpack.c.b16 %v730, %v729
      %v776 = vpack.c.b16 %v732, %v731
      %v777 = vpack.c.b16 %v734, %v733
      %v778 = vpack.c.b16 %v736, %v735
      %v779 = vpack.c.b16 %v738, %v737
      %v780 = vpack.c.b16 %v740, %v739
      %v781 = vpack.c.b16 %v742, %v741
      %v782 = vpack.c.b16 %v744, %v743
      %v783 = vpack.c.b16 %v746, %v745
      %v784 = vpack.c.b16 %v748, %v747
      %v785 = vpack.c.b16 %v750, %v749
      %v786 = vpack.c.b16 %v752, %v751
      %v787 = vpack.c.b16 %v754, %v753
      %v788 = vpack.c.b16 %v756, %v755
      %821 = vmatpush.bf16.msra.mxu0 %v764
      %822 = vmatpush.bf16.msra.mxu0 %v763
      %823 = vmatpush.bf16.msra.mxu0 %v762
      %824 = vmatpush.bf16.msra.mxu0 %v761
      %825 = vmatpush.bf16.msra.mxu0 %v760
      %826 = vmatpush.bf16.msra.mxu0 %v759
      %827 = vmatpush.bf16.msra.mxu0 %v758
      %828 = vmatpush.bf16.msra.mxu0 %v757
      %829 = vmatmul.bf16.gmra.mxu0 %v501
      %v830 = vpop.f32.mrf.mxu0
      %v831 = vadd.f32 %v307, %v830
      %v832 = vpop.f32.mrf.mxu0
      %v833 = vadd.f32 %v307, %v832
      %834 = vmatmul.bf16.gmra.mxu0 %v505
      %v835 = vpop.f32.mrf.mxu0
      %v836 = vadd.f32 %v307, %v835
      %v837 = vpop.f32.mrf.mxu0
      %v838 = vadd.f32 %v307, %v837
      %839 = vmatmul.bf16.gmra.mxu0 %v509
      %v840 = vpop.f32.mrf.mxu0
      %v841 = vadd.f32 %v307, %v840
      %v842 = vpop.f32.mrf.mxu0
      %v843 = vadd.f32 %v307, %v842
      %844 = vmatmul.bf16.gmra.mxu0 %v513
      %v845 = vpop.f32.mrf.mxu0
      %v846 = vadd.f32 %v307, %v845
      %v847 = vpop.f32.mrf.mxu0
      %v848 = vadd.f32 %v307, %v847
      %849 = vmatmul.bf16.gmra.mxu0 %v517
      %v850 = vpop.f32.mrf.mxu0
      %v851 = vadd.f32 %v307, %v850
      %v852 = vpop.f32.mrf.mxu0
      %v853 = vadd.f32 %v307, %v852
      %854 = vmatmul.bf16.gmra.mxu0 %v521
      %v855 = vpop.f32.mrf.mxu0
      %v856 = vadd.f32 %v307, %v855
      %v857 = vpop.f32.mrf.mxu0
      %v858 = vadd.f32 %v307, %v857
      %859 = vmatmul.bf16.gmra.mxu0 %v525
      %v860 = vpop.f32.mrf.mxu0
      %v861 = vadd.f32 %v307, %v860
      %v862 = vpop.f32.mrf.mxu0
      %v863 = vadd.f32 %v307, %v862
      %864 = vmatmul.bf16.gmra.mxu0 %v529
      %v865 = vpop.f32.mrf.mxu0
      %v866 = vadd.f32 %v307, %v865
      %v867 = vpop.f32.mrf.mxu0
      %v868 = vadd.f32 %v307, %v867
      %869 = vmatmul.bf16.gmra.mxu0 %v533
      %v870 = vpop.f32.mrf.mxu0
      %v871 = vadd.f32 %v307, %v870
      %v872 = vpop.f32.mrf.mxu0
      %v873 = vadd.f32 %v307, %v872
      %874 = vmatmul.bf16.gmra.mxu0 %v537
      %v875 = vpop.f32.mrf.mxu0
      %v876 = vadd.f32 %v307, %v875
      %v877 = vpop.f32.mrf.mxu0
      %v878 = vadd.f32 %v307, %v877
      %879 = vmatmul.bf16.gmra.mxu0 %v541
      %v880 = vpop.f32.mrf.mxu0
      %v881 = vadd.f32 %v307, %v880
      %v882 = vpop.f32.mrf.mxu0
      %v883 = vadd.f32 %v307, %v882
      %884 = vmatmul.bf16.gmra.mxu0 %v545
      %v885 = vpop.f32.mrf.mxu0
      %v886 = vadd.f32 %v307, %v885
      %v887 = vpop.f32.mrf.mxu0
      %v888 = vadd.f32 %v307, %v887
      %889 = vmatmul.bf16.gmra.mxu0 %v549
      %v890 = vpop.f32.mrf.mxu0
      %v891 = vadd.f32 %v307, %v890
      %v892 = vpop.f32.mrf.mxu0
      %v893 = vadd.f32 %v307, %v892
      %894 = vmatmul.bf16.gmra.mxu0 %v553
      %v895 = vpop.f32.mrf.mxu0
      %v896 = vadd.f32 %v307, %v895
      %v897 = vpop.f32.mrf.mxu0
      %v898 = vadd.f32 %v307, %v897
      %899 = vmatmul.bf16.gmra.mxu0 %v557
      %v900 = vpop.f32.mrf.mxu0
      %v901 = vadd.f32 %v307, %v900
      %v902 = vpop.f32.mrf.mxu0
      %v903 = vadd.f32 %v307, %v902
      %904 = vmatmul.bf16.gmra.mxu0 %v561
      %v905 = vpop.f32.mrf.mxu0
      %v906 = vadd.f32 %v307, %v905
      %v907 = vpop.f32.mrf.mxu0
      %v908 = vadd.f32 %v307, %v907
      %909 = vdwg.mxu0
      %910 = vmatpush.bf16.msra.mxu0 %v772
      %911 = vmatpush.bf16.msra.mxu0 %v771
      %912 = vmatpush.bf16.msra.mxu0 %v770
      %913 = vmatpush.bf16.msra.mxu0 %v769
      %914 = vmatpush.bf16.msra.mxu0 %v768
      %915 = vmatpush.bf16.msra.mxu0 %v767
      %916 = vmatpush.bf16.msra.mxu0 %v766
      %917 = vmatpush.bf16.msra.mxu0 %v765
      %918 = vmatmul.bf16.gmra.mxu0 %v502
      %v919 = vpop.f32.mrf.mxu0
      %v920 = vadd.f32 %v831, %v919
      %v921 = vpop.f32.mrf.mxu0
      %v922 = vadd.f32 %v833, %v921
      %923 = vmatmul.bf16.gmra.mxu0 %v506
      %v924 = vpop.f32.mrf.mxu0
      %v925 = vadd.f32 %v836, %v924
      %v926 = vpop.f32.mrf.mxu0
      %v927 = vadd.f32 %v838, %v926
      %928 = vmatmul.bf16.gmra.mxu0 %v510
      %v929 = vpop.f32.mrf.mxu0
      %v930 = vadd.f32 %v841, %v929
      %v931 = vpop.f32.mrf.mxu0
      %v932 = vadd.f32 %v843, %v931
      %933 = vmatmul.bf16.gmra.mxu0 %v514
      %v934 = vpop.f32.mrf.mxu0
      %v935 = vadd.f32 %v846, %v934
      %v936 = vpop.f32.mrf.mxu0
      %v937 = vadd.f32 %v848, %v936
      %938 = vmatmul.bf16.gmra.mxu0 %v518
      %v939 = vpop.f32.mrf.mxu0
      %v940 = vadd.f32 %v851, %v939
      %v941 = vpop.f32.mrf.mxu0
      %v942 = vadd.f32 %v853, %v941
      %943 = vmatmul.bf16.gmra.mxu0 %v522
      %v944 = vpop.f32.mrf.mxu0
      %v945 = vadd.f32 %v856, %v944
      %v946 = vpop.f32.mrf.mxu0
      %v947 = vadd.f32 %v858, %v946
      %948 = vmatmul.bf16.gmra.mxu0 %v526
      %v949 = vpop.f32.mrf.mxu0
      %v950 = vadd.f32 %v861, %v949
      %v951 = vpop.f32.mrf.mxu0
      %v952 = vadd.f32 %v863, %v951
      %953 = vmatmul.bf16.gmra.mxu0 %v530
      %v954 = vpop.f32.mrf.mxu0
      %v955 = vadd.f32 %v866, %v954
      %v956 = vpop.f32.mrf.mxu0
      %v957 = vadd.f32 %v868, %v956
      %958 = vmatmul.bf16.gmra.mxu0 %v534
      %v959 = vpop.f32.mrf.mxu0
      %v960 = vadd.f32 %v871, %v959
      %v961 = vpop.f32.mrf.mxu0
      %v962 = vadd.f32 %v873, %v961
      %963 = vmatmul.bf16.gmra.mxu0 %v538
      %v964 = vpop.f32.mrf.mxu0
      %v965 = vadd.f32 %v876, %v964
      %v966 = vpop.f32.mrf.mxu0
      %v967 = vadd.f32 %v878, %v966
      %968 = vmatmul.bf16.gmra.mxu0 %v542
      %v969 = vpop.f32.mrf.mxu0
      %v970 = vadd.f32 %v881, %v969
      %v971 = vpop.f32.mrf.mxu0
      %v972 = vadd.f32 %v883, %v971
      %973 = vmatmul.bf16.gmra.mxu0 %v546
      %v974 = vpop.f32.mrf.mxu0
      %v975 = vadd.f32 %v886, %v974
      %v976 = vpop.f32.mrf.mxu0
      %v977 = vadd.f32 %v888, %v976
      %978 = vmatmul.bf16.gmra.mxu0 %v550
      %v979 = vpop.f32.mrf.mxu0
      %v980 = vadd.f32 %v891, %v979
      %v981 = vpop.f32.mrf.mxu0
      %v982 = vadd.f32 %v893, %v981
      %983 = vmatmul.bf16.gmra.mxu0 %v554
      %v984 = vpop.f32.mrf.mxu0
      %v985 = vadd.f32 %v896, %v984
      %v986 = vpop.f32.mrf.mxu0
      %v987 = vadd.f32 %v898, %v986
      %988 = vmatmul.bf16.gmra.mxu0 %v558
      %v989 = vpop.f32.mrf.mxu0
      %v990 = vadd.f32 %v901, %v989
      %v991 = vpop.f32.mrf.mxu0
      %v992 = vadd.f32 %v903, %v991
      %993 = vmatmul.bf16.gmra.mxu0 %v562
      %v994 = vpop.f32.mrf.mxu0
      %v995 = vadd.f32 %v906, %v994
      %v996 = vpop.f32.mrf.mxu0
      %v997 = vadd.f32 %v908, %v996
      %998 = vdwg.mxu0
      %999 = vmatpush.bf16.msra.mxu0 %v780
      %1000 = vmatpush.bf16.msra.mxu0 %v779
      %1001 = vmatpush.bf16.msra.mxu0 %v778
      %1002 = vmatpush.bf16.msra.mxu0 %v777
      %1003 = vmatpush.bf16.msra.mxu0 %v776
      %1004 = vmatpush.bf16.msra.mxu0 %v775
      %1005 = vmatpush.bf16.msra.mxu0 %v774
      %1006 = vmatpush.bf16.msra.mxu0 %v773
      %1007 = vmatmul.bf16.gmra.mxu0 %v503
      %v1008 = vpop.f32.mrf.mxu0
      %v1009 = vadd.f32 %v920, %v1008
      %v1010 = vpop.f32.mrf.mxu0
      %v1011 = vadd.f32 %v922, %v1010
      %1012 = vmatmul.bf16.gmra.mxu0 %v507
      %v1013 = vpop.f32.mrf.mxu0
      %v1014 = vadd.f32 %v925, %v1013
      %v1015 = vpop.f32.mrf.mxu0
      %v1016 = vadd.f32 %v927, %v1015
      %1017 = vmatmul.bf16.gmra.mxu0 %v511
      %v1018 = vpop.f32.mrf.mxu0
      %v1019 = vadd.f32 %v930, %v1018
      %v1020 = vpop.f32.mrf.mxu0
      %v1021 = vadd.f32 %v932, %v1020
      %1022 = vmatmul.bf16.gmra.mxu0 %v515
      %v1023 = vpop.f32.mrf.mxu0
      %v1024 = vadd.f32 %v935, %v1023
      %v1025 = vpop.f32.mrf.mxu0
      %v1026 = vadd.f32 %v937, %v1025
      %1027 = vmatmul.bf16.gmra.mxu0 %v519
      %v1028 = vpop.f32.mrf.mxu0
      %v1029 = vadd.f32 %v940, %v1028
      %v1030 = vpop.f32.mrf.mxu0
      %v1031 = vadd.f32 %v942, %v1030
      %1032 = vmatmul.bf16.gmra.mxu0 %v523
      %v1033 = vpop.f32.mrf.mxu0
      %v1034 = vadd.f32 %v945, %v1033
      %v1035 = vpop.f32.mrf.mxu0
      %v1036 = vadd.f32 %v947, %v1035
      %1037 = vmatmul.bf16.gmra.mxu0 %v527
      %v1038 = vpop.f32.mrf.mxu0
      %v1039 = vadd.f32 %v950, %v1038
      %v1040 = vpop.f32.mrf.mxu0
      %v1041 = vadd.f32 %v952, %v1040
      %1042 = vmatmul.bf16.gmra.mxu0 %v531
      %v1043 = vpop.f32.mrf.mxu0
      %v1044 = vadd.f32 %v955, %v1043
      %v1045 = vpop.f32.mrf.mxu0
      %v1046 = vadd.f32 %v957, %v1045
      %1047 = vmatmul.bf16.gmra.mxu0 %v535
      %v1048 = vpop.f32.mrf.mxu0
      %v1049 = vadd.f32 %v960, %v1048
      %v1050 = vpop.f32.mrf.mxu0
      %v1051 = vadd.f32 %v962, %v1050
      %1052 = vmatmul.bf16.gmra.mxu0 %v539
      %v1053 = vpop.f32.mrf.mxu0
      %v1054 = vadd.f32 %v965, %v1053
      %v1055 = vpop.f32.mrf.mxu0
      %v1056 = vadd.f32 %v967, %v1055
      %1057 = vmatmul.bf16.gmra.mxu0 %v543
      %v1058 = vpop.f32.mrf.mxu0
      %v1059 = vadd.f32 %v970, %v1058
      %v1060 = vpop.f32.mrf.mxu0
      %v1061 = vadd.f32 %v972, %v1060
      %1062 = vmatmul.bf16.gmra.mxu0 %v547
      %v1063 = vpop.f32.mrf.mxu0
      %v1064 = vadd.f32 %v975, %v1063
      %v1065 = vpop.f32.mrf.mxu0
      %v1066 = vadd.f32 %v977, %v1065
      %1067 = vmatmul.bf16.gmra.mxu0 %v551
      %v1068 = vpop.f32.mrf.mxu0
      %v1069 = vadd.f32 %v980, %v1068
      %v1070 = vpop.f32.mrf.mxu0
      %v1071 = vadd.f32 %v982, %v1070
      %1072 = vmatmul.bf16.gmra.mxu0 %v555
      %v1073 = vpop.f32.mrf.mxu0
      %v1074 = vadd.f32 %v985, %v1073
      %v1075 = vpop.f32.mrf.mxu0
      %v1076 = vadd.f32 %v987, %v1075
      %1077 = vmatmul.bf16.gmra.mxu0 %v559
      %v1078 = vpop.f32.mrf.mxu0
      %v1079 = vadd.f32 %v990, %v1078
      %v1080 = vpop.f32.mrf.mxu0
      %v1081 = vadd.f32 %v992, %v1080
      %1082 = vmatmul.bf16.gmra.mxu0 %v563
      %v1083 = vpop.f32.mrf.mxu0
      %v1084 = vadd.f32 %v995, %v1083
      %v1085 = vpop.f32.mrf.mxu0
      %v1086 = vadd.f32 %v997, %v1085
      %1087 = vdwg.mxu0
      %1088 = vmatpush.bf16.msra.mxu0 %v788
      %1089 = vmatpush.bf16.msra.mxu0 %v787
      %1090 = vmatpush.bf16.msra.mxu0 %v786
      %1091 = vmatpush.bf16.msra.mxu0 %v785
      %1092 = vmatpush.bf16.msra.mxu0 %v784
      %1093 = vmatpush.bf16.msra.mxu0 %v783
      %1094 = vmatpush.bf16.msra.mxu0 %v782
      %1095 = vmatpush.bf16.msra.mxu0 %v781
      %1096 = vmatmul.bf16.gmra.mxu0 %v504
      %v1097 = vpop.f32.mrf.mxu0
      %v1098 = vadd.f32 %v1009, %v1097
      %v1099 = vpop.f32.mrf.mxu0
      %v1100 = vadd.f32 %v1011, %v1099
      %1101 = vmatmul.bf16.gmra.mxu0 %v508
      %v1102 = vpop.f32.mrf.mxu0
      %v1103 = vadd.f32 %v1014, %v1102
      %v1104 = vpop.f32.mrf.mxu0
      %v1105 = vadd.f32 %v1016, %v1104
      %1106 = vmatmul.bf16.gmra.mxu0 %v512
      %v1107 = vpop.f32.mrf.mxu0
      %v1108 = vadd.f32 %v1019, %v1107
      %v1109 = vpop.f32.mrf.mxu0
      %v1110 = vadd.f32 %v1021, %v1109
      %1111 = vmatmul.bf16.gmra.mxu0 %v516
      %v1112 = vpop.f32.mrf.mxu0
      %v1113 = vadd.f32 %v1024, %v1112
      %v1114 = vpop.f32.mrf.mxu0
      %v1115 = vadd.f32 %v1026, %v1114
      %1116 = vmatmul.bf16.gmra.mxu0 %v520
      %v1117 = vpop.f32.mrf.mxu0
      %v1118 = vadd.f32 %v1029, %v1117
      %v1119 = vpop.f32.mrf.mxu0
      %v1120 = vadd.f32 %v1031, %v1119
      %1121 = vmatmul.bf16.gmra.mxu0 %v524
      %v1122 = vpop.f32.mrf.mxu0
      %v1123 = vadd.f32 %v1034, %v1122
      %v1124 = vpop.f32.mrf.mxu0
      %v1125 = vadd.f32 %v1036, %v1124
      %1126 = vmatmul.bf16.gmra.mxu0 %v528
      %v1127 = vpop.f32.mrf.mxu0
      %v1128 = vadd.f32 %v1039, %v1127
      %v1129 = vpop.f32.mrf.mxu0
      %v1130 = vadd.f32 %v1041, %v1129
      %1131 = vmatmul.bf16.gmra.mxu0 %v532
      %v1132 = vpop.f32.mrf.mxu0
      %v1133 = vadd.f32 %v1044, %v1132
      %v1134 = vpop.f32.mrf.mxu0
      %v1135 = vadd.f32 %v1046, %v1134
      %1136 = vmatmul.bf16.gmra.mxu0 %v536
      %v1137 = vpop.f32.mrf.mxu0
      %v1138 = vadd.f32 %v1049, %v1137
      %v1139 = vpop.f32.mrf.mxu0
      %v1140 = vadd.f32 %v1051, %v1139
      %1141 = vmatmul.bf16.gmra.mxu0 %v540
      %v1142 = vpop.f32.mrf.mxu0
      %v1143 = vadd.f32 %v1054, %v1142
      %v1144 = vpop.f32.mrf.mxu0
      %v1145 = vadd.f32 %v1056, %v1144
      %1146 = vmatmul.bf16.gmra.mxu0 %v544
      %v1147 = vpop.f32.mrf.mxu0
      %v1148 = vadd.f32 %v1059, %v1147
      %v1149 = vpop.f32.mrf.mxu0
      %v1150 = vadd.f32 %v1061, %v1149
      %1151 = vmatmul.bf16.gmra.mxu0 %v548
      %v1152 = vpop.f32.mrf.mxu0
      %v1153 = vadd.f32 %v1064, %v1152
      %v1154 = vpop.f32.mrf.mxu0
      %v1155 = vadd.f32 %v1066, %v1154
      %1156 = vmatmul.bf16.gmra.mxu0 %v552
      %v1157 = vpop.f32.mrf.mxu0
      %v1158 = vadd.f32 %v1069, %v1157
      %v1159 = vpop.f32.mrf.mxu0
      %v1160 = vadd.f32 %v1071, %v1159
      %1161 = vmatmul.bf16.gmra.mxu0 %v556
      %v1162 = vpop.f32.mrf.mxu0
      %v1163 = vadd.f32 %v1074, %v1162
      %v1164 = vpop.f32.mrf.mxu0
      %v1165 = vadd.f32 %v1076, %v1164
      %1166 = vmatmul.bf16.gmra.mxu0 %v560
      %v1167 = vpop.f32.mrf.mxu0
      %v1168 = vadd.f32 %v1079, %v1167
      %v1169 = vpop.f32.mrf.mxu0
      %v1170 = vadd.f32 %v1081, %v1169
      %1171 = vmatmul.bf16.gmra.mxu0 %v564
      %v1172 = vpop.f32.mrf.mxu0
      %v1173 = vadd.f32 %v1084, %v1172
      %v1174 = vpop.f32.mrf.mxu0
      %v1175 = vadd.f32 %v1086, %v1174
      %1176 = vdwg.mxu0
      %v1177 = vsub.f32 0.0, %v1098
      %v1178 = vsub.f32 0.0, %v1100
      %v1179 = vsub.f32 0.0, %v1103
      %v1180 = vsub.f32 0.0, %v1105
      %v1181 = vsub.f32 0.0, %v1108
      %v1182 = vsub.f32 0.0, %v1110
      %v1183 = vsub.f32 0.0, %v1113
      %v1184 = vsub.f32 0.0, %v1115
      %v1185 = vsub.f32 0.0, %v1118
      %v1186 = vsub.f32 0.0, %v1120
      %v1187 = vsub.f32 0.0, %v1123
      %v1188 = vsub.f32 0.0, %v1125
      %v1189 = vsub.f32 0.0, %v1128
      %v1190 = vsub.f32 0.0, %v1130
      %v1191 = vsub.f32 0.0, %v1133
      %v1192 = vsub.f32 0.0, %v1135
      %v1193 = vsub.f32 0.0, %v1138
      %v1194 = vsub.f32 0.0, %v1140
      %v1195 = vsub.f32 0.0, %v1143
      %v1196 = vsub.f32 0.0, %v1145
      %v1197 = vsub.f32 0.0, %v1148
      %v1198 = vsub.f32 0.0, %v1150
      %v1199 = vsub.f32 0.0, %v1153
      %v1200 = vsub.f32 0.0, %v1155
      %v1201 = vsub.f32 0.0, %v1158
      %v1202 = vsub.f32 0.0, %v1160
      %v1203 = vsub.f32 0.0, %v1163
      %v1204 = vsub.f32 0.0, %v1165
      %v1205 = vsub.f32 0.0, %v1168
      %v1206 = vsub.f32 0.0, %v1170
      %v1207 = vsub.f32 0.0, %v1173
      %v1208 = vsub.f32 0.0, %v1175
      %v1209 = vmul.f32 %v1177, 1.442695
      %v1210 = vpow.pop %v1209
      %v1211 = vmul.f32 %v1178, 1.442695
      %v1212 = vpow.pop %v1211
      %v1213 = vmul.f32 %v1179, 1.442695
      %v1214 = vpow.pop %v1213
      %v1215 = vmul.f32 %v1180, 1.442695
      %v1216 = vpow.pop %v1215
      %v1217 = vmul.f32 %v1181, 1.442695
      %v1218 = vpow.pop %v1217
      %v1219 = vmul.f32 %v1182, 1.442695
      %v1220 = vpow.pop %v1219
      %v1221 = vmul.f32 %v1183, 1.442695
      %v1222 = vpow.pop %v1221
      %v1223 = vmul.f32 %v1184, 1.442695
      %v1224 = vpow.pop %v1223
      %v1225 = vmul.f32 %v1185, 1.442695
      %v1226 = vpow.pop %v1225
      %v1227 = vmul.f32 %v1186, 1.442695
      %v1228 = vpow.pop %v1227
      %v1229 = vmul.f32 %v1187, 1.442695
      %v1230 = vpow.pop %v1229
      %v1231 = vmul.f32 %v1188, 1.442695
      %v1232 = vpow.pop %v1231
      %v1233 = vmul.f32 %v1189, 1.442695
      %v1234 = vpow.pop %v1233
      %v1235 = vmul.f32 %v1190, 1.442695
      %v1236 = vpow.pop %v1235
      %v1237 = vmul.f32 %v1191, 1.442695
      %v1238 = vpow.pop %v1237
      %v1239 = vmul.f32 %v1192, 1.442695
      %v1240 = vpow.pop %v1239
      %v1241 = vmul.f32 %v1193, 1.442695
      %v1242 = vpow.pop %v1241
      %v1243 = vmul.f32 %v1194, 1.442695
      %v1244 = vpow.pop %v1243
      %v1245 = vmul.f32 %v1195, 1.442695
      %v1246 = vpow.pop %v1245
      %v1247 = vmul.f32 %v1196, 1.442695
      %v1248 = vpow.pop %v1247
      %v1249 = vmul.f32 %v1197, 1.442695
      %v1250 = vpow.pop %v1249
      %v1251 = vmul.f32 %v1198, 1.442695
      %v1252 = vpow.pop %v1251
      %v1253 = vmul.f32 %v1199, 1.442695
      %v1254 = vpow.pop %v1253
      %v1255 = vmul.f32 %v1200, 1.442695
      %v1256 = vpow.pop %v1255
      %v1257 = vmul.f32 %v1201, 1.442695
      %v1258 = vpow.pop %v1257
      %v1259 = vmul.f32 %v1202, 1.442695
      %v1260 = vpow.pop %v1259
      %v1261 = vmul.f32 %v1203, 1.442695
      %v1262 = vpow.pop %v1261
      %v1263 = vmul.f32 %v1204, 1.442695
      %v1264 = vpow.pop %v1263
      %v1265 = vmul.f32 %v1205, 1.442695
      %v1266 = vpow.pop %v1265
      %v1267 = vmul.f32 %v1206, 1.442695
      %v1268 = vpow.pop %v1267
      %v1269 = vmul.f32 %v1207, 1.442695
      %v1270 = vpow.pop %v1269
      %v1271 = vmul.f32 %v1208, 1.442695
      %v1272 = vpow.pop %v1271
      %v1273 = vadd.f32 %v1210, 1.0
      %v1274 = vadd.f32 %v1212, 1.0
      %v1275 = vadd.f32 %v1214, 1.0
      %v1276 = vadd.f32 %v1216, 1.0
      %v1277 = vadd.f32 %v1218, 1.0
      %v1278 = vadd.f32 %v1220, 1.0
      %v1279 = vadd.f32 %v1222, 1.0
      %v1280 = vadd.f32 %v1224, 1.0
      %v1281 = vadd.f32 %v1226, 1.0
      %v1282 = vadd.f32 %v1228, 1.0
      %v1283 = vadd.f32 %v1230, 1.0
      %v1284 = vadd.f32 %v1232, 1.0
      %v1285 = vadd.f32 %v1234, 1.0
      %v1286 = vadd.f32 %v1236, 1.0
      %v1287 = vadd.f32 %v1238, 1.0
      %v1288 = vadd.f32 %v1240, 1.0
      %v1289 = vadd.f32 %v1242, 1.0
      %v1290 = vadd.f32 %v1244, 1.0
      %v1291 = vadd.f32 %v1246, 1.0
      %v1292 = vadd.f32 %v1248, 1.0
      %v1293 = vadd.f32 %v1250, 1.0
      %v1294 = vadd.f32 %v1252, 1.0
      %v1295 = vadd.f32 %v1254, 1.0
      %v1296 = vadd.f32 %v1256, 1.0
      %v1297 = vadd.f32 %v1258, 1.0
      %v1298 = vadd.f32 %v1260, 1.0
      %v1299 = vadd.f32 %v1262, 1.0
      %v1300 = vadd.f32 %v1264, 1.0
      %v1301 = vadd.f32 %v1266, 1.0
      %v1302 = vadd.f32 %v1268, 1.0
      %v1303 = vadd.f32 %v1270, 1.0
      %v1304 = vadd.f32 %v1272, 1.0
      %v1305 = vrcp.pop %v1273
      %v1306 = vrcp.pop %v1274
      %v1307 = vrcp.pop %v1275
      %v1308 = vrcp.pop %v1276
      %v1309 = vrcp.pop %v1277
      %v1310 = vrcp.pop %v1278
      %v1311 = vrcp.pop %v1279
      %v1312 = vrcp.pop %v1280
      %v1313 = vrcp.pop %v1281
      %v1314 = vrcp.pop %v1282
      %v1315 = vrcp.pop %v1283
      %v1316 = vrcp.pop %v1284
      %v1317 = vrcp.pop %v1285
      %v1318 = vrcp.pop %v1286
      %v1319 = vrcp.pop %v1287
      %v1320 = vrcp.pop %v1288
      %v1321 = vrcp.pop %v1289
      %v1322 = vrcp.pop %v1290
      %v1323 = vrcp.pop %v1291
      %v1324 = vrcp.pop %v1292
      %v1325 = vrcp.pop %v1293
      %v1326 = vrcp.pop %v1294
      %v1327 = vrcp.pop %v1295
      %v1328 = vrcp.pop %v1296
      %v1329 = vrcp.pop %v1297
      %v1330 = vrcp.pop %v1298
      %v1331 = vrcp.pop %v1299
      %v1332 = vrcp.pop %v1300
      %v1333 = vrcp.pop %v1301
      %v1334 = vrcp.pop %v1302
      %v1335 = vrcp.pop %v1303
      %v1336 = vrcp.pop %v1304
      %v1337 = vmax.f32 %v1305, 0.0
      %v1338 = vmax.f32 %v1306, 0.0
      %v1339 = vmax.f32 %v1307, 0.0
      %v1340 = vmax.f32 %v1308, 0.0
      %v1341 = vmax.f32 %v1309, 0.0
      %v1342 = vmax.f32 %v1310, 0.0
      %v1343 = vmax.f32 %v1311, 0.0
      %v1344 = vmax.f32 %v1312, 0.0
      %v1345 = vmax.f32 %v1313, 0.0
      %v1346 = vmax.f32 %v1314, 0.0
      %v1347 = vmax.f32 %v1315, 0.0
      %v1348 = vmax.f32 %v1316, 0.0
      %v1349 = vmax.f32 %v1317, 0.0
      %v1350 = vmax.f32 %v1318, 0.0
      %v1351 = vmax.f32 %v1319, 0.0
      %v1352 = vmax.f32 %v1320, 0.0
      %v1353 = vmax.f32 %v1321, 0.0
      %v1354 = vmax.f32 %v1322, 0.0
      %v1355 = vmax.f32 %v1323, 0.0
      %v1356 = vmax.f32 %v1324, 0.0
      %v1357 = vmax.f32 %v1325, 0.0
      %v1358 = vmax.f32 %v1326, 0.0
      %v1359 = vmax.f32 %v1327, 0.0
      %v1360 = vmax.f32 %v1328, 0.0
      %v1361 = vmax.f32 %v1329, 0.0
      %v1362 = vmax.f32 %v1330, 0.0
      %v1363 = vmax.f32 %v1331, 0.0
      %v1364 = vmax.f32 %v1332, 0.0
      %v1365 = vmax.f32 %v1333, 0.0
      %v1366 = vmax.f32 %v1334, 0.0
      %v1367 = vmax.f32 %v1335, 0.0
      %v1368 = vmax.f32 %v1336, 0.0
      %v1369 = vmin.f32 %v1337, 1.0
      %v1370 = vmin.f32 %v1338, 1.0
      %v1371 = vmin.f32 %v1339, 1.0
      %v1372 = vmin.f32 %v1340, 1.0
      %v1373 = vmin.f32 %v1341, 1.0
      %v1374 = vmin.f32 %v1342, 1.0
      %v1375 = vmin.f32 %v1343, 1.0
      %v1376 = vmin.f32 %v1344, 1.0
      %v1377 = vmin.f32 %v1345, 1.0
      %v1378 = vmin.f32 %v1346, 1.0
      %v1379 = vmin.f32 %v1347, 1.0
      %v1380 = vmin.f32 %v1348, 1.0
      %v1381 = vmin.f32 %v1349, 1.0
      %v1382 = vmin.f32 %v1350, 1.0
      %v1383 = vmin.f32 %v1351, 1.0
      %v1384 = vmin.f32 %v1352, 1.0
      %v1385 = vmin.f32 %v1353, 1.0
      %v1386 = vmin.f32 %v1354, 1.0
      %v1387 = vmin.f32 %v1355, 1.0
      %v1388 = vmin.f32 %v1356, 1.0
      %v1389 = vmin.f32 %v1357, 1.0
      %v1390 = vmin.f32 %v1358, 1.0
      %v1391 = vmin.f32 %v1359, 1.0
      %v1392 = vmin.f32 %v1360, 1.0
      %v1393 = vmin.f32 %v1361, 1.0
      %v1394 = vmin.f32 %v1362, 1.0
      %v1395 = vmin.f32 %v1363, 1.0
      %v1396 = vmin.f32 %v1364, 1.0
      %v1397 = vmin.f32 %v1365, 1.0
      %v1398 = vmin.f32 %v1366, 1.0
      %v1399 = vmin.f32 %v1367, 1.0
      %v1400 = vmin.f32 %v1368, 1.0
      %1401 = vst [vmem:[%s175] sm:$0xff] %v1369
      %1402 = vst [vmem:[%s175 + $0x8] sm:$0xff] %v1370
      %1403 = vst [vmem:[%s175 + $0x10] sm:$0xff] %v1371
      %1404 = vst [vmem:[%s175 + $0x18] sm:$0xff] %v1372
      %1405 = vst [vmem:[%s175 + $0x20] sm:$0xff] %v1373
      %1406 = vst [vmem:[%s175 + $0x28] sm:$0xff] %v1374
      %1407 = vst [vmem:[%s175 + $0x30] sm:$0xff] %v1375
      %1408 = vst [vmem:[%s175 + $0x38] sm:$0xff] %v1376
      %1409 = vst [vmem:[%s175 + $0x40] sm:$0xff] %v1377
      %1410 = vst [vmem:[%s175 + $0x48] sm:$0xff] %v1378
      %1411 = vst [vmem:[%s175 + $0x50] sm:$0xff] %v1379
      %1412 = vst [vmem:[%s175 + $0x58] sm:$0xff] %v1380
      %1413 = vst [vmem:[%s175 + $0x60] sm:$0xff] %v1381
      %1414 = vst [vmem:[%s175 + $0x68] sm:$0xff] %v1382
      %1415 = vst [vmem:[%s175 + $0x70] sm:$0xff] %v1383
      %1416 = vst [vmem:[%s175 + $0x78] sm:$0xff] %v1384
      %1417 = vst [vmem:[%s175 + $0x80] sm:$0xff] %v1385
      %1418 = vst [vmem:[%s175 + $0x88] sm:$0xff] %v1386
      %1419 = vst [vmem:[%s175 + $0x90] sm:$0xff] %v1387
      %1420 = vst [vmem:[%s175 + $0x98] sm:$0xff] %v1388
      %1421 = vst [vmem:[%s175 + $0xa0] sm:$0xff] %v1389
      %1422 = vst [vmem:[%s175 + $0xa8] sm:$0xff] %v1390
      %1423 = vst [vmem:[%s175 + $0xb0] sm:$0xff] %v1391
      %1424 = vst [vmem:[%s175 + $0xb8] sm:$0xff] %v1392
      %1425 = vst [vmem:[%s175 + $0xc0] sm:$0xff] %v1393
      %1426 = vst [vmem:[%s175 + $0xc8] sm:$0xff] %v1394
      %1427 = vst [vmem:[%s175 + $0xd0] sm:$0xff] %v1395
      %1428 = vst [vmem:[%s175 + $0xd8] sm:$0xff] %v1396
      %1429 = vst [vmem:[%s175 + $0xe0] sm:$0xff] %v1397
      %1430 = vst [vmem:[%s175 + $0xe8] sm:$0xff] %v1398
      %1431 = vst [vmem:[%s175 + $0xf0] sm:$0xff] %v1399
      %1432 = vst [vmem:[%s175 + $0xf8] sm:$0xff] %v1400
      %s1433 = smul.u32 32, %s14
      %p1434 = scmp.lt.s32.totalorder %s1433, 63
      %s1435 = scalar_select %p1434, %s1433, 63
      %s1436 = smul.addr %s1435, 8
      %s1437 = scalar_lea.vmem %s3, %s1436
      // Predicated region
      $region33: #{ae_forward.19} parent=31 // pred_check
        %p1438 = pneg %p100
      $region34: #{ae_forward.19} parent=31 // pred_check_branch
        %1440 = sbr.rel (%p1438) target = $region36
      $region35: #{ae_forward.19} parent=31 // pred_region
        %s1441 = smul.u32 32, %s14
      $region36: #{ae_forward.19} parent=31 // pred_fallthru
        _
    $region32: #{ae_forward.19} parent=5 // pred_fallthru
      _
    %p1442 = scmp.le.s32.totalorder 2, %s9
    // Predicated region
    $region37: #{ae_forward.19} parent=5 // pred_check
      %p1443 = pneg %p1442
    $region38: #{ae_forward.19} parent=5 // pred_check_branch
      %1445 = sbr.rel (%p1443) target = $region40
    $region39: #{ae_forward.19} parent=5 // pred_region
      %s1446 = ssub.s32 %s9, 2
      // Predicated region
      $region41: #{ae_forward.19} parent=39 // pred_check
        %p1447 = pneg %p106
      $region42: #{ae_forward.19} parent=39 // pred_check_branch
        %1449 = sbr.rel (%p1447) target = $region44
      $region43: #{ae_forward.19} parent=39 // pred_region
        %s1450 = smul.u32 32, %s15
        %p1451 = scmp.lt.s32.totalorder %s1450, 63
        %s1452 = scalar_select %p1451, %s1450, 63
        %s1453 = smul.addr %s1452, 8
        %s1454 = scalar_lea.vmem %s3, %s1453
      $region44: #{ae_forward.19} parent=39 // pred_fallthru
        _
    $region40: #{ae_forward.19} parent=5 // pred_fallthru
      _
  $region6: #{ae_forward.19} parent=0 // loop_footer
    %s13 = sadd.s32 1, %s9
  $region7: #{ae_forward.19} parent=0 // loop_footer_branch
    %8 = sbr.rel target = $region3
  $region8: #{ae_forward.19} parent=0 // loop_exit
    _

</llo_original>
